<compile_context>
chip_gen: v7x
topology: tpu7x:2x2x1
jax: 0.10.0
libtpu: 0.0.40
codegen_flags: <defaults>
</compile_context>

<pallas_src>
import math

import jax
import jax.numpy as jnp
from jax.experimental import pallas as pl
from jax.experimental.pallas import tpu as pltpu

D_IN = 1280
D_HID = 768 * 3   # 2304
D_OUT = 768


def _fused_mlp_kernel(x_ref, w1_ref, b1_ref, w2_ref, b2_ref, o_ref):
    """One (tm, D_IN) row tile; grid axis 1 walks chunks of the hidden dim.

    o_ref's block index is constant across j, so it stays VMEM-resident and is
    used directly as the f32 accumulator (no scratch buffer, no final copy).
    """
    j = pl.program_id(1)

    @pl.when(j == 0)
    def _():
        o_ref[...] = jnp.zeros_like(o_ref)

    # Hidden chunk: relu(x @ W1[:, jblk] + b1[jblk]) — bf16 operands on the
    # MXU, f32 accumulation, f32 bias/ReLU math.
    h = jnp.dot(x_ref[...], w1_ref[...], preferred_element_type=jnp.float32)
    h = jnp.maximum(h + b1_ref[...], 0.0)

    # Accumulate this chunk's contribution to the 2nd matmul into the
    # resident f32 output tile (bf16 operands, f32 accumulation).
    o_ref[...] += jnp.dot(h.astype(jnp.bfloat16), w2_ref[...],
                          preferred_element_type=jnp.float32)

    @pl.when(j == pl.num_programs(1) - 1)
    def _():
        o_ref[...] = jnp.maximum(o_ref[...] + b2_ref[...], 0.0)


def _round_up(x, m):
    return ((x + m - 1) // m) * m


def _choose_tm(M, block_m):
    """Row-tile size: ceil(M/block_m) tiles with minimal padding, multiple of 8."""
    if M <= block_m:
        return _round_up(max(M, 1), 8)
    n_tiles = -(-M // block_m)
    return _round_up(-(-M // n_tiles), 8)


def antigen_convert_forward(x, params, *, block_m=512, block_j=384):
    """x: (..., 1280) -> (..., 768).  Fused Linear-ReLU-Linear-ReLU."""
    w1, b1, w2, b2 = params["w1"], params["b1"], params["w2"], params["b2"]
    assert w1.shape == (D_IN, D_HID) and w2.shape == (D_HID, D_OUT)
    assert D_HID % block_j == 0 and block_j % 128 == 0

    lead = x.shape[:-1]
    assert x.shape[-1] == D_IN
    M = int(math.prod(lead)) if lead else 1

    # Weight-streaming-bound: stream activations/weights as bf16 (half the HBM
    # bytes); biases + accumulation stay f32.
    x2 = x.reshape(M, D_IN).astype(jnp.bfloat16)
    w1b = w1.astype(jnp.bfloat16)
    w2b = w2.astype(jnp.bfloat16)
    b1r = b1.reshape(1, D_HID).astype(jnp.float32)
    b2r = b2.reshape(1, D_OUT).astype(jnp.float32)

    tm = _choose_tm(M, block_m)
    n_row_tiles = -(-M // tm)
    Mp = n_row_tiles * tm
    if Mp != M:
        x2 = jnp.pad(x2, ((0, Mp - M), (0, 0)))

    grid = (n_row_tiles, D_HID // block_j)

    # VMEM budget: double-buffered x/W1/W2/out tiles + the f32 hidden chunk.
    # Ask for at least the default 32 MiB, never past v7x's 64 MiB physical.
    vmem_est = (2 * (tm * D_IN * 2 + D_IN * block_j * 2
                     + block_j * D_OUT * 2 + tm * D_OUT * 4)
                + 2 * tm * block_j * 4)
    vmem_limit = int(min(max(vmem_est + (8 << 20), 32 << 20), 60 << 20))

    out = pl.pallas_call(
        _fused_mlp_kernel,
        out_shape=jax.ShapeDtypeStruct((Mp, D_OUT), jnp.float32),
        grid=grid,
        in_specs=[
            pl.BlockSpec((tm, D_IN), lambda i, j: (i, 0)),        # x rows (bf16)
            pl.BlockSpec((D_IN, block_j), lambda i, j: (0, j)),   # W1 col chunk (bf16)
            pl.BlockSpec((1, block_j), lambda i, j: (0, j)),      # b1 chunk (f32)
            pl.BlockSpec((block_j, D_OUT), lambda i, j: (j, 0)),  # W2 row chunk (bf16)
            pl.BlockSpec((1, D_OUT), lambda i, j: (0, 0)),        # b2 (f32)
        ],
        out_specs=pl.BlockSpec((tm, D_OUT), lambda i, j: (i, 0)),
        compiler_params=pltpu.CompilerParams(
            dimension_semantics=("parallel", "arbitrary"),
            vmem_limit_bytes=vmem_limit),
    )(x2, w1b, b1r, w2b, b2r)

    return out[:M].reshape(*lead, D_OUT)


def init_params(key):
    k1, k2, k3, k4 = jax.random.split(key, 4)
    s1 = 1.0 / math.sqrt(D_IN)
    s2 = 1.0 / math.sqrt(D_HID)
    return {
        "w1": s1 * jax.random.normal(k1, (D_IN, D_HID), jnp.float32),
        "b1": s1 * jax.random.normal(k2, (D_HID,), jnp.float32),
        "w2": s2 * jax.random.normal(k3, (D_HID, D_OUT), jnp.float32),
        "b2": s2 * jax.random.normal(k4, (D_OUT,), jnp.float32),
    }


def _reference(x, params):
    h = jnp.maximum(x.reshape(-1, D_IN) @ params["w1"] + params["b1"], 0.0)
    o = jnp.maximum(h @ params["w2"] + params["b2"], 0.0)
    return o.reshape(*x.shape[:-1], D_OUT)


if __name__ == "__main__":
    B, S = 2, 8   # antigen embeddings: (batch, seq, 1280)

    root = jax.random.PRNGKey(0)
    k_par, k_x = jax.random.split(root)

    params = init_params(k_par)
    x = jax.random.normal(k_x, (B, S, D_IN), jnp.float32)

    fwd = jax.jit(antigen_convert_forward)
    out = jax.block_until_ready(fwd(x, params))

    assert out.shape == (B, S, D_OUT), out.shape
    assert bool(jnp.all(jnp.isfinite(out)))
    assert bool(jnp.all(out >= 0.0))  # final ReLU

    ref = _reference(x, params)
    assert jnp.allclose(out, ref, rtol=2e-2, atol=2e-2), \
        float(jnp.max(jnp.abs(out - ref)))

    print("KERNEL_OK")
</pallas_src>

<mosaic_0001>
module attributes {stable_mosaic.version = 11 : i64} {
  func.func @_fused_mlp_kernel(%arg0: i32, %arg1: i32, %arg2: memref<16x1280xbf16, #tpu.memory_space<vmem>>, %arg3: memref<1280x384xbf16, #tpu.memory_space<vmem>>, %arg4: memref<1x384xf32, #tpu.memory_space<vmem>>, %arg5: memref<384x768xbf16, #tpu.memory_space<vmem>>, %arg6: memref<1x768xf32, #tpu.memory_space<vmem>>, %arg7: memref<16x768xf32, #tpu.memory_space<vmem>>) attributes {dimension_semantics = [#tpu.dimension_semantics<parallel>, #tpu.dimension_semantics<arbitrary>], iteration_bounds = array<i64: 1, 6>, scalar_prefetch = 0 : i64, scratch_operands = 0 : i64, tpu.core_type = #tpu.core_type<tc>, window_params = [{transform_indices = @transform_0, window_bounds = array<i64: 16, 1280>}, {transform_indices = @transform_1, window_bounds = array<i64: 1280, 384>}, {transform_indices = @transform_2, window_bounds = array<i64: 1, 384>}, {transform_indices = @transform_3, window_bounds = array<i64: 384, 768>}, {pipeline_mode = #tpu.pipeline_mode<synchronous>, transform_indices = @transform_4, window_bounds = array<i64: 1, 768>}, {transform_indices = @transform_5, window_bounds = array<i64: 16, 768>}]} {
    %c0_i32 = arith.constant 0 : i32
    %0 = arith.cmpi eq, %arg1, %c0_i32 : i32
    %1 = arith.extui %0 : i1 to i32
    %c0_i32_0 = arith.constant 0 : i32
    %2 = arith.cmpi ne, %1, %c0_i32_0 : i32
    scf.if %2 {
      %cst_15 = arith.constant 0.000000e+00 : f32
      %20 = vector.broadcast %cst_15 : f32 to vector<16x768xf32>
      %c0_16 = arith.constant 0 : index
      %c0_17 = arith.constant 0 : index
      %21 = vector.load %arg7[%c0_16, %c0_17] : memref<16x768xf32, #tpu.memory_space<vmem>>, vector<16x768xf32>
      tpu.vector_store %arg7[%c0_16, %c0_17], %20 {strides = array<i32>} : memref<16x768xf32, #tpu.memory_space<vmem>>, vector<16x768xf32>,
    } else {
    }
    %c0 = arith.constant 0 : index
    %c0_1 = arith.constant 0 : index
    %3 = vector.load %arg2[%c0, %c0_1] : memref<16x1280xbf16, #tpu.memory_space<vmem>>, vector<16x1280xbf16>
    %c0_2 = arith.constant 0 : index
    %c0_3 = arith.constant 0 : index
    %4 = vector.load %arg3[%c0_2, %c0_3] : memref<1280x384xbf16, #tpu.memory_space<vmem>>, vector<1280x384xbf16>
    %cst = arith.constant dense<0.000000e+00> : vector<16x384xf32>
    %5 = tpu.matmul %3, %4, %cst {dimension_numbers = #tpu.dot_dimension_numbers<[1], [0], [0], [1], [0, 0, 1, 1], [], []>} : vector<16x1280xbf16>, vector<1280x384xbf16>, vector<16x384xf32> -> vector<16x384xf32>
    %c0_4 = arith.constant 0 : index
    %c0_5 = arith.constant 0 : index
    %6 = vector.load %arg4[%c0_4, %c0_5] : memref<1x384xf32, #tpu.memory_space<vmem>>, vector<1x384xf32>
    %7 = vector.broadcast %6 : vector<1x384xf32> to vector<16x384xf32>
    %8 = arith.addf %5, %7 : vector<16x384xf32>
    %cst_6 = arith.constant 0.000000e+00 : f32
    %9 = vector.broadcast %cst_6 : f32 to vector<16x384xf32>
    %10 = arith.maximumf %8, %9 : vector<16x384xf32>
    %c0_7 = arith.constant 0 : index
    %c0_8 = arith.constant 0 : index
    %11 = vector.load %arg7[%c0_7, %c0_8] : memref<16x768xf32, #tpu.memory_space<vmem>>, vector<16x768xf32>
    %12 = arith.truncf %10 : vector<16x384xf32> to vector<16x384xbf16>
    %c0_9 = arith.constant 0 : index
    %c0_10 = arith.constant 0 : index
    %13 = vector.load %arg5[%c0_9, %c0_10] : memref<384x768xbf16, #tpu.memory_space<vmem>>, vector<384x768xbf16>
    %cst_11 = arith.constant dense<0.000000e+00> : vector<16x768xf32>
    %14 = tpu.matmul %12, %13, %cst_11 {dimension_numbers = #tpu.dot_dimension_numbers<[1], [0], [0], [1], [0, 0, 1, 1], [], []>} : vector<16x384xbf16>, vector<384x768xbf16>, vector<16x768xf32> -> vector<16x768xf32>
    %15 = arith.addf %11, %14 : vector<16x768xf32>
    %c0_12 = arith.constant 0 : index
    %c0_13 = arith.constant 0 : index
    %16 = vector.load %arg7[%c0_12, %c0_13] : memref<16x768xf32, #tpu.memory_space<vmem>>, vector<16x768xf32>
    tpu.vector_store %arg7[%c0_12, %c0_13], %15 {strides = array<i32>} : memref<16x768xf32, #tpu.memory_space<vmem>>, vector<16x768xf32>,
    %c5_i32 = arith.constant 5 : i32
    %17 = arith.cmpi eq, %arg1, %c5_i32 : i32
    %18 = arith.extui %17 : i1 to i32
    %c0_i32_14 = arith.constant 0 : i32
    %19 = arith.cmpi ne, %18, %c0_i32_14 : i32
    scf.if %19 {
      %c0_15 = arith.constant 0 : index
      %c0_16 = arith.constant 0 : index
      %20 = vector.load %arg7[%c0_15, %c0_16] : memref<16x768xf32, #tpu.memory_space<vmem>>, vector<16x768xf32>
      %c0_17 = arith.constant 0 : index
      %c0_18 = arith.constant 0 : index
      %21 = vector.load %arg6[%c0_17, %c0_18] : memref<1x768xf32, #tpu.memory_space<vmem>>, vector<1x768xf32>
      %22 = vector.broadcast %21 : vector<1x768xf32> to vector<16x768xf32>
      %23 = arith.addf %20, %22 : vector<16x768xf32>
      %cst_19 = arith.constant 0.000000e+00 : f32
      %24 = vector.broadcast %cst_19 : f32 to vector<16x768xf32>
      %25 = arith.maximumf %23, %24 : vector<16x768xf32>
      %c0_20 = arith.constant 0 : index
      %c0_21 = arith.constant 0 : index
      %26 = vector.load %arg7[%c0_20, %c0_21] : memref<16x768xf32, #tpu.memory_space<vmem>>, vector<16x768xf32>
      tpu.vector_store %arg7[%c0_20, %c0_21], %25 {strides = array<i32>} : memref<16x768xf32, #tpu.memory_space<vmem>>, vector<16x768xf32>,
    } else {
    }
    return
  }
  func.func @transform_0(%arg0: i32, %arg1: i32) -> (i32, i32) {
    %c0_i32 = arith.constant 0 : i32
    %c0_i32_0 = arith.constant 0 : i32
    return %arg0, %c0_i32 : i32, i32
  }
  func.func @transform_1(%arg0: i32, %arg1: i32) -> (i32, i32) {
    %c0_i32 = arith.constant 0 : i32
    %c0_i32_0 = arith.constant 0 : i32
    return %c0_i32, %arg1 : i32, i32
  }
  func.func @transform_2(%arg0: i32, %arg1: i32) -> (i32, i32) {
    %c0_i32 = arith.constant 0 : i32
    %c0_i32_0 = arith.constant 0 : i32
    return %c0_i32, %arg1 : i32, i32
  }
  func.func @transform_3(%arg0: i32, %arg1: i32) -> (i32, i32) {
    %c0_i32 = arith.constant 0 : i32
    %c0_i32_0 = arith.constant 0 : i32
    return %arg1, %c0_i32 : i32, i32
  }
  func.func @transform_4(%arg0: i32, %arg1: i32) -> (i32, i32) {
    %c0_i32 = arith.constant 0 : i32
    %c0_i32_0 = arith.constant 0 : i32
    %c0_i32_1 = arith.constant 0 : i32
    return %c0_i32, %c0_i32_0 : i32, i32
  }
  func.func @transform_5(%arg0: i32, %arg1: i32) -> (i32, i32) {
    %c0_i32 = arith.constant 0 : i32
    %c0_i32_0 = arith.constant 0 : i32
    return %arg0, %c0_i32 : i32, i32
  }
}

</mosaic_0001>

<llo_original>
// kernel: antigen_convert_forward.1
$region0: #{antigen_convert_forward.1}
  #allocation0 [shape = 'u32[]', space=smem, size = 0x4, offset = 0x4, fixed_abs, tag = 'smem constant byte address 0x4 - core index']
  #allocation1 [shape = 'u32[144,128]{1,0:T(1,128)}', space=vmem, size = 0x12000, scoped, tag = 'internal scratch']
  %s0 = inlined_call_operand.vmem [shape: bf16[16,1280], index: 0, kind: input, shape index: {}]
  %s1 = inlined_call_operand.vmem [shape: bf16[1280,2304], index: 1, kind: input, shape index: {}]
  %s2 = inlined_call_operand.vmem [shape: f32[1,2304], index: 2, kind: input, shape index: {}]
  %s3 = inlined_call_operand.vmem [shape: bf16[2304,768], index: 3, kind: input, shape index: {}]
  %s4 = inlined_call_operand.vmem [shape: f32[1,768], index: 4, kind: input, shape index: {}]
  %s5 = inlined_call_operand.hbm [shape: f32[16,768], index: 5, kind: output, shape index: {}]
  %s6 = sld [smem:[#allocation0]]
  $region87: #{antigen_convert_forward.1} parent=0
    _
  %s8 = ssub.s32 1, %s6
  %s9 = scalar_select 0, %s8, %s6
  $region1: #{antigen_convert_forward.1} parent=0
    #allocation2 [shape = 'u8[1966080]{0}', space=vmem, size = 0x1e0000, scoped, tag = 'input window, operand 1']
    #allocation3 [shape = 'u8[49152]{0}', space=vmem, size = 0xc000, scoped, tag = 'output window, operand 0, single buffered']
    #allocation4 [shape = 's32[2]{0}', space=sflag, size = 0x8, scoped, tag = 'scoped memory for antigen_convert_forward.1']
    %10 = vsyncpa [#allocation4], 0
    loop: start=0, step=1, limit=8
    $region2: #{antigen_convert_forward.1} parent=1 // loop_pre_header
      _
    $region3: #{antigen_convert_forward.1} parent=1 // loop_header
      %s12 = sphi 0, %s16
      %p13 = scmp.ge.s32.totalorder %s12, 8
      %s19 = sphi 0, %s31
      %s20 = sphi 0, %s27
      %s21 = sphi 0, %s19
      %s22 = sphi 0, %s20
      %s23 = sphi 0, %s21
      %s24 = sphi 0, %s22
      %s34 = sphi 0, %s36
      %s37 = sphi 0, %s34
      %s38 = sphi 0, %s37
      %s54 = sphi 0, %s38
      %s60 = sphi 0, %s62
      %s63 = sphi 0, %s60
      %s64 = sphi 0, %s63
      %s80 = sphi 0, %s64
      %s86 = sphi 0, %s88
      %s89 = sphi 0, %s86
      %s90 = sphi 0, %s89
      %s106 = sphi 0, %s90
      %s112 = sphi 0, %s114
      %s115 = sphi 0, %s112
      %s116 = sphi 0, %s115
      %s132 = sphi 0, %s116
      %s136 = sphi 0, %s136
      %s138 = sphi 0, %s136
      %s139 = sphi 0, %s138
      %s153 = sphi 0, %s139
      %s159 = sphi 0, %s161
      %s162 = sphi 0, %s159
      %s163 = sphi 0, %s162
      %s179 = sphi 0, %s163
    $region4: #{antigen_convert_forward.1} parent=1 // loop_header_branch
      %15 = sbr.rel (%p13) target = $region8
    $region5: #{antigen_convert_forward.1} parent=1 // loop_body
      %s17 = ssub.s32 %s12, 1
      %s18 = ssub.s32 %s12, 2
      %s25 = sadd.s32 1, %s20
      %p26 = scmp.ge.s32.totalorder %s25, 6
      %s27 = scalar_select %p26, 0, %s25
      %s28 = sadd.s32 1, %s19
      %s29 = scalar_select %p26, %s28, %s19
      %p30 = scmp.ge.s32.totalorder %s29, 1
      %s31 = scalar_select %p30, 0, %s29
      %s32 = ssub.s32 %s19, %s31
      %p33 = scmp.eq.s32.totalorder %s32, 0
      %s35 = sadd.s32 %s34, 1
      %s36 = scalar_select %p33, %s34, %s35
      %p39 = pneg %p33
      %p40 = scmp.eq.s32.totalorder %s12, 5
      %p41 = por %p39, %p40
      %p42 = scmp.ne.s32.totalorder %s34, %s37
      %p43 = scmp.eq.s32.totalorder %s12, 0
      %p44 = por %p42, %p43
      %p45 = scmp.ne.s32.totalorder %s34, %s37
      %p46 = scmp.eq.s32.totalorder %s17, 5
      %p47 = por %p45, %p46
      %p48 = scmp.ne.s32.totalorder %s37, %s38
      %p49 = scmp.eq.s32.totalorder %s17, 0
      %p50 = por %p48, %p49
      %p51 = scmp.ne.s32.totalorder %s37, %s38
      %p52 = scmp.eq.s32.totalorder %s18, 5
      %p53 = por %p51, %p52
      %p55 = scmp.ne.s32.totalorder %s38, %s54
      %p56 = scmp.eq.s32.totalorder %s18, 0
      %p57 = por %p55, %p56
      %s58 = ssub.s32 %s20, %s27
      %p59 = scmp.eq.s32.totalorder %s58, 0
      %s61 = sadd.s32 %s60, 1
      %s62 = scalar_select %p59, %s60, %s61
      %p65 = pneg %p59
      %p66 = scmp.eq.s32.totalorder %s12, 5
      %p67 = por %p65, %p66
      %p68 = scmp.ne.s32.totalorder %s60, %s63
      %p69 = scmp.eq.s32.totalorder %s12, 0
      %p70 = por %p68, %p69
      %p71 = scmp.ne.s32.totalorder %s60, %s63
      %p72 = scmp.eq.s32.totalorder %s17, 5
      %p73 = por %p71, %p72
      %p74 = scmp.ne.s32.totalorder %s63, %s64
      %p75 = scmp.eq.s32.totalorder %s17, 0
      %p76 = por %p74, %p75
      %p77 = scmp.ne.s32.totalorder %s63, %s64
      %p78 = scmp.eq.s32.totalorder %s18, 5
      %p79 = por %p77, %p78
      %p81 = scmp.ne.s32.totalorder %s64, %s80
      %p82 = scmp.eq.s32.totalorder %s18, 0
      %p83 = por %p81, %p82
      %s84 = ssub.s32 %s20, %s27
      %p85 = scmp.eq.s32.totalorder %s84, 0
      %s87 = sadd.s32 %s86, 1
      %s88 = scalar_select %p85, %s86, %s87
      %p91 = pneg %p85
      %p92 = scmp.eq.s32.totalorder %s12, 5
      %p93 = por %p91, %p92
      %p94 = scmp.ne.s32.totalorder %s86, %s89
      %p95 = scmp.eq.s32.totalorder %s12, 0
      %p96 = por %p94, %p95
      %p97 = scmp.ne.s32.totalorder %s86, %s89
      %p98 = scmp.eq.s32.totalorder %s17, 5
      %p99 = por %p97, %p98
      %p100 = scmp.ne.s32.totalorder %s89, %s90
      %p101 = scmp.eq.s32.totalorder %s17, 0
      %p102 = por %p100, %p101
      %p103 = scmp.ne.s32.totalorder %s89, %s90
      %p104 = scmp.eq.s32.totalorder %s18, 5
      %p105 = por %p103, %p104
      %p107 = scmp.ne.s32.totalorder %s90, %s106
      %p108 = scmp.eq.s32.totalorder %s18, 0
      %p109 = por %p107, %p108
      %s110 = ssub.s32 %s20, %s27
      %p111 = scmp.eq.s32.totalorder %s110, 0
      %s113 = sadd.s32 %s112, 1
      %s114 = scalar_select %p111, %s112, %s113
      %p117 = pneg %p111
      %p118 = scmp.eq.s32.totalorder %s12, 5
      %p119 = por %p117, %p118
      %p120 = scmp.ne.s32.totalorder %s112, %s115
      %p121 = scmp.eq.s32.totalorder %s12, 0
      %p122 = por %p120, %p121
      %p123 = scmp.ne.s32.totalorder %s112, %s115
      %p124 = scmp.eq.s32.totalorder %s17, 5
      %p125 = por %p123, %p124
      %p126 = scmp.ne.s32.totalorder %s115, %s116
      %p127 = scmp.eq.s32.totalorder %s17, 0
      %p128 = por %p126, %p127
      %p129 = scmp.ne.s32.totalorder %s115, %s116
      %p130 = scmp.eq.s32.totalorder %s18, 5
      %p131 = por %p129, %p130
      %p133 = scmp.ne.s32.totalorder %s116, %s132
      %p134 = scmp.eq.s32.totalorder %s18, 0
      %p135 = por %p133, %p134
      %s137 = sadd.s32 %s136, 1
      %p140 = scmp.eq.s32.totalorder %s12, 5
      %p141 = scmp.ne.s32.totalorder %s136, %s138
      %p142 = scmp.eq.s32.totalorder %s12, 0
      %p143 = por %p141, %p142
      %p144 = scmp.ne.s32.totalorder %s136, %s138
      %p145 = scmp.eq.s32.totalorder %s17, 5
      %p146 = por %p144, %p145
      %p147 = scmp.ne.s32.totalorder %s138, %s139
      %p148 = scmp.eq.s32.totalorder %s17, 0
      %p149 = por %p147, %p148
      %p150 = scmp.ne.s32.totalorder %s138, %s139
      %p151 = scmp.eq.s32.totalorder %s18, 5
      %p152 = por %p150, %p151
      %p154 = scmp.ne.s32.totalorder %s139, %s153
      %p155 = scmp.eq.s32.totalorder %s18, 0
      %p156 = por %p154, %p155
      %s157 = ssub.s32 %s19, %s31
      %p158 = scmp.eq.s32.totalorder %s157, 0
      %s160 = sadd.s32 %s159, 1
      %s161 = scalar_select %p158, %s159, %s160
      %p164 = pneg %p158
      %p165 = scmp.eq.s32.totalorder %s12, 5
      %p166 = por %p164, %p165
      %p167 = scmp.ne.s32.totalorder %s159, %s162
      %p168 = scmp.eq.s32.totalorder %s12, 0
      %p169 = por %p167, %p168
      %p170 = scmp.ne.s32.totalorder %s159, %s162
      %p171 = scmp.eq.s32.totalorder %s17, 5
      %p172 = por %p170, %p171
      %p173 = scmp.ne.s32.totalorder %s162, %s163
      %p174 = scmp.eq.s32.totalorder %s17, 0
      %p175 = por %p173, %p174
      %p176 = scmp.ne.s32.totalorder %s162, %s163
      %p177 = scmp.eq.s32.totalorder %s18, 5
      %p178 = por %p176, %p177
      %p180 = scmp.ne.s32.totalorder %s163, %s179
      %p181 = scmp.eq.s32.totalorder %s18, 0
      %p182 = por %p180, %p181
      %p183 = scmp.le.s32.totalorder 1, %s12
      %p184 = scmp.lt.s32.totalorder %s12, 7
      %p185 = pnand %p183, %p184
      %p186 = pneg %p185
      // Predicated region
      $region9: #{antigen_convert_forward.1} parent=5 // pred_check
        _
      $region10: #{antigen_convert_forward.1} parent=5 // pred_check_branch
        %188 = sbr.rel (%p185) target = $region12
      $region11: #{antigen_convert_forward.1} parent=5 // pred_region
        %s189 = ssub.s32 %s12, 1
        // Predicated region
        $region13: #{antigen_convert_forward.1} parent=11 // pred_check
          %p190 = pneg %p50
        $region14: #{antigen_convert_forward.1} parent=11 // pred_check_branch
          %192 = sbr.rel (%p190) target = $region16
        $region15: #{antigen_convert_forward.1} parent=11 // pred_region
          %s193 = smul.u32 2, %s21
          %p194 = scmp.lt.s32.totalorder %s193, 1
          %s195 = scalar_select %p194, %s193, 1
          %s196 = smul.addr %s195, 10
          %s197 = smul.addr %s196, 4
          %s198 = scalar_lea.vmem %s0, %s197
          %s199 = smul.u32 2, %s21
        $region16: #{antigen_convert_forward.1} parent=11 // pred_fallthru
          _
        // Predicated region
        $region17: #{antigen_convert_forward.1} parent=11 // pred_check
          %p200 = pneg %p149
        $region18: #{antigen_convert_forward.1} parent=11 // pred_check_branch
          %202 = sbr.rel (%p200) target = $region20
        $region19: #{antigen_convert_forward.1} parent=11 // pred_region
          _
        $region20: #{antigen_convert_forward.1} parent=11 // pred_fallthru
          _
      $region12: #{antigen_convert_forward.1} parent=5 // pred_fallthru
        _
      %p203 = scmp.lt.s32.totalorder %s12, 6
      // Predicated region
      $region21: #{antigen_convert_forward.1} parent=5 // pred_check
        %p204 = pneg %p203
      $region22: #{antigen_convert_forward.1} parent=5 // pred_check_branch
        %206 = sbr.rel (%p204) target = $region24
      $region23: #{antigen_convert_forward.1} parent=5 // pred_region
        // Predicated region
        $region25: #{antigen_convert_forward.1} parent=23 // pred_check
          %p207 = pneg %p70
        $region26: #{antigen_convert_forward.1} parent=23 // pred_check_branch
          %209 = sbr.rel (%p207) target = $region28
        $region27: #{antigen_convert_forward.1} parent=23 // pred_region
          %s210 = sand.u32 %s60, 1
          %s211 = sand.u32 %s60, 1
          %s212 = smul.addr %s211, 1920
          %s213 = scalar_lea.vmem [#allocation2], %s212
          %s214 = smul.u32 3, %s20
          %s215 = smul.addr %s214, 4
          %s216 = scalar_lea.vmem %s1, %s215
          // Predicated region
          $region29: #{antigen_convert_forward.1} parent=27 // pred_check
            _
          $region30: #{antigen_convert_forward.1} parent=27 // pred_check_branch
            %218 = sbr.rel (0) target = $region32
          $region31: #{antigen_convert_forward.1} parent=27 // pred_region
            // Predicated region
            $region33: #{antigen_convert_forward.1} parent=31 // pred_check
              _
            $region34: #{antigen_convert_forward.1} parent=31 // pred_check_branch
              %220 = sbr.rel (0) target = $region36
            $region35: #{antigen_convert_forward.1} parent=31 // pred_region
              %s221 = scalar_lea.vmem %s216, 8
              %s222 = scalar_lea.vmem %s213, 8 [#allocation2]
              loop: start=0, step=1, limit=1
              $region37: #{antigen_convert_forward.1} parent=35 // loop_pre_header
                _
              $region38: #{antigen_convert_forward.1} parent=35 // loop_header
                %s224 = sphi 0, %s228
                %p225 = scmp.ge.s32.totalorder %s224, 1
                %s229 = sphi %s216, %s216
                %s230 = sphi %s213, %s213
              $region39: #{antigen_convert_forward.1} parent=35 // loop_header_branch
                %227 = sbr.rel (%p225) target = $region43
              $region40: #{antigen_convert_forward.1} parent=35 // loop_body
                %v231 = vld [vmem:[%s229] sm:$0xff]
                %232 = vst [vmem:[%s230] sm:$0xff] %v231
                %v233 = vld [vmem:[%s229 + $0x48] sm:$0xff]
                %234 = vst [vmem:[%s230 + $0xc] sm:$0xff] %v233
                %v235 = vld [vmem:[%s229 + $0x90] sm:$0xff]
                %236 = vst [vmem:[%s230 + $0x18] sm:$0xff] %v235
                %v237 = vld [vmem:[%s229 + $0xd8] sm:$0xff]
                %238 = vst [vmem:[%s230 + $0x24] sm:$0xff] %v237
                %v239 = vld [vmem:[%s229 + $0x120] sm:$0xff]
                %240 = vst [vmem:[%s230 + $0x30] sm:$0xff] %v239
                %v241 = vld [vmem:[%s229 + $0x168] sm:$0xff]
                %242 = vst [vmem:[%s230 + $0x3c] sm:$0xff] %v241
                %v243 = vld [vmem:[%s229 + $0x1b0] sm:$0xff]
                %244 = vst [vmem:[%s230 + $0x48] sm:$0xff] %v243
                %v245 = vld [vmem:[%s229 + $0x1f8] sm:$0xff]
                %246 = vst [vmem:[%s230 + $0x54] sm:$0xff] %v245
                %v247 = vld [vmem:[%s229 + $0x240] sm:$0xff]
                %248 = vst [vmem:[%s230 + $0x60] sm:$0xff] %v247
                %v249 = vld [vmem:[%s229 + $0x288] sm:$0xff]
                %250 = vst [vmem:[%s230 + $0x6c] sm:$0xff] %v249
                %v251 = vld [vmem:[%s229 + $0x2d0] sm:$0xff]
                %252 = vst [vmem:[%s230 + $0x78] sm:$0xff] %v251
                %v253 = vld [vmem:[%s229 + $0x318] sm:$0xff]
                %254 = vst [vmem:[%s230 + $0x84] sm:$0xff] %v253
                %v255 = vld [vmem:[%s229 + $0x360] sm:$0xff]
                %256 = vst [vmem:[%s230 + $0x90] sm:$0xff] %v255
                %v257 = vld [vmem:[%s229 + $0x3a8] sm:$0xff]
                %258 = vst [vmem:[%s230 + $0x9c] sm:$0xff] %v257
                %v259 = vld [vmem:[%s229 + $0x3f0] sm:$0xff]
                %260 = vst [vmem:[%s230 + $0xa8] sm:$0xff] %v259
                %v261 = vld [vmem:[%s229 + $0x438] sm:$0xff]
                %262 = vst [vmem:[%s230 + $0xb4] sm:$0xff] %v261
                %v263 = vld [vmem:[%s229 + $0x480] sm:$0xff]
                %264 = vst [vmem:[%s230 + $0xc0] sm:$0xff] %v263
                %v265 = vld [vmem:[%s229 + $0x4c8] sm:$0xff]
                %266 = vst [vmem:[%s230 + $0xcc] sm:$0xff] %v265
                %v267 = vld [vmem:[%s229 + $0x510] sm:$0xff]
                %268 = vst [vmem:[%s230 + $0xd8] sm:$0xff] %v267
                %v269 = vld [vmem:[%s229 + $0x558] sm:$0xff]
                %270 = vst [vmem:[%s230 + $0xe4] sm:$0xff] %v269
                %v271 = vld [vmem:[%s229 + $0x5a0] sm:$0xff]
                %272 = vst [vmem:[%s230 + $0xf0] sm:$0xff] %v271
                %v273 = vld [vmem:[%s229 + $0x5e8] sm:$0xff]
                %274 = vst [vmem:[%s230 + $0xfc] sm:$0xff] %v273
                %v275 = vld [vmem:[%s229 + $0x630] sm:$0xff]
                %276 = vst [vmem:[%s230 + $0x108] sm:$0xff] %v275
                %v277 = vld [vmem:[%s229 + $0x678] sm:$0xff]
                %278 = vst [vmem:[%s230 + $0x114] sm:$0xff] %v277
                %v279 = vld [vmem:[%s229 + $0x6c0] sm:$0xff]
                %280 = vst [vmem:[%s230 + $0x120] sm:$0xff] %v279
                %v281 = vld [vmem:[%s229 + $0x708] sm:$0xff]
                %282 = vst [vmem:[%s230 + $0x12c] sm:$0xff] %v281
                %v283 = vld [vmem:[%s229 + $0x750] sm:$0xff]
                %284 = vst [vmem:[%s230 + $0x138] sm:$0xff] %v283
                %v285 = vld [vmem:[%s229 + $0x798] sm:$0xff]
                %286 = vst [vmem:[%s230 + $0x144] sm:$0xff] %v285
                %v287 = vld [vmem:[%s229 + $0x7e0] sm:$0xff]
                %288 = vst [vmem:[%s230 + $0x150] sm:$0xff] %v287
                %v289 = vld [vmem:[%s229 + $0x828] sm:$0xff]
                %290 = vst [vmem:[%s230 + $0x15c] sm:$0xff] %v289
                %v291 = vld [vmem:[%s229 + $0x870] sm:$0xff]
                %292 = vst [vmem:[%s230 + $0x168] sm:$0xff] %v291
                %v293 = vld [vmem:[%s229 + $0x8b8] sm:$0xff]
                %294 = vst [vmem:[%s230 + $0x174] sm:$0xff] %v293
                %v295 = vld [vmem:[%s229 + $0x900] sm:$0xff]
                %296 = vst [vmem:[%s230 + $0x180] sm:$0xff] %v295
                %v297 = vld [vmem:[%s229 + $0x948] sm:$0xff]
                %298 = vst [vmem:[%s230 + $0x18c] sm:$0xff] %v297
                %v299 = vld [vmem:[%s229 + $0x990] sm:$0xff]
                %300 = vst [vmem:[%s230 + $0x198] sm:$0xff] %v299
                %v301 = vld [vmem:[%s229 + $0x9d8] sm:$0xff]
                %302 = vst [vmem:[%s230 + $0x1a4] sm:$0xff] %v301
                %v303 = vld [vmem:[%s229 + $0xa20] sm:$0xff]
                %304 = vst [vmem:[%s230 + $0x1b0] sm:$0xff] %v303
                %v305 = vld [vmem:[%s229 + $0xa68] sm:$0xff]
                %306 = vst [vmem:[%s230 + $0x1bc] sm:$0xff] %v305
                %v307 = vld [vmem:[%s229 + $0xab0] sm:$0xff]
                %308 = vst [vmem:[%s230 + $0x1c8] sm:$0xff] %v307
                %v309 = vld [vmem:[%s229 + $0xaf8] sm:$0xff]
                %310 = vst [vmem:[%s230 + $0x1d4] sm:$0xff] %v309
                %v311 = vld [vmem:[%s229 + $0xb40] sm:$0xff]
                %312 = vst [vmem:[%s230 + $0x1e0] sm:$0xff] %v311
                %v313 = vld [vmem:[%s229 + $0xb88] sm:$0xff]
                %314 = vst [vmem:[%s230 + $0x1ec] sm:$0xff] %v313
                %v315 = vld [vmem:[%s229 + $0xbd0] sm:$0xff]
                %316 = vst [vmem:[%s230 + $0x1f8] sm:$0xff] %v315
                %v317 = vld [vmem:[%s229 + $0xc18] sm:$0xff]
                %318 = vst [vmem:[%s230 + $0x204] sm:$0xff] %v317
                %v319 = vld [vmem:[%s229 + $0xc60] sm:$0xff]
                %320 = vst [vmem:[%s230 + $0x210] sm:$0xff] %v319
                %v321 = vld [vmem:[%s229 + $0xca8] sm:$0xff]
                %322 = vst [vmem:[%s230 + $0x21c] sm:$0xff] %v321
                %v323 = vld [vmem:[%s229 + $0xcf0] sm:$0xff]
                %324 = vst [vmem:[%s230 + $0x228] sm:$0xff] %v323
                %v325 = vld [vmem:[%s229 + $0xd38] sm:$0xff]
                %326 = vst [vmem:[%s230 + $0x234] sm:$0xff] %v325
                %v327 = vld [vmem:[%s229 + $0xd80] sm:$0xff]
                %328 = vst [vmem:[%s230 + $0x240] sm:$0xff] %v327
                %v329 = vld [vmem:[%s229 + $0xdc8] sm:$0xff]
                %330 = vst [vmem:[%s230 + $0x24c] sm:$0xff] %v329
                %v331 = vld [vmem:[%s229 + $0xe10] sm:$0xff]
                %332 = vst [vmem:[%s230 + $0x258] sm:$0xff] %v331
                %v333 = vld [vmem:[%s229 + $0xe58] sm:$0xff]
                %334 = vst [vmem:[%s230 + $0x264] sm:$0xff] %v333
                %v335 = vld [vmem:[%s229 + $0xea0] sm:$0xff]
                %336 = vst [vmem:[%s230 + $0x270] sm:$0xff] %v335
                %v337 = vld [vmem:[%s229 + $0xee8] sm:$0xff]
                %338 = vst [vmem:[%s230 + $0x27c] sm:$0xff] %v337
                %v339 = vld [vmem:[%s229 + $0xf30] sm:$0xff]
                %340 = vst [vmem:[%s230 + $0x288] sm:$0xff] %v339
                %v341 = vld [vmem:[%s229 + $0xf78] sm:$0xff]
                %342 = vst [vmem:[%s230 + $0x294] sm:$0xff] %v341
                %v343 = vld [vmem:[%s229 + $0xfc0] sm:$0xff]
                %344 = vst [vmem:[%s230 + $0x2a0] sm:$0xff] %v343
                %v345 = vld [vmem:[%s229 + $0x1008] sm:$0xff]
                %346 = vst [vmem:[%s230 + $0x2ac] sm:$0xff] %v345
                %v347 = vld [vmem:[%s229 + $0x1050] sm:$0xff]
                %348 = vst [vmem:[%s230 + $0x2b8] sm:$0xff] %v347
                %v349 = vld [vmem:[%s229 + $0x1098] sm:$0xff]
                %350 = vst [vmem:[%s230 + $0x2c4] sm:$0xff] %v349
                %v351 = vld [vmem:[%s229 + $0x10e0] sm:$0xff]
                %352 = vst [vmem:[%s230 + $0x2d0] sm:$0xff] %v351
                %v353 = vld [vmem:[%s229 + $0x1128] sm:$0xff]
                %354 = vst [vmem:[%s230 + $0x2dc] sm:$0xff] %v353
                %v355 = vld [vmem:[%s229 + $0x1170] sm:$0xff]
                %356 = vst [vmem:[%s230 + $0x2e8] sm:$0xff] %v355
                %v357 = vld [vmem:[%s229 + $0x11b8] sm:$0xff]
                %358 = vst [vmem:[%s230 + $0x2f4] sm:$0xff] %v357
                %v359 = vld [vmem:[%s229 + $0x1200] sm:$0xff]
                %360 = vst [vmem:[%s230 + $0x300] sm:$0xff] %v359
                %v361 = vld [vmem:[%s229 + $0x1248] sm:$0xff]
                %362 = vst [vmem:[%s230 + $0x30c] sm:$0xff] %v361
                %v363 = vld [vmem:[%s229 + $0x1290] sm:$0xff]
                %364 = vst [vmem:[%s230 + $0x318] sm:$0xff] %v363
                %v365 = vld [vmem:[%s229 + $0x12d8] sm:$0xff]
                %366 = vst [vmem:[%s230 + $0x324] sm:$0xff] %v365
                %v367 = vld [vmem:[%s229 + $0x1320] sm:$0xff]
                %368 = vst [vmem:[%s230 + $0x330] sm:$0xff] %v367
                %v369 = vld [vmem:[%s229 + $0x1368] sm:$0xff]
                %370 = vst [vmem:[%s230 + $0x33c] sm:$0xff] %v369
                %v371 = vld [vmem:[%s229 + $0x13b0] sm:$0xff]
                %372 = vst [vmem:[%s230 + $0x348] sm:$0xff] %v371
                %v373 = vld [vmem:[%s229 + $0x13f8] sm:$0xff]
                %374 = vst [vmem:[%s230 + $0x354] sm:$0xff] %v373
                %v375 = vld [vmem:[%s229 + $0x1440] sm:$0xff]
                %376 = vst [vmem:[%s230 + $0x360] sm:$0xff] %v375
                %v377 = vld [vmem:[%s229 + $0x1488] sm:$0xff]
                %378 = vst [vmem:[%s230 + $0x36c] sm:$0xff] %v377
                %v379 = vld [vmem:[%s229 + $0x14d0] sm:$0xff]
                %380 = vst [vmem:[%s230 + $0x378] sm:$0xff] %v379
                %v381 = vld [vmem:[%s229 + $0x1518] sm:$0xff]
                %382 = vst [vmem:[%s230 + $0x384] sm:$0xff] %v381
                %v383 = vld [vmem:[%s229 + $0x1560] sm:$0xff]
                %384 = vst [vmem:[%s230 + $0x390] sm:$0xff] %v383
                %v385 = vld [vmem:[%s229 + $0x15a8] sm:$0xff]
                %386 = vst [vmem:[%s230 + $0x39c] sm:$0xff] %v385
                %v387 = vld [vmem:[%s229 + $0x15f0] sm:$0xff]
                %388 = vst [vmem:[%s230 + $0x3a8] sm:$0xff] %v387
                %v389 = vld [vmem:[%s229 + $0x1638] sm:$0xff]
                %390 = vst [vmem:[%s230 + $0x3b4] sm:$0xff] %v389
                %v391 = vld [vmem:[%s229 + $0x1680] sm:$0xff]
                %392 = vst [vmem:[%s230 + $0x3c0] sm:$0xff] %v391
                %v393 = vld [vmem:[%s229 + $0x16c8] sm:$0xff]
                %394 = vst [vmem:[%s230 + $0x3cc] sm:$0xff] %v393
                %v395 = vld [vmem:[%s229 + $0x1710] sm:$0xff]
                %396 = vst [vmem:[%s230 + $0x3d8] sm:$0xff] %v395
                %v397 = vld [vmem:[%s229 + $0x1758] sm:$0xff]
                %398 = vst [vmem:[%s230 + $0x3e4] sm:$0xff] %v397
                %v399 = vld [vmem:[%s229 + $0x17a0] sm:$0xff]
                %400 = vst [vmem:[%s230 + $0x3f0] sm:$0xff] %v399
                %v401 = vld [vmem:[%s229 + $0x17e8] sm:$0xff]
                %402 = vst [vmem:[%s230 + $0x3fc] sm:$0xff] %v401
                %v403 = vld [vmem:[%s229 + $0x1830] sm:$0xff]
                %404 = vst [vmem:[%s230 + $0x408] sm:$0xff] %v403
                %v405 = vld [vmem:[%s229 + $0x1878] sm:$0xff]
                %406 = vst [vmem:[%s230 + $0x414] sm:$0xff] %v405
                %v407 = vld [vmem:[%s229 + $0x18c0] sm:$0xff]
                %408 = vst [vmem:[%s230 + $0x420] sm:$0xff] %v407
                %v409 = vld [vmem:[%s229 + $0x1908] sm:$0xff]
                %410 = vst [vmem:[%s230 + $0x42c] sm:$0xff] %v409
                %v411 = vld [vmem:[%s229 + $0x1950] sm:$0xff]
                %412 = vst [vmem:[%s230 + $0x438] sm:$0xff] %v411
                %v413 = vld [vmem:[%s229 + $0x1998] sm:$0xff]
                %414 = vst [vmem:[%s230 + $0x444] sm:$0xff] %v413
                %v415 = vld [vmem:[%s229 + $0x19e0] sm:$0xff]
                %416 = vst [vmem:[%s230 + $0x450] sm:$0xff] %v415
                %v417 = vld [vmem:[%s229 + $0x1a28] sm:$0xff]
                %418 = vst [vmem:[%s230 + $0x45c] sm:$0xff] %v417
                %v419 = vld [vmem:[%s229 + $0x1a70] sm:$0xff]
                %420 = vst [vmem:[%s230 + $0x468] sm:$0xff] %v419
                %v421 = vld [vmem:[%s229 + $0x1ab8] sm:$0xff]
                %422 = vst [vmem:[%s230 + $0x474] sm:$0xff] %v421
                %v423 = vld [vmem:[%s229 + $0x1b00] sm:$0xff]
                %424 = vst [vmem:[%s230 + $0x480] sm:$0xff] %v423
                %v425 = vld [vmem:[%s229 + $0x1b48] sm:$0xff]
                %426 = vst [vmem:[%s230 + $0x48c] sm:$0xff] %v425
                %v427 = vld [vmem:[%s229 + $0x1b90] sm:$0xff]
                %428 = vst [vmem:[%s230 + $0x498] sm:$0xff] %v427
                %v429 = vld [vmem:[%s229 + $0x1bd8] sm:$0xff]
                %430 = vst [vmem:[%s230 + $0x4a4] sm:$0xff] %v429
                %v431 = vld [vmem:[%s229 + $0x1c20] sm:$0xff]
                %432 = vst [vmem:[%s230 + $0x4b0] sm:$0xff] %v431
                %v433 = vld [vmem:[%s229 + $0x1c68] sm:$0xff]
                %434 = vst [vmem:[%s230 + $0x4bc] sm:$0xff] %v433
                %v435 = vld [vmem:[%s229 + $0x1cb0] sm:$0xff]
                %436 = vst [vmem:[%s230 + $0x4c8] sm:$0xff] %v435
                %v437 = vld [vmem:[%s229 + $0x1cf8] sm:$0xff]
                %438 = vst [vmem:[%s230 + $0x4d4] sm:$0xff] %v437
                %v439 = vld [vmem:[%s229 + $0x1d40] sm:$0xff]
                %440 = vst [vmem:[%s230 + $0x4e0] sm:$0xff] %v439
                %v441 = vld [vmem:[%s229 + $0x1d88] sm:$0xff]
                %442 = vst [vmem:[%s230 + $0x4ec] sm:$0xff] %v441
                %v443 = vld [vmem:[%s229 + $0x1dd0] sm:$0xff]
                %444 = vst [vmem:[%s230 + $0x4f8] sm:$0xff] %v443
                %v445 = vld [vmem:[%s229 + $0x1e18] sm:$0xff]
                %446 = vst [vmem:[%s230 + $0x504] sm:$0xff] %v445
                %v447 = vld [vmem:[%s229 + $0x1e60] sm:$0xff]
                %448 = vst [vmem:[%s230 + $0x510] sm:$0xff] %v447
                %v449 = vld [vmem:[%s229 + $0x1ea8] sm:$0xff]
                %450 = vst [vmem:[%s230 + $0x51c] sm:$0xff] %v449
                %v451 = vld [vmem:[%s229 + $0x1ef0] sm:$0xff]
                %452 = vst [vmem:[%s230 + $0x528] sm:$0xff] %v451
                %v453 = vld [vmem:[%s229 + $0x1f38] sm:$0xff]
                %454 = vst [vmem:[%s230 + $0x534] sm:$0xff] %v453
                %v455 = vld [vmem:[%s229 + $0x1f80] sm:$0xff]
                %456 = vst [vmem:[%s230 + $0x540] sm:$0xff] %v455
                %v457 = vld [vmem:[%s229 + $0x1fc8] sm:$0xff]
                %458 = vst [vmem:[%s230 + $0x54c] sm:$0xff] %v457
                %v459 = vld [vmem:[%s229 + $0x2010] sm:$0xff]
                %460 = vst [vmem:[%s230 + $0x558] sm:$0xff] %v459
                %v461 = vld [vmem:[%s229 + $0x2058] sm:$0xff]
                %462 = vst [vmem:[%s230 + $0x564] sm:$0xff] %v461
                %v463 = vld [vmem:[%s229 + $0x20a0] sm:$0xff]
                %464 = vst [vmem:[%s230 + $0x570] sm:$0xff] %v463
                %v465 = vld [vmem:[%s229 + $0x20e8] sm:$0xff]
                %466 = vst [vmem:[%s230 + $0x57c] sm:$0xff] %v465
                %v467 = vld [vmem:[%s229 + $0x2130] sm:$0xff]
                %468 = vst [vmem:[%s230 + $0x588] sm:$0xff] %v467
                %v469 = vld [vmem:[%s229 + $0x2178] sm:$0xff]
                %470 = vst [vmem:[%s230 + $0x594] sm:$0xff] %v469
                %v471 = vld [vmem:[%s229 + $0x21c0] sm:$0xff]
                %472 = vst [vmem:[%s230 + $0x5a0] sm:$0xff] %v471
                %v473 = vld [vmem:[%s229 + $0x2208] sm:$0xff]
                %474 = vst [vmem:[%s230 + $0x5ac] sm:$0xff] %v473
                %v475 = vld [vmem:[%s229 + $0x2250] sm:$0xff]
                %476 = vst [vmem:[%s230 + $0x5b8] sm:$0xff] %v475
                %v477 = vld [vmem:[%s229 + $0x2298] sm:$0xff]
                %478 = vst [vmem:[%s230 + $0x5c4] sm:$0xff] %v477
                %v479 = vld [vmem:[%s229 + $0x22e0] sm:$0xff]
                %480 = vst [vmem:[%s230 + $0x5d0] sm:$0xff] %v479
                %v481 = vld [vmem:[%s229 + $0x2328] sm:$0xff]
                %482 = vst [vmem:[%s230 + $0x5dc] sm:$0xff] %v481
                %v483 = vld [vmem:[%s229 + $0x2370] sm:$0xff]
                %484 = vst [vmem:[%s230 + $0x5e8] sm:$0xff] %v483
                %v485 = vld [vmem:[%s229 + $0x23b8] sm:$0xff]
                %486 = vst [vmem:[%s230 + $0x5f4] sm:$0xff] %v485
                %v487 = vld [vmem:[%s229 + $0x2400] sm:$0xff]
                %488 = vst [vmem:[%s230 + $0x600] sm:$0xff] %v487
                %v489 = vld [vmem:[%s229 + $0x2448] sm:$0xff]
                %490 = vst [vmem:[%s230 + $0x60c] sm:$0xff] %v489
                %v491 = vld [vmem:[%s229 + $0x2490] sm:$0xff]
                %492 = vst [vmem:[%s230 + $0x618] sm:$0xff] %v491
                %v493 = vld [vmem:[%s229 + $0x24d8] sm:$0xff]
                %494 = vst [vmem:[%s230 + $0x624] sm:$0xff] %v493
                %v495 = vld [vmem:[%s229 + $0x2520] sm:$0xff]
                %496 = vst [vmem:[%s230 + $0x630] sm:$0xff] %v495
                %v497 = vld [vmem:[%s229 + $0x2568] sm:$0xff]
                %498 = vst [vmem:[%s230 + $0x63c] sm:$0xff] %v497
                %v499 = vld [vmem:[%s229 + $0x25b0] sm:$0xff]
                %500 = vst [vmem:[%s230 + $0x648] sm:$0xff] %v499
                %v501 = vld [vmem:[%s229 + $0x25f8] sm:$0xff]
                %502 = vst [vmem:[%s230 + $0x654] sm:$0xff] %v501
                %v503 = vld [vmem:[%s229 + $0x2640] sm:$0xff]
                %504 = vst [vmem:[%s230 + $0x660] sm:$0xff] %v503
                %v505 = vld [vmem:[%s229 + $0x2688] sm:$0xff]
                %506 = vst [vmem:[%s230 + $0x66c] sm:$0xff] %v505
                %v507 = vld [vmem:[%s229 + $0x26d0] sm:$0xff]
                %508 = vst [vmem:[%s230 + $0x678] sm:$0xff] %v507
                %v509 = vld [vmem:[%s229 + $0x2718] sm:$0xff]
                %510 = vst [vmem:[%s230 + $0x684] sm:$0xff] %v509
                %v511 = vld [vmem:[%s229 + $0x2760] sm:$0xff]
                %512 = vst [vmem:[%s230 + $0x690] sm:$0xff] %v511
                %v513 = vld [vmem:[%s229 + $0x27a8] sm:$0xff]
                %514 = vst [vmem:[%s230 + $0x69c] sm:$0xff] %v513
                %v515 = vld [vmem:[%s229 + $0x27f0] sm:$0xff]
                %516 = vst [vmem:[%s230 + $0x6a8] sm:$0xff] %v515
                %v517 = vld [vmem:[%s229 + $0x2838] sm:$0xff]
                %518 = vst [vmem:[%s230 + $0x6b4] sm:$0xff] %v517
                %v519 = vld [vmem:[%s229 + $0x2880] sm:$0xff]
                %520 = vst [vmem:[%s230 + $0x6c0] sm:$0xff] %v519
                %v521 = vld [vmem:[%s229 + $0x28c8] sm:$0xff]
                %522 = vst [vmem:[%s230 + $0x6cc] sm:$0xff] %v521
                %v523 = vld [vmem:[%s229 + $0x2910] sm:$0xff]
                %524 = vst [vmem:[%s230 + $0x6d8] sm:$0xff] %v523
                %v525 = vld [vmem:[%s229 + $0x2958] sm:$0xff]
                %526 = vst [vmem:[%s230 + $0x6e4] sm:$0xff] %v525
                %v527 = vld [vmem:[%s229 + $0x29a0] sm:$0xff]
                %528 = vst [vmem:[%s230 + $0x6f0] sm:$0xff] %v527
                %v529 = vld [vmem:[%s229 + $0x29e8] sm:$0xff]
                %530 = vst [vmem:[%s230 + $0x6fc] sm:$0xff] %v529
                %v531 = vld [vmem:[%s229 + $0x2a30] sm:$0xff]
                %532 = vst [vmem:[%s230 + $0x708] sm:$0xff] %v531
                %v533 = vld [vmem:[%s229 + $0x2a78] sm:$0xff]
                %534 = vst [vmem:[%s230 + $0x714] sm:$0xff] %v533
                %v535 = vld [vmem:[%s229 + $0x2ac0] sm:$0xff]
                %536 = vst [vmem:[%s230 + $0x720] sm:$0xff] %v535
                %v537 = vld [vmem:[%s229 + $0x2b08] sm:$0xff]
                %538 = vst [vmem:[%s230 + $0x72c] sm:$0xff] %v537
                %v539 = vld [vmem:[%s229 + $0x2b50] sm:$0xff]
                %540 = vst [vmem:[%s230 + $0x738] sm:$0xff] %v539
                %v541 = vld [vmem:[%s229 + $0x2b98] sm:$0xff]
                %542 = vst [vmem:[%s230 + $0x744] sm:$0xff] %v541
                %v543 = vld [vmem:[%s229 + $0x2be0] sm:$0xff]
                %544 = vst [vmem:[%s230 + $0x750] sm:$0xff] %v543
                %v545 = vld [vmem:[%s229 + $0x2c28] sm:$0xff]
                %546 = vst [vmem:[%s230 + $0x75c] sm:$0xff] %v545
                %v547 = vld [vmem:[%s229 + $0x2c70] sm:$0xff]
                %548 = vst [vmem:[%s230 + $0x768] sm:$0xff] %v547
                %v549 = vld [vmem:[%s229 + $0x2cb8] sm:$0xff]
                %550 = vst [vmem:[%s230 + $0x774] sm:$0xff] %v549
              $region41: #{antigen_convert_forward.1} parent=35 // loop_footer
                %s228 = sadd.s32 1, %s224
              $region42: #{antigen_convert_forward.1} parent=35 // loop_footer_branch
                %223 = sbr.rel target = $region38
              $region43: #{antigen_convert_forward.1} parent=35 // loop_exit
                _
              loop: start=0, step=1, limit=1
              $region44: #{antigen_convert_forward.1} parent=35 // loop_pre_header
                _
              $region45: #{antigen_convert_forward.1} parent=35 // loop_header
                %s553 = sphi 0, %s557
                %p554 = scmp.ge.s32.totalorder %s553, 1
                %s558 = sphi %s221, %s221
                %s559 = sphi %s222, %s222
              $region46: #{antigen_convert_forward.1} parent=35 // loop_header_branch
                %556 = sbr.rel (%p554) target = $region50
              $region47: #{antigen_convert_forward.1} parent=35 // loop_body
                %v560 = vld [vmem:[%s558] sm:$0xf]
                %561 = vst [vmem:[%s559] sm:$0xf] %v560
                %v562 = vld [vmem:[%s558 + $0x48] sm:$0xf]
                %563 = vst [vmem:[%s559 + $0xc] sm:$0xf] %v562
                %v564 = vld [vmem:[%s558 + $0x90] sm:$0xf]
                %565 = vst [vmem:[%s559 + $0x18] sm:$0xf] %v564
                %v566 = vld [vmem:[%s558 + $0xd8] sm:$0xf]
                %567 = vst [vmem:[%s559 + $0x24] sm:$0xf] %v566
                %v568 = vld [vmem:[%s558 + $0x120] sm:$0xf]
                %569 = vst [vmem:[%s559 + $0x30] sm:$0xf] %v568
                %v570 = vld [vmem:[%s558 + $0x168] sm:$0xf]
                %571 = vst [vmem:[%s559 + $0x3c] sm:$0xf] %v570
                %v572 = vld [vmem:[%s558 + $0x1b0] sm:$0xf]
                %573 = vst [vmem:[%s559 + $0x48] sm:$0xf] %v572
                %v574 = vld [vmem:[%s558 + $0x1f8] sm:$0xf]
                %575 = vst [vmem:[%s559 + $0x54] sm:$0xf] %v574
                %v576 = vld [vmem:[%s558 + $0x240] sm:$0xf]
                %577 = vst [vmem:[%s559 + $0x60] sm:$0xf] %v576
                %v578 = vld [vmem:[%s558 + $0x288] sm:$0xf]
                %579 = vst [vmem:[%s559 + $0x6c] sm:$0xf] %v578
                %v580 = vld [vmem:[%s558 + $0x2d0] sm:$0xf]
                %581 = vst [vmem:[%s559 + $0x78] sm:$0xf] %v580
                %v582 = vld [vmem:[%s558 + $0x318] sm:$0xf]
                %583 = vst [vmem:[%s559 + $0x84] sm:$0xf] %v582
                %v584 = vld [vmem:[%s558 + $0x360] sm:$0xf]
                %585 = vst [vmem:[%s559 + $0x90] sm:$0xf] %v584
                %v586 = vld [vmem:[%s558 + $0x3a8] sm:$0xf]
                %587 = vst [vmem:[%s559 + $0x9c] sm:$0xf] %v586
                %v588 = vld [vmem:[%s558 + $0x3f0] sm:$0xf]
                %589 = vst [vmem:[%s559 + $0xa8] sm:$0xf] %v588
                %v590 = vld [vmem:[%s558 + $0x438] sm:$0xf]
                %591 = vst [vmem:[%s559 + $0xb4] sm:$0xf] %v590
                %v592 = vld [vmem:[%s558 + $0x480] sm:$0xf]
                %593 = vst [vmem:[%s559 + $0xc0] sm:$0xf] %v592
                %v594 = vld [vmem:[%s558 + $0x4c8] sm:$0xf]
                %595 = vst [vmem:[%s559 + $0xcc] sm:$0xf] %v594
                %v596 = vld [vmem:[%s558 + $0x510] sm:$0xf]
                %597 = vst [vmem:[%s559 + $0xd8] sm:$0xf] %v596
                %v598 = vld [vmem:[%s558 + $0x558] sm:$0xf]
                %599 = vst [vmem:[%s559 + $0xe4] sm:$0xf] %v598
                %v600 = vld [vmem:[%s558 + $0x5a0] sm:$0xf]
                %601 = vst [vmem:[%s559 + $0xf0] sm:$0xf] %v600
                %v602 = vld [vmem:[%s558 + $0x5e8] sm:$0xf]
                %603 = vst [vmem:[%s559 + $0xfc] sm:$0xf] %v602
                %v604 = vld [vmem:[%s558 + $0x630] sm:$0xf]
                %605 = vst [vmem:[%s559 + $0x108] sm:$0xf] %v604
                %v606 = vld [vmem:[%s558 + $0x678] sm:$0xf]
                %607 = vst [vmem:[%s559 + $0x114] sm:$0xf] %v606
                %v608 = vld [vmem:[%s558 + $0x6c0] sm:$0xf]
                %609 = vst [vmem:[%s559 + $0x120] sm:$0xf] %v608
                %v610 = vld [vmem:[%s558 + $0x708] sm:$0xf]
                %611 = vst [vmem:[%s559 + $0x12c] sm:$0xf] %v610
                %v612 = vld [vmem:[%s558 + $0x750] sm:$0xf]
                %613 = vst [vmem:[%s559 + $0x138] sm:$0xf] %v612
                %v614 = vld [vmem:[%s558 + $0x798] sm:$0xf]
                %615 = vst [vmem:[%s559 + $0x144] sm:$0xf] %v614
                %v616 = vld [vmem:[%s558 + $0x7e0] sm:$0xf]
                %617 = vst [vmem:[%s559 + $0x150] sm:$0xf] %v616
                %v618 = vld [vmem:[%s558 + $0x828] sm:$0xf]
                %619 = vst [vmem:[%s559 + $0x15c] sm:$0xf] %v618
                %v620 = vld [vmem:[%s558 + $0x870] sm:$0xf]
                %621 = vst [vmem:[%s559 + $0x168] sm:$0xf] %v620
                %v622 = vld [vmem:[%s558 + $0x8b8] sm:$0xf]
                %623 = vst [vmem:[%s559 + $0x174] sm:$0xf] %v622
                %v624 = vld [vmem:[%s558 + $0x900] sm:$0xf]
                %625 = vst [vmem:[%s559 + $0x180] sm:$0xf] %v624
                %v626 = vld [vmem:[%s558 + $0x948] sm:$0xf]
                %627 = vst [vmem:[%s559 + $0x18c] sm:$0xf] %v626
                %v628 = vld [vmem:[%s558 + $0x990] sm:$0xf]
                %629 = vst [vmem:[%s559 + $0x198] sm:$0xf] %v628
                %v630 = vld [vmem:[%s558 + $0x9d8] sm:$0xf]
                %631 = vst [vmem:[%s559 + $0x1a4] sm:$0xf] %v630
                %v632 = vld [vmem:[%s558 + $0xa20] sm:$0xf]
                %633 = vst [vmem:[%s559 + $0x1b0] sm:$0xf] %v632
                %v634 = vld [vmem:[%s558 + $0xa68] sm:$0xf]
                %635 = vst [vmem:[%s559 + $0x1bc] sm:$0xf] %v634
                %v636 = vld [vmem:[%s558 + $0xab0] sm:$0xf]
                %637 = vst [vmem:[%s559 + $0x1c8] sm:$0xf] %v636
                %v638 = vld [vmem:[%s558 + $0xaf8] sm:$0xf]
                %639 = vst [vmem:[%s559 + $0x1d4] sm:$0xf] %v638
                %v640 = vld [vmem:[%s558 + $0xb40] sm:$0xf]
                %641 = vst [vmem:[%s559 + $0x1e0] sm:$0xf] %v640
                %v642 = vld [vmem:[%s558 + $0xb88] sm:$0xf]
                %643 = vst [vmem:[%s559 + $0x1ec] sm:$0xf] %v642
                %v644 = vld [vmem:[%s558 + $0xbd0] sm:$0xf]
                %645 = vst [vmem:[%s559 + $0x1f8] sm:$0xf] %v644
                %v646 = vld [vmem:[%s558 + $0xc18] sm:$0xf]
                %647 = vst [vmem:[%s559 + $0x204] sm:$0xf] %v646
                %v648 = vld [vmem:[%s558 + $0xc60] sm:$0xf]
                %649 = vst [vmem:[%s559 + $0x210] sm:$0xf] %v648
                %v650 = vld [vmem:[%s558 + $0xca8] sm:$0xf]
                %651 = vst [vmem:[%s559 + $0x21c] sm:$0xf] %v650
                %v652 = vld [vmem:[%s558 + $0xcf0] sm:$0xf]
                %653 = vst [vmem:[%s559 + $0x228] sm:$0xf] %v652
                %v654 = vld [vmem:[%s558 + $0xd38] sm:$0xf]
                %655 = vst [vmem:[%s559 + $0x234] sm:$0xf] %v654
                %v656 = vld [vmem:[%s558 + $0xd80] sm:$0xf]
                %657 = vst [vmem:[%s559 + $0x240] sm:$0xf] %v656
                %v658 = vld [vmem:[%s558 + $0xdc8] sm:$0xf]
                %659 = vst [vmem:[%s559 + $0x24c] sm:$0xf] %v658
                %v660 = vld [vmem:[%s558 + $0xe10] sm:$0xf]
                %661 = vst [vmem:[%s559 + $0x258] sm:$0xf] %v660
                %v662 = vld [vmem:[%s558 + $0xe58] sm:$0xf]
                %663 = vst [vmem:[%s559 + $0x264] sm:$0xf] %v662
                %v664 = vld [vmem:[%s558 + $0xea0] sm:$0xf]
                %665 = vst [vmem:[%s559 + $0x270] sm:$0xf] %v664
                %v666 = vld [vmem:[%s558 + $0xee8] sm:$0xf]
                %667 = vst [vmem:[%s559 + $0x27c] sm:$0xf] %v666
                %v668 = vld [vmem:[%s558 + $0xf30] sm:$0xf]
                %669 = vst [vmem:[%s559 + $0x288] sm:$0xf] %v668
                %v670 = vld [vmem:[%s558 + $0xf78] sm:$0xf]
                %671 = vst [vmem:[%s559 + $0x294] sm:$0xf] %v670
                %v672 = vld [vmem:[%s558 + $0xfc0] sm:$0xf]
                %673 = vst [vmem:[%s559 + $0x2a0] sm:$0xf] %v672
                %v674 = vld [vmem:[%s558 + $0x1008] sm:$0xf]
                %675 = vst [vmem:[%s559 + $0x2ac] sm:$0xf] %v674
                %v676 = vld [vmem:[%s558 + $0x1050] sm:$0xf]
                %677 = vst [vmem:[%s559 + $0x2b8] sm:$0xf] %v676
                %v678 = vld [vmem:[%s558 + $0x1098] sm:$0xf]
                %679 = vst [vmem:[%s559 + $0x2c4] sm:$0xf] %v678
                %v680 = vld [vmem:[%s558 + $0x10e0] sm:$0xf]
                %681 = vst [vmem:[%s559 + $0x2d0] sm:$0xf] %v680
                %v682 = vld [vmem:[%s558 + $0x1128] sm:$0xf]
                %683 = vst [vmem:[%s559 + $0x2dc] sm:$0xf] %v682
                %v684 = vld [vmem:[%s558 + $0x1170] sm:$0xf]
                %685 = vst [vmem:[%s559 + $0x2e8] sm:$0xf] %v684
                %v686 = vld [vmem:[%s558 + $0x11b8] sm:$0xf]
                %687 = vst [vmem:[%s559 + $0x2f4] sm:$0xf] %v686
                %v688 = vld [vmem:[%s558 + $0x1200] sm:$0xf]
                %689 = vst [vmem:[%s559 + $0x300] sm:$0xf] %v688
                %v690 = vld [vmem:[%s558 + $0x1248] sm:$0xf]
                %691 = vst [vmem:[%s559 + $0x30c] sm:$0xf] %v690
                %v692 = vld [vmem:[%s558 + $0x1290] sm:$0xf]
                %693 = vst [vmem:[%s559 + $0x318] sm:$0xf] %v692
                %v694 = vld [vmem:[%s558 + $0x12d8] sm:$0xf]
                %695 = vst [vmem:[%s559 + $0x324] sm:$0xf] %v694
                %v696 = vld [vmem:[%s558 + $0x1320] sm:$0xf]
                %697 = vst [vmem:[%s559 + $0x330] sm:$0xf] %v696
                %v698 = vld [vmem:[%s558 + $0x1368] sm:$0xf]
                %699 = vst [vmem:[%s559 + $0x33c] sm:$0xf] %v698
                %v700 = vld [vmem:[%s558 + $0x13b0] sm:$0xf]
                %701 = vst [vmem:[%s559 + $0x348] sm:$0xf] %v700
                %v702 = vld [vmem:[%s558 + $0x13f8] sm:$0xf]
                %703 = vst [vmem:[%s559 + $0x354] sm:$0xf] %v702
                %v704 = vld [vmem:[%s558 + $0x1440] sm:$0xf]
                %705 = vst [vmem:[%s559 + $0x360] sm:$0xf] %v704
                %v706 = vld [vmem:[%s558 + $0x1488] sm:$0xf]
                %707 = vst [vmem:[%s559 + $0x36c] sm:$0xf] %v706
                %v708 = vld [vmem:[%s558 + $0x14d0] sm:$0xf]
                %709 = vst [vmem:[%s559 + $0x378] sm:$0xf] %v708
                %v710 = vld [vmem:[%s558 + $0x1518] sm:$0xf]
                %711 = vst [vmem:[%s559 + $0x384] sm:$0xf] %v710
                %v712 = vld [vmem:[%s558 + $0x1560] sm:$0xf]
                %713 = vst [vmem:[%s559 + $0x390] sm:$0xf] %v712
                %v714 = vld [vmem:[%s558 + $0x15a8] sm:$0xf]
                %715 = vst [vmem:[%s559 + $0x39c] sm:$0xf] %v714
                %v716 = vld [vmem:[%s558 + $0x15f0] sm:$0xf]
                %717 = vst [vmem:[%s559 + $0x3a8] sm:$0xf] %v716
                %v718 = vld [vmem:[%s558 + $0x1638] sm:$0xf]
                %719 = vst [vmem:[%s559 + $0x3b4] sm:$0xf] %v718
                %v720 = vld [vmem:[%s558 + $0x1680] sm:$0xf]
                %721 = vst [vmem:[%s559 + $0x3c0] sm:$0xf] %v720
                %v722 = vld [vmem:[%s558 + $0x16c8] sm:$0xf]
                %723 = vst [vmem:[%s559 + $0x3cc] sm:$0xf] %v722
                %v724 = vld [vmem:[%s558 + $0x1710] sm:$0xf]
                %725 = vst [vmem:[%s559 + $0x3d8] sm:$0xf] %v724
                %v726 = vld [vmem:[%s558 + $0x1758] sm:$0xf]
                %727 = vst [vmem:[%s559 + $0x3e4] sm:$0xf] %v726
                %v728 = vld [vmem:[%s558 + $0x17a0] sm:$0xf]
                %729 = vst [vmem:[%s559 + $0x3f0] sm:$0xf] %v728
                %v730 = vld [vmem:[%s558 + $0x17e8] sm:$0xf]
                %731 = vst [vmem:[%s559 + $0x3fc] sm:$0xf] %v730
                %v732 = vld [vmem:[%s558 + $0x1830] sm:$0xf]
                %733 = vst [vmem:[%s559 + $0x408] sm:$0xf] %v732
                %v734 = vld [vmem:[%s558 + $0x1878] sm:$0xf]
                %735 = vst [vmem:[%s559 + $0x414] sm:$0xf] %v734
                %v736 = vld [vmem:[%s558 + $0x18c0] sm:$0xf]
                %737 = vst [vmem:[%s559 + $0x420] sm:$0xf] %v736
                %v738 = vld [vmem:[%s558 + $0x1908] sm:$0xf]
                %739 = vst [vmem:[%s559 + $0x42c] sm:$0xf] %v738
                %v740 = vld [vmem:[%s558 + $0x1950] sm:$0xf]
                %741 = vst [vmem:[%s559 + $0x438] sm:$0xf] %v740
                %v742 = vld [vmem:[%s558 + $0x1998] sm:$0xf]
                %743 = vst [vmem:[%s559 + $0x444] sm:$0xf] %v742
                %v744 = vld [vmem:[%s558 + $0x19e0] sm:$0xf]
                %745 = vst [vmem:[%s559 + $0x450] sm:$0xf] %v744
                %v746 = vld [vmem:[%s558 + $0x1a28] sm:$0xf]
                %747 = vst [vmem:[%s559 + $0x45c] sm:$0xf] %v746
                %v748 = vld [vmem:[%s558 + $0x1a70] sm:$0xf]
                %749 = vst [vmem:[%s559 + $0x468] sm:$0xf] %v748
                %v750 = vld [vmem:[%s558 + $0x1ab8] sm:$0xf]
                %751 = vst [vmem:[%s559 + $0x474] sm:$0xf] %v750
                %v752 = vld [vmem:[%s558 + $0x1b00] sm:$0xf]
                %753 = vst [vmem:[%s559 + $0x480] sm:$0xf] %v752
                %v754 = vld [vmem:[%s558 + $0x1b48] sm:$0xf]
                %755 = vst [vmem:[%s559 + $0x48c] sm:$0xf] %v754
                %v756 = vld [vmem:[%s558 + $0x1b90] sm:$0xf]
                %757 = vst [vmem:[%s559 + $0x498] sm:$0xf] %v756
                %v758 = vld [vmem:[%s558 + $0x1bd8] sm:$0xf]
                %759 = vst [vmem:[%s559 + $0x4a4] sm:$0xf] %v758
                %v760 = vld [vmem:[%s558 + $0x1c20] sm:$0xf]
                %761 = vst [vmem:[%s559 + $0x4b0] sm:$0xf] %v760
                %v762 = vld [vmem:[%s558 + $0x1c68] sm:$0xf]
                %763 = vst [vmem:[%s559 + $0x4bc] sm:$0xf] %v762
                %v764 = vld [vmem:[%s558 + $0x1cb0] sm:$0xf]
                %765 = vst [vmem:[%s559 + $0x4c8] sm:$0xf] %v764
                %v766 = vld [vmem:[%s558 + $0x1cf8] sm:$0xf]
                %767 = vst [vmem:[%s559 + $0x4d4] sm:$0xf] %v766
                %v768 = vld [vmem:[%s558 + $0x1d40] sm:$0xf]
                %769 = vst [vmem:[%s559 + $0x4e0] sm:$0xf] %v768
                %v770 = vld [vmem:[%s558 + $0x1d88] sm:$0xf]
                %771 = vst [vmem:[%s559 + $0x4ec] sm:$0xf] %v770
                %v772 = vld [vmem:[%s558 + $0x1dd0] sm:$0xf]
                %773 = vst [vmem:[%s559 + $0x4f8] sm:$0xf] %v772
                %v774 = vld [vmem:[%s558 + $0x1e18] sm:$0xf]
                %775 = vst [vmem:[%s559 + $0x504] sm:$0xf] %v774
                %v776 = vld [vmem:[%s558 + $0x1e60] sm:$0xf]
                %777 = vst [vmem:[%s559 + $0x510] sm:$0xf] %v776
                %v778 = vld [vmem:[%s558 + $0x1ea8] sm:$0xf]
                %779 = vst [vmem:[%s559 + $0x51c] sm:$0xf] %v778
                %v780 = vld [vmem:[%s558 + $0x1ef0] sm:$0xf]
                %781 = vst [vmem:[%s559 + $0x528] sm:$0xf] %v780
                %v782 = vld [vmem:[%s558 + $0x1f38] sm:$0xf]
                %783 = vst [vmem:[%s559 + $0x534] sm:$0xf] %v782
                %v784 = vld [vmem:[%s558 + $0x1f80] sm:$0xf]
                %785 = vst [vmem:[%s559 + $0x540] sm:$0xf] %v784
                %v786 = vld [vmem:[%s558 + $0x1fc8] sm:$0xf]
                %787 = vst [vmem:[%s559 + $0x54c] sm:$0xf] %v786
                %v788 = vld [vmem:[%s558 + $0x2010] sm:$0xf]
                %789 = vst [vmem:[%s559 + $0x558] sm:$0xf] %v788
                %v790 = vld [vmem:[%s558 + $0x2058] sm:$0xf]
                %791 = vst [vmem:[%s559 + $0x564] sm:$0xf] %v790
                %v792 = vld [vmem:[%s558 + $0x20a0] sm:$0xf]
                %793 = vst [vmem:[%s559 + $0x570] sm:$0xf] %v792
                %v794 = vld [vmem:[%s558 + $0x20e8] sm:$0xf]
                %795 = vst [vmem:[%s559 + $0x57c] sm:$0xf] %v794
                %v796 = vld [vmem:[%s558 + $0x2130] sm:$0xf]
                %797 = vst [vmem:[%s559 + $0x588] sm:$0xf] %v796
                %v798 = vld [vmem:[%s558 + $0x2178] sm:$0xf]
                %799 = vst [vmem:[%s559 + $0x594] sm:$0xf] %v798
                %v800 = vld [vmem:[%s558 + $0x21c0] sm:$0xf]
                %801 = vst [vmem:[%s559 + $0x5a0] sm:$0xf] %v800
                %v802 = vld [vmem:[%s558 + $0x2208] sm:$0xf]
                %803 = vst [vmem:[%s559 + $0x5ac] sm:$0xf] %v802
                %v804 = vld [vmem:[%s558 + $0x2250] sm:$0xf]
                %805 = vst [vmem:[%s559 + $0x5b8] sm:$0xf] %v804
                %v806 = vld [vmem:[%s558 + $0x2298] sm:$0xf]
                %807 = vst [vmem:[%s559 + $0x5c4] sm:$0xf] %v806
                %v808 = vld [vmem:[%s558 + $0x22e0] sm:$0xf]
                %809 = vst [vmem:[%s559 + $0x5d0] sm:$0xf] %v808
                %v810 = vld [vmem:[%s558 + $0x2328] sm:$0xf]
                %811 = vst [vmem:[%s559 + $0x5dc] sm:$0xf] %v810
                %v812 = vld [vmem:[%s558 + $0x2370] sm:$0xf]
                %813 = vst [vmem:[%s559 + $0x5e8] sm:$0xf] %v812
                %v814 = vld [vmem:[%s558 + $0x23b8] sm:$0xf]
                %815 = vst [vmem:[%s559 + $0x5f4] sm:$0xf] %v814
                %v816 = vld [vmem:[%s558 + $0x2400] sm:$0xf]
                %817 = vst [vmem:[%s559 + $0x600] sm:$0xf] %v816
                %v818 = vld [vmem:[%s558 + $0x2448] sm:$0xf]
                %819 = vst [vmem:[%s559 + $0x60c] sm:$0xf] %v818
                %v820 = vld [vmem:[%s558 + $0x2490] sm:$0xf]
                %821 = vst [vmem:[%s559 + $0x618] sm:$0xf] %v820
                %v822 = vld [vmem:[%s558 + $0x24d8] sm:$0xf]
                %823 = vst [vmem:[%s559 + $0x624] sm:$0xf] %v822
                %v824 = vld [vmem:[%s558 + $0x2520] sm:$0xf]
                %825 = vst [vmem:[%s559 + $0x630] sm:$0xf] %v824
                %v826 = vld [vmem:[%s558 + $0x2568] sm:$0xf]
                %827 = vst [vmem:[%s559 + $0x63c] sm:$0xf] %v826
                %v828 = vld [vmem:[%s558 + $0x25b0] sm:$0xf]
                %829 = vst [vmem:[%s559 + $0x648] sm:$0xf] %v828
                %v830 = vld [vmem:[%s558 + $0x25f8] sm:$0xf]
                %831 = vst [vmem:[%s559 + $0x654] sm:$0xf] %v830
                %v832 = vld [vmem:[%s558 + $0x2640] sm:$0xf]
                %833 = vst [vmem:[%s559 + $0x660] sm:$0xf] %v832
                %v834 = vld [vmem:[%s558 + $0x2688] sm:$0xf]
                %835 = vst [vmem:[%s559 + $0x66c] sm:$0xf] %v834
                %v836 = vld [vmem:[%s558 + $0x26d0] sm:$0xf]
                %837 = vst [vmem:[%s559 + $0x678] sm:$0xf] %v836
                %v838 = vld [vmem:[%s558 + $0x2718] sm:$0xf]
                %839 = vst [vmem:[%s559 + $0x684] sm:$0xf] %v838
                %v840 = vld [vmem:[%s558 + $0x2760] sm:$0xf]
                %841 = vst [vmem:[%s559 + $0x690] sm:$0xf] %v840
                %v842 = vld [vmem:[%s558 + $0x27a8] sm:$0xf]
                %843 = vst [vmem:[%s559 + $0x69c] sm:$0xf] %v842
                %v844 = vld [vmem:[%s558 + $0x27f0] sm:$0xf]
                %845 = vst [vmem:[%s559 + $0x6a8] sm:$0xf] %v844
                %v846 = vld [vmem:[%s558 + $0x2838] sm:$0xf]
                %847 = vst [vmem:[%s559 + $0x6b4] sm:$0xf] %v846
                %v848 = vld [vmem:[%s558 + $0x2880] sm:$0xf]
                %849 = vst [vmem:[%s559 + $0x6c0] sm:$0xf] %v848
                %v850 = vld [vmem:[%s558 + $0x28c8] sm:$0xf]
                %851 = vst [vmem:[%s559 + $0x6cc] sm:$0xf] %v850
                %v852 = vld [vmem:[%s558 + $0x2910] sm:$0xf]
                %853 = vst [vmem:[%s559 + $0x6d8] sm:$0xf] %v852
                %v854 = vld [vmem:[%s558 + $0x2958] sm:$0xf]
                %855 = vst [vmem:[%s559 + $0x6e4] sm:$0xf] %v854
                %v856 = vld [vmem:[%s558 + $0x29a0] sm:$0xf]
                %857 = vst [vmem:[%s559 + $0x6f0] sm:$0xf] %v856
                %v858 = vld [vmem:[%s558 + $0x29e8] sm:$0xf]
                %859 = vst [vmem:[%s559 + $0x6fc] sm:$0xf] %v858
                %v860 = vld [vmem:[%s558 + $0x2a30] sm:$0xf]
                %861 = vst [vmem:[%s559 + $0x708] sm:$0xf] %v860
                %v862 = vld [vmem:[%s558 + $0x2a78] sm:$0xf]
                %863 = vst [vmem:[%s559 + $0x714] sm:$0xf] %v862
                %v864 = vld [vmem:[%s558 + $0x2ac0] sm:$0xf]
                %865 = vst [vmem:[%s559 + $0x720] sm:$0xf] %v864
                %v866 = vld [vmem:[%s558 + $0x2b08] sm:$0xf]
                %867 = vst [vmem:[%s559 + $0x72c] sm:$0xf] %v866
                %v868 = vld [vmem:[%s558 + $0x2b50] sm:$0xf]
                %869 = vst [vmem:[%s559 + $0x738] sm:$0xf] %v868
                %v870 = vld [vmem:[%s558 + $0x2b98] sm:$0xf]
                %871 = vst [vmem:[%s559 + $0x744] sm:$0xf] %v870
                %v872 = vld [vmem:[%s558 + $0x2be0] sm:$0xf]
                %873 = vst [vmem:[%s559 + $0x750] sm:$0xf] %v872
                %v874 = vld [vmem:[%s558 + $0x2c28] sm:$0xf]
                %875 = vst [vmem:[%s559 + $0x75c] sm:$0xf] %v874
                %v876 = vld [vmem:[%s558 + $0x2c70] sm:$0xf]
                %877 = vst [vmem:[%s559 + $0x768] sm:$0xf] %v876
                %v878 = vld [vmem:[%s558 + $0x2cb8] sm:$0xf]
                %879 = vst [vmem:[%s559 + $0x774] sm:$0xf] %v878
              $region48: #{antigen_convert_forward.1} parent=35 // loop_footer
                %s557 = sadd.s32 1, %s553
              $region49: #{antigen_convert_forward.1} parent=35 // loop_footer_branch
                %552 = sbr.rel target = $region45
              $region50: #{antigen_convert_forward.1} parent=35 // loop_exit
                _
            $region36: #{antigen_convert_forward.1} parent=31 // pred_fallthru
              _
          $region32: #{antigen_convert_forward.1} parent=27 // pred_fallthru
            _
          %880 = vnop
        $region28: #{antigen_convert_forward.1} parent=23 // pred_fallthru
          _
        // Predicated region
        $region51: #{antigen_convert_forward.1} parent=23 // pred_check
          %p881 = pneg %p96
        $region52: #{antigen_convert_forward.1} parent=23 // pred_check_branch
          %883 = sbr.rel (%p881) target = $region54
        $region53: #{antigen_convert_forward.1} parent=23 // pred_region
          %s884 = smul.u32 3, %s20
          %p885 = scmp.lt.s32.totalorder %s884, 17
          %s886 = scalar_select %p885, %s884, 17
          %s887 = scalar_lea.vmem %s2, %s886
          %s888 = smul.u32 3, %s20
        $region54: #{antigen_convert_forward.1} parent=23 // pred_fallthru
          _
        // Predicated region
        $region55: #{antigen_convert_forward.1} parent=23 // pred_check
          %p889 = pneg %p122
        $region56: #{antigen_convert_forward.1} parent=23 // pred_check_branch
          %891 = sbr.rel (%p889) target = $region58
        $region57: #{antigen_convert_forward.1} parent=23 // pred_region
          %s892 = smul.u32 48, %s20
          %p893 = scmp.lt.s32.totalorder %s892, 287
          %s894 = scalar_select %p893, %s892, 287
          %s895 = smul.addr %s894, 6
          %s896 = smul.addr %s895, 4
          %s897 = scalar_lea.vmem %s3, %s896
          %s898 = smul.u32 48, %s20
        $region58: #{antigen_convert_forward.1} parent=23 // pred_fallthru
          _
      $region24: #{antigen_convert_forward.1} parent=5 // pred_fallthru
        _
      %p899 = scmp.le.s32.totalorder 1, %s12
      %p900 = scmp.lt.s32.totalorder %s12, 7
      %p901 = pnand %p899, %p900
      %p902 = pneg %p901
      // Predicated region
      $region59: #{antigen_convert_forward.1} parent=5 // pred_check
        _
      $region60: #{antigen_convert_forward.1} parent=5 // pred_check_branch
        %904 = sbr.rel (%p901) target = $region62
      $region61: #{antigen_convert_forward.1} parent=5 // pred_region
        %s905 = ssub.s32 %s12, 1
        %s906 = sand.u32 %s63, 1
        %s907 = sand.u32 %s63, 1
        %s908 = smul.addr %s907, 1920
        %s909 = scalar_lea.vmem [#allocation2], %s908
        // Predicated region
        $region63: #{antigen_convert_forward.1} parent=61 // pred_check
          %p910 = pneg %p76
        $region64: #{antigen_convert_forward.1} parent=61 // pred_check_branch
          %912 = sbr.rel (%p910) target = $region66
        $region65: #{antigen_convert_forward.1} parent=61 // pred_region
          _
        $region66: #{antigen_convert_forward.1} parent=61 // pred_fallthru
          _
        %s913 = smul.u32 2, %s21
        %p914 = scmp.lt.s32.totalorder %s913, 1
        %s915 = scalar_select %p914, %s913, 1
        %s916 = smul.addr %s915, 10
        %s917 = smul.addr %s916, 4
        %s918 = scalar_lea.vmem %s0, %s917
        %p919 = pneg %p50
        %p920 = pneg %p47
        %s921 = sand.u32 %s63, 1
        %s922 = sand.u32 %s63, 1
        %s923 = smul.addr %s922, 1920
        %s924 = scalar_lea.vmem [#allocation2], %s923
        %p925 = pneg %p76
        %p926 = pneg %p73
        %s927 = smul.u32 3, %s22
        %p928 = scmp.lt.s32.totalorder %s927, 17
        %s929 = scalar_select %p928, %s927, 17
        %s930 = scalar_lea.vmem %s2, %s929
        %p931 = pneg %p102
        %p932 = pneg %p99
        %s933 = smul.u32 48, %s22
        %p934 = scmp.lt.s32.totalorder %s933, 287
        %s935 = scalar_select %p934, %s933, 287
        %s936 = smul.addr %s935, 6
        %s937 = smul.addr %s936, 4
        %s938 = scalar_lea.vmem %s3, %s937
        %p939 = pneg %p128
        %p940 = pneg %p125
        %p941 = pneg %p149
        %p942 = pneg %p146
        %p943 = pneg %p175
        %p944 = pneg %p172
        %s945 = smul.u32 2, %s21
        %p946 = scmp.lt.s32.totalorder %s945, 1
        %s947 = scalar_select %p946, %s945, 1
        %s948 = smul.addr %s947, 10
        %s949 = smul.addr %s948, 4
        %s950 = scalar_lea.vmem %s0, %s949
        %s951 = smul.u32 2, %s21
        %s952 = smul.u32 3, %s22
        %s953 = smul.u32 3, %s22
        %p954 = scmp.lt.s32.totalorder %s953, 17
        %s955 = scalar_select %p954, %s953, 17
        %s956 = scalar_lea.vmem %s2, %s955
        %s957 = smul.u32 3, %s22
        %s958 = smul.u32 48, %s22
        %p959 = scmp.lt.s32.totalorder %s958, 287
        %s960 = scalar_select %p959, %s958, 287
        %s961 = smul.addr %s960, 6
        %s962 = smul.addr %s961, 4
        %s963 = scalar_lea.vmem %s3, %s962
        %s964 = smul.u32 48, %s22
        %s965 = smul.u32 2, %s21
        %p967 = scmp.eq.s32.totalorder %s22, 0
        // Predicated region
        $region67: #{antigen_convert_forward.1} parent=61 // pred_check
          %p968 = pneg %p967
        $region68: #{antigen_convert_forward.1} parent=61 // pred_check_branch
          %970 = sbr.rel (%p968) target = $region70
        $region69: #{antigen_convert_forward.1} parent=61 // pred_region
          %971 = vst [vmem:[#allocation3] sm:$0xff] 0.0
          %972 = vst [vmem:[#allocation3 + $0x8] sm:$0xff] 0.0
          %973 = vst [vmem:[#allocation3 + $0x10] sm:$0xff] 0.0
          %974 = vst [vmem:[#allocation3 + $0x18] sm:$0xff] 0.0
          %975 = vst [vmem:[#allocation3 + $0x20] sm:$0xff] 0.0
          %976 = vst [vmem:[#allocation3 + $0x28] sm:$0xff] 0.0
          %977 = vst [vmem:[#allocation3 + $0x30] sm:$0xff] 0.0
          %978 = vst [vmem:[#allocation3 + $0x38] sm:$0xff] 0.0
          %979 = vst [vmem:[#allocation3 + $0x40] sm:$0xff] 0.0
          %980 = vst [vmem:[#allocation3 + $0x48] sm:$0xff] 0.0
          %981 = vst [vmem:[#allocation3 + $0x50] sm:$0xff] 0.0
          %982 = vst [vmem:[#allocation3 + $0x58] sm:$0xff] 0.0
        $region70: #{antigen_convert_forward.1} parent=61 // pred_fallthru
          _
        %v983 = vld [vmem:[%s950] sm:$0xff]
        %v984 = vld [vmem:[%s950 + $0x8] sm:$0xff]
        %v985 = vld [vmem:[%s950 + $0x10] sm:$0xff]
        %v986 = vld [vmem:[%s950 + $0x18] sm:$0xff]
        %v987 = vld [vmem:[%s950 + $0x20] sm:$0xff]
        %v988 = vld [vmem:[%s950 + $0x28] sm:$0xff]
        %v989 = vld [vmem:[%s950 + $0x30] sm:$0xff]
        %v990 = vld [vmem:[%s950 + $0x38] sm:$0xff]
        %v991 = vld [vmem:[%s950 + $0x40] sm:$0xff]
        %v992 = vld [vmem:[%s950 + $0x48] sm:$0xff]
        %v993 = vld [vmem:[%s909] sm:$0xff]
        %v994 = vld [vmem:[%s909 + $0x8] sm:$0xf]
        %v995 = vld [vmem:[%s909 + $0xc] sm:$0xff]
        %v996 = vld [vmem:[%s909 + $0x14] sm:$0xf]
        %v997 = vld [vmem:[%s909 + $0x18] sm:$0xff]
        %v998 = vld [vmem:[%s909 + $0x20] sm:$0xf]
        %v999 = vld [vmem:[%s909 + $0x24] sm:$0xff]
        %v1000 = vld [vmem:[%s909 + $0x2c] sm:$0xf]
        %v1001 = vld [vmem:[%s909 + $0x30] sm:$0xff]
        %v1002 = vld [vmem:[%s909 + $0x38] sm:$0xf]
        %v1003 = vld [vmem:[%s909 + $0x3c] sm:$0xff]
        %v1004 = vld [vmem:[%s909 + $0x44] sm:$0xf]
        %v1005 = vld [vmem:[%s909 + $0x48] sm:$0xff]
        %v1006 = vld [vmem:[%s909 + $0x50] sm:$0xf]
        %v1007 = vld [vmem:[%s909 + $0x54] sm:$0xff]
        %v1008 = vld [vmem:[%s909 + $0x5c] sm:$0xf]
        %v1009 = vld [vmem:[%s909 + $0x60] sm:$0xff]
        %v1010 = vld [vmem:[%s909 + $0x68] sm:$0xf]
        %v1011 = vld [vmem:[%s909 + $0x6c] sm:$0xff]
        %v1012 = vld [vmem:[%s909 + $0x74] sm:$0xf]
        %v1013 = vld [vmem:[%s909 + $0x78] sm:$0xff]
        %v1014 = vld [vmem:[%s909 + $0x80] sm:$0xf]
        %v1015 = vld [vmem:[%s909 + $0x84] sm:$0xff]
        %v1016 = vld [vmem:[%s909 + $0x8c] sm:$0xf]
        %v1017 = vld [vmem:[%s909 + $0x90] sm:$0xff]
        %v1018 = vld [vmem:[%s909 + $0x98] sm:$0xf]
        %v1019 = vld [vmem:[%s909 + $0x9c] sm:$0xff]
        %v1020 = vld [vmem:[%s909 + $0xa4] sm:$0xf]
        %v1021 = vld [vmem:[%s909 + $0xa8] sm:$0xff]
        %v1022 = vld [vmem:[%s909 + $0xb0] sm:$0xf]
        %v1023 = vld [vmem:[%s909 + $0xb4] sm:$0xff]
        %v1024 = vld [vmem:[%s909 + $0xbc] sm:$0xf]
        %v1025 = vld [vmem:[%s909 + $0xc0] sm:$0xff]
        %v1026 = vld [vmem:[%s909 + $0xc8] sm:$0xf]
        %v1027 = vld [vmem:[%s909 + $0xcc] sm:$0xff]
        %v1028 = vld [vmem:[%s909 + $0xd4] sm:$0xf]
        %v1029 = vld [vmem:[%s909 + $0xd8] sm:$0xff]
        %v1030 = vld [vmem:[%s909 + $0xe0] sm:$0xf]
        %v1031 = vld [vmem:[%s909 + $0xe4] sm:$0xff]
        %v1032 = vld [vmem:[%s909 + $0xec] sm:$0xf]
        %v1033 = vld [vmem:[%s909 + $0xf0] sm:$0xff]
        %v1034 = vld [vmem:[%s909 + $0xf8] sm:$0xf]
        %v1035 = vld [vmem:[%s909 + $0xfc] sm:$0xff]
        %v1036 = vld [vmem:[%s909 + $0x104] sm:$0xf]
        %v1037 = vld [vmem:[%s909 + $0x108] sm:$0xff]
        %v1038 = vld [vmem:[%s909 + $0x110] sm:$0xf]
        %v1039 = vld [vmem:[%s909 + $0x114] sm:$0xff]
        %v1040 = vld [vmem:[%s909 + $0x11c] sm:$0xf]
        %v1041 = vld [vmem:[%s909 + $0x120] sm:$0xff]
        %v1042 = vld [vmem:[%s909 + $0x128] sm:$0xf]
        %v1043 = vld [vmem:[%s909 + $0x12c] sm:$0xff]
        %v1044 = vld [vmem:[%s909 + $0x134] sm:$0xf]
        %v1045 = vld [vmem:[%s909 + $0x138] sm:$0xff]
        %v1046 = vld [vmem:[%s909 + $0x140] sm:$0xf]
        %v1047 = vld [vmem:[%s909 + $0x144] sm:$0xff]
        %v1048 = vld [vmem:[%s909 + $0x14c] sm:$0xf]
        %v1049 = vld [vmem:[%s909 + $0x150] sm:$0xff]
        %v1050 = vld [vmem:[%s909 + $0x158] sm:$0xf]
        %v1051 = vld [vmem:[%s909 + $0x15c] sm:$0xff]
        %v1052 = vld [vmem:[%s909 + $0x164] sm:$0xf]
        %v1053 = vld [vmem:[%s909 + $0x168] sm:$0xff]
        %v1054 = vld [vmem:[%s909 + $0x170] sm:$0xf]
        %v1055 = vld [vmem:[%s909 + $0x174] sm:$0xff]
        %v1056 = vld [vmem:[%s909 + $0x17c] sm:$0xf]
        %v1057 = vld [vmem:[%s909 + $0x180] sm:$0xff]
        %v1058 = vld [vmem:[%s909 + $0x188] sm:$0xf]
        %v1059 = vld [vmem:[%s909 + $0x18c] sm:$0xff]
        %v1060 = vld [vmem:[%s909 + $0x194] sm:$0xf]
        %v1061 = vld [vmem:[%s909 + $0x198] sm:$0xff]
        %v1062 = vld [vmem:[%s909 + $0x1a0] sm:$0xf]
        %v1063 = vld [vmem:[%s909 + $0x1a4] sm:$0xff]
        %v1064 = vld [vmem:[%s909 + $0x1ac] sm:$0xf]
        %v1065 = vld [vmem:[%s909 + $0x1b0] sm:$0xff]
        %v1066 = vld [vmem:[%s909 + $0x1b8] sm:$0xf]
        %v1067 = vld [vmem:[%s909 + $0x1bc] sm:$0xff]
        %v1068 = vld [vmem:[%s909 + $0x1c4] sm:$0xf]
        %v1069 = vld [vmem:[%s909 + $0x1c8] sm:$0xff]
        %v1070 = vld [vmem:[%s909 + $0x1d0] sm:$0xf]
        %v1071 = vld [vmem:[%s909 + $0x1d4] sm:$0xff]
        %v1072 = vld [vmem:[%s909 + $0x1dc] sm:$0xf]
        %v1073 = vld [vmem:[%s909 + $0x1e0] sm:$0xff]
        %v1074 = vld [vmem:[%s909 + $0x1e8] sm:$0xf]
        %v1075 = vld [vmem:[%s909 + $0x1ec] sm:$0xff]
        %v1076 = vld [vmem:[%s909 + $0x1f4] sm:$0xf]
        %v1077 = vld [vmem:[%s909 + $0x1f8] sm:$0xff]
        %v1078 = vld [vmem:[%s909 + $0x200] sm:$0xf]
        %v1079 = vld [vmem:[%s909 + $0x204] sm:$0xff]
        %v1080 = vld [vmem:[%s909 + $0x20c] sm:$0xf]
        %v1081 = vld [vmem:[%s909 + $0x210] sm:$0xff]
        %v1082 = vld [vmem:[%s909 + $0x218] sm:$0xf]
        %v1083 = vld [vmem:[%s909 + $0x21c] sm:$0xff]
        %v1084 = vld [vmem:[%s909 + $0x224] sm:$0xf]
        %v1085 = vld [vmem:[%s909 + $0x228] sm:$0xff]
        %v1086 = vld [vmem:[%s909 + $0x230] sm:$0xf]
        %v1087 = vld [vmem:[%s909 + $0x234] sm:$0xff]
        %v1088 = vld [vmem:[%s909 + $0x23c] sm:$0xf]
        %v1089 = vld [vmem:[%s909 + $0x240] sm:$0xff]
        %v1090 = vld [vmem:[%s909 + $0x248] sm:$0xf]
        %v1091 = vld [vmem:[%s909 + $0x24c] sm:$0xff]
        %v1092 = vld [vmem:[%s909 + $0x254] sm:$0xf]
        %v1093 = vld [vmem:[%s909 + $0x258] sm:$0xff]
        %v1094 = vld [vmem:[%s909 + $0x260] sm:$0xf]
        %v1095 = vld [vmem:[%s909 + $0x264] sm:$0xff]
        %v1096 = vld [vmem:[%s909 + $0x26c] sm:$0xf]
        %v1097 = vld [vmem:[%s909 + $0x270] sm:$0xff]
        %v1098 = vld [vmem:[%s909 + $0x278] sm:$0xf]
        %v1099 = vld [vmem:[%s909 + $0x27c] sm:$0xff]
        %v1100 = vld [vmem:[%s909 + $0x284] sm:$0xf]
        %v1101 = vld [vmem:[%s909 + $0x288] sm:$0xff]
        %v1102 = vld [vmem:[%s909 + $0x290] sm:$0xf]
        %v1103 = vld [vmem:[%s909 + $0x294] sm:$0xff]
        %v1104 = vld [vmem:[%s909 + $0x29c] sm:$0xf]
        %v1105 = vld [vmem:[%s909 + $0x2a0] sm:$0xff]
        %v1106 = vld [vmem:[%s909 + $0x2a8] sm:$0xf]
        %v1107 = vld [vmem:[%s909 + $0x2ac] sm:$0xff]
        %v1108 = vld [vmem:[%s909 + $0x2b4] sm:$0xf]
        %v1109 = vld [vmem:[%s909 + $0x2b8] sm:$0xff]
        %v1110 = vld [vmem:[%s909 + $0x2c0] sm:$0xf]
        %v1111 = vld [vmem:[%s909 + $0x2c4] sm:$0xff]
        %v1112 = vld [vmem:[%s909 + $0x2cc] sm:$0xf]
        %v1113 = vld [vmem:[%s909 + $0x2d0] sm:$0xff]
        %v1114 = vld [vmem:[%s909 + $0x2d8] sm:$0xf]
        %v1115 = vld [vmem:[%s909 + $0x2dc] sm:$0xff]
        %v1116 = vld [vmem:[%s909 + $0x2e4] sm:$0xf]
        %v1117 = vld [vmem:[%s909 + $0x2e8] sm:$0xff]
        %v1118 = vld [vmem:[%s909 + $0x2f0] sm:$0xf]
        %v1119 = vld [vmem:[%s909 + $0x2f4] sm:$0xff]
        %v1120 = vld [vmem:[%s909 + $0x2fc] sm:$0xf]
        %v1121 = vld [vmem:[%s909 + $0x300] sm:$0xff]
        %v1122 = vld [vmem:[%s909 + $0x308] sm:$0xf]
        %v1123 = vld [vmem:[%s909 + $0x30c] sm:$0xff]
        %v1124 = vld [vmem:[%s909 + $0x314] sm:$0xf]
        %v1125 = vld [vmem:[%s909 + $0x318] sm:$0xff]
        %v1126 = vld [vmem:[%s909 + $0x320] sm:$0xf]
        %v1127 = vld [vmem:[%s909 + $0x324] sm:$0xff]
        %v1128 = vld [vmem:[%s909 + $0x32c] sm:$0xf]
        %v1129 = vld [vmem:[%s909 + $0x330] sm:$0xff]
        %v1130 = vld [vmem:[%s909 + $0x338] sm:$0xf]
        %v1131 = vld [vmem:[%s909 + $0x33c] sm:$0xff]
        %v1132 = vld [vmem:[%s909 + $0x344] sm:$0xf]
        %v1133 = vld [vmem:[%s909 + $0x348] sm:$0xff]
        %v1134 = vld [vmem:[%s909 + $0x350] sm:$0xf]
        %v1135 = vld [vmem:[%s909 + $0x354] sm:$0xff]
        %v1136 = vld [vmem:[%s909 + $0x35c] sm:$0xf]
        %v1137 = vld [vmem:[%s909 + $0x360] sm:$0xff]
        %v1138 = vld [vmem:[%s909 + $0x368] sm:$0xf]
        %v1139 = vld [vmem:[%s909 + $0x36c] sm:$0xff]
        %v1140 = vld [vmem:[%s909 + $0x374] sm:$0xf]
        %v1141 = vld [vmem:[%s909 + $0x378] sm:$0xff]
        %v1142 = vld [vmem:[%s909 + $0x380] sm:$0xf]
        %v1143 = vld [vmem:[%s909 + $0x384] sm:$0xff]
        %v1144 = vld [vmem:[%s909 + $0x38c] sm:$0xf]
        %v1145 = vld [vmem:[%s909 + $0x390] sm:$0xff]
        %v1146 = vld [vmem:[%s909 + $0x398] sm:$0xf]
        %v1147 = vld [vmem:[%s909 + $0x39c] sm:$0xff]
        %v1148 = vld [vmem:[%s909 + $0x3a4] sm:$0xf]
        %v1149 = vld [vmem:[%s909 + $0x3a8] sm:$0xff]
        %v1150 = vld [vmem:[%s909 + $0x3b0] sm:$0xf]
        %v1151 = vld [vmem:[%s909 + $0x3b4] sm:$0xff]
        %v1152 = vld [vmem:[%s909 + $0x3bc] sm:$0xf]
        %v1153 = vld [vmem:[%s909 + $0x3c0] sm:$0xff]
        %v1154 = vld [vmem:[%s909 + $0x3c8] sm:$0xf]
        %v1155 = vld [vmem:[%s909 + $0x3cc] sm:$0xff]
        %v1156 = vld [vmem:[%s909 + $0x3d4] sm:$0xf]
        %v1157 = vld [vmem:[%s909 + $0x3d8] sm:$0xff]
        %v1158 = vld [vmem:[%s909 + $0x3e0] sm:$0xf]
        %v1159 = vld [vmem:[%s909 + $0x3e4] sm:$0xff]
        %v1160 = vld [vmem:[%s909 + $0x3ec] sm:$0xf]
        %v1161 = vld [vmem:[%s909 + $0x3f0] sm:$0xff]
        %v1162 = vld [vmem:[%s909 + $0x3f8] sm:$0xf]
        %v1163 = vld [vmem:[%s909 + $0x3fc] sm:$0xff]
        %v1164 = vld [vmem:[%s909 + $0x404] sm:$0xf]
        %v1165 = vld [vmem:[%s909 + $0x408] sm:$0xff]
        %v1166 = vld [vmem:[%s909 + $0x410] sm:$0xf]
        %v1167 = vld [vmem:[%s909 + $0x414] sm:$0xff]
        %v1168 = vld [vmem:[%s909 + $0x41c] sm:$0xf]
        %v1169 = vld [vmem:[%s909 + $0x420] sm:$0xff]
        %v1170 = vld [vmem:[%s909 + $0x428] sm:$0xf]
        %v1171 = vld [vmem:[%s909 + $0x42c] sm:$0xff]
        %v1172 = vld [vmem:[%s909 + $0x434] sm:$0xf]
        %v1173 = vld [vmem:[%s909 + $0x438] sm:$0xff]
        %v1174 = vld [vmem:[%s909 + $0x440] sm:$0xf]
        %v1175 = vld [vmem:[%s909 + $0x444] sm:$0xff]
        %v1176 = vld [vmem:[%s909 + $0x44c] sm:$0xf]
        %v1177 = vld [vmem:[%s909 + $0x450] sm:$0xff]
        %v1178 = vld [vmem:[%s909 + $0x458] sm:$0xf]
        %v1179 = vld [vmem:[%s909 + $0x45c] sm:$0xff]
        %v1180 = vld [vmem:[%s909 + $0x464] sm:$0xf]
        %v1181 = vld [vmem:[%s909 + $0x468] sm:$0xff]
        %v1182 = vld [vmem:[%s909 + $0x470] sm:$0xf]
        %v1183 = vld [vmem:[%s909 + $0x474] sm:$0xff]
        %v1184 = vld [vmem:[%s909 + $0x47c] sm:$0xf]
        %v1185 = vld [vmem:[%s909 + $0x480] sm:$0xff]
        %v1186 = vld [vmem:[%s909 + $0x488] sm:$0xf]
        %v1187 = vld [vmem:[%s909 + $0x48c] sm:$0xff]
        %v1188 = vld [vmem:[%s909 + $0x494] sm:$0xf]
        %v1189 = vld [vmem:[%s909 + $0x498] sm:$0xff]
        %v1190 = vld [vmem:[%s909 + $0x4a0] sm:$0xf]
        %v1191 = vld [vmem:[%s909 + $0x4a4] sm:$0xff]
        %v1192 = vld [vmem:[%s909 + $0x4ac] sm:$0xf]
        %v1193 = vld [vmem:[%s909 + $0x4b0] sm:$0xff]
        %v1194 = vld [vmem:[%s909 + $0x4b8] sm:$0xf]
        %v1195 = vld [vmem:[%s909 + $0x4bc] sm:$0xff]
        %v1196 = vld [vmem:[%s909 + $0x4c4] sm:$0xf]
        %v1197 = vld [vmem:[%s909 + $0x4c8] sm:$0xff]
        %v1198 = vld [vmem:[%s909 + $0x4d0] sm:$0xf]
        %v1199 = vld [vmem:[%s909 + $0x4d4] sm:$0xff]
        %v1200 = vld [vmem:[%s909 + $0x4dc] sm:$0xf]
        %v1201 = vld [vmem:[%s909 + $0x4e0] sm:$0xff]
        %v1202 = vld [vmem:[%s909 + $0x4e8] sm:$0xf]
        %v1203 = vld [vmem:[%s909 + $0x4ec] sm:$0xff]
        %v1204 = vld [vmem:[%s909 + $0x4f4] sm:$0xf]
        %v1205 = vld [vmem:[%s909 + $0x4f8] sm:$0xff]
        %v1206 = vld [vmem:[%s909 + $0x500] sm:$0xf]
        %v1207 = vld [vmem:[%s909 + $0x504] sm:$0xff]
        %v1208 = vld [vmem:[%s909 + $0x50c] sm:$0xf]
        %v1209 = vld [vmem:[%s909 + $0x510] sm:$0xff]
        %v1210 = vld [vmem:[%s909 + $0x518] sm:$0xf]
        %v1211 = vld [vmem:[%s909 + $0x51c] sm:$0xff]
        %v1212 = vld [vmem:[%s909 + $0x524] sm:$0xf]
        %v1213 = vld [vmem:[%s909 + $0x528] sm:$0xff]
        %v1214 = vld [vmem:[%s909 + $0x530] sm:$0xf]
        %v1215 = vld [vmem:[%s909 + $0x534] sm:$0xff]
        %v1216 = vld [vmem:[%s909 + $0x53c] sm:$0xf]
        %v1217 = vld [vmem:[%s909 + $0x540] sm:$0xff]
        %v1218 = vld [vmem:[%s909 + $0x548] sm:$0xf]
        %v1219 = vld [vmem:[%s909 + $0x54c] sm:$0xff]
        %v1220 = vld [vmem:[%s909 + $0x554] sm:$0xf]
        %v1221 = vld [vmem:[%s909 + $0x558] sm:$0xff]
        %v1222 = vld [vmem:[%s909 + $0x560] sm:$0xf]
        %v1223 = vld [vmem:[%s909 + $0x564] sm:$0xff]
        %v1224 = vld [vmem:[%s909 + $0x56c] sm:$0xf]
        %v1225 = vld [vmem:[%s909 + $0x570] sm:$0xff]
        %v1226 = vld [vmem:[%s909 + $0x578] sm:$0xf]
        %v1227 = vld [vmem:[%s909 + $0x57c] sm:$0xff]
        %v1228 = vld [vmem:[%s909 + $0x584] sm:$0xf]
        %v1229 = vld [vmem:[%s909 + $0x588] sm:$0xff]
        %v1230 = vld [vmem:[%s909 + $0x590] sm:$0xf]
        %v1231 = vld [vmem:[%s909 + $0x594] sm:$0xff]
        %v1232 = vld [vmem:[%s909 + $0x59c] sm:$0xf]
        %v1233 = vld [vmem:[%s909 + $0x5a0] sm:$0xff]
        %v1234 = vld [vmem:[%s909 + $0x5a8] sm:$0xf]
        %v1235 = vld [vmem:[%s909 + $0x5ac] sm:$0xff]
        %v1236 = vld [vmem:[%s909 + $0x5b4] sm:$0xf]
        %v1237 = vld [vmem:[%s909 + $0x5b8] sm:$0xff]
        %v1238 = vld [vmem:[%s909 + $0x5c0] sm:$0xf]
        %v1239 = vld [vmem:[%s909 + $0x5c4] sm:$0xff]
        %v1240 = vld [vmem:[%s909 + $0x5cc] sm:$0xf]
        %v1241 = vld [vmem:[%s909 + $0x5d0] sm:$0xff]
        %v1242 = vld [vmem:[%s909 + $0x5d8] sm:$0xf]
        %v1243 = vld [vmem:[%s909 + $0x5dc] sm:$0xff]
        %v1244 = vld [vmem:[%s909 + $0x5e4] sm:$0xf]
        %v1245 = vld [vmem:[%s909 + $0x5e8] sm:$0xff]
        %v1246 = vld [vmem:[%s909 + $0x5f0] sm:$0xf]
        %v1247 = vld [vmem:[%s909 + $0x5f4] sm:$0xff]
        %v1248 = vld [vmem:[%s909 + $0x5fc] sm:$0xf]
        %v1249 = vld [vmem:[%s909 + $0x600] sm:$0xff]
        %v1250 = vld [vmem:[%s909 + $0x608] sm:$0xf]
        %v1251 = vld [vmem:[%s909 + $0x60c] sm:$0xff]
        %v1252 = vld [vmem:[%s909 + $0x614] sm:$0xf]
        %v1253 = vld [vmem:[%s909 + $0x618] sm:$0xff]
        %v1254 = vld [vmem:[%s909 + $0x620] sm:$0xf]
        %v1255 = vld [vmem:[%s909 + $0x624] sm:$0xff]
        %v1256 = vld [vmem:[%s909 + $0x62c] sm:$0xf]
        %v1257 = vld [vmem:[%s909 + $0x630] sm:$0xff]
        %v1258 = vld [vmem:[%s909 + $0x638] sm:$0xf]
        %v1259 = vld [vmem:[%s909 + $0x63c] sm:$0xff]
        %v1260 = vld [vmem:[%s909 + $0x644] sm:$0xf]
        %v1261 = vld [vmem:[%s909 + $0x648] sm:$0xff]
        %v1262 = vld [vmem:[%s909 + $0x650] sm:$0xf]
        %v1263 = vld [vmem:[%s909 + $0x654] sm:$0xff]
        %v1264 = vld [vmem:[%s909 + $0x65c] sm:$0xf]
        %v1265 = vld [vmem:[%s909 + $0x660] sm:$0xff]
        %v1266 = vld [vmem:[%s909 + $0x668] sm:$0xf]
        %v1267 = vld [vmem:[%s909 + $0x66c] sm:$0xff]
        %v1268 = vld [vmem:[%s909 + $0x674] sm:$0xf]
        %v1269 = vld [vmem:[%s909 + $0x678] sm:$0xff]
        %v1270 = vld [vmem:[%s909 + $0x680] sm:$0xf]
        %v1271 = vld [vmem:[%s909 + $0x684] sm:$0xff]
        %v1272 = vld [vmem:[%s909 + $0x68c] sm:$0xf]
        %v1273 = vld [vmem:[%s909 + $0x690] sm:$0xff]
        %v1274 = vld [vmem:[%s909 + $0x698] sm:$0xf]
        %v1275 = vld [vmem:[%s909 + $0x69c] sm:$0xff]
        %v1276 = vld [vmem:[%s909 + $0x6a4] sm:$0xf]
        %v1277 = vld [vmem:[%s909 + $0x6a8] sm:$0xff]
        %v1278 = vld [vmem:[%s909 + $0x6b0] sm:$0xf]
        %v1279 = vld [vmem:[%s909 + $0x6b4] sm:$0xff]
        %v1280 = vld [vmem:[%s909 + $0x6bc] sm:$0xf]
        %v1281 = vld [vmem:[%s909 + $0x6c0] sm:$0xff]
        %v1282 = vld [vmem:[%s909 + $0x6c8] sm:$0xf]
        %v1283 = vld [vmem:[%s909 + $0x6cc] sm:$0xff]
        %v1284 = vld [vmem:[%s909 + $0x6d4] sm:$0xf]
        %v1285 = vld [vmem:[%s909 + $0x6d8] sm:$0xff]
        %v1286 = vld [vmem:[%s909 + $0x6e0] sm:$0xf]
        %v1287 = vld [vmem:[%s909 + $0x6e4] sm:$0xff]
        %v1288 = vld [vmem:[%s909 + $0x6ec] sm:$0xf]
        %v1289 = vld [vmem:[%s909 + $0x6f0] sm:$0xff]
        %v1290 = vld [vmem:[%s909 + $0x6f8] sm:$0xf]
        %v1291 = vld [vmem:[%s909 + $0x6fc] sm:$0xff]
        %v1292 = vld [vmem:[%s909 + $0x704] sm:$0xf]
        %v1293 = vld [vmem:[%s909 + $0x708] sm:$0xff]
        %v1294 = vld [vmem:[%s909 + $0x710] sm:$0xf]
        %v1295 = vld [vmem:[%s909 + $0x714] sm:$0xff]
        %v1296 = vld [vmem:[%s909 + $0x71c] sm:$0xf]
        %v1297 = vld [vmem:[%s909 + $0x720] sm:$0xff]
        %v1298 = vld [vmem:[%s909 + $0x728] sm:$0xf]
        %v1299 = vld [vmem:[%s909 + $0x72c] sm:$0xff]
        %v1300 = vld [vmem:[%s909 + $0x734] sm:$0xf]
        %v1301 = vld [vmem:[%s909 + $0x738] sm:$0xff]
        %v1302 = vld [vmem:[%s909 + $0x740] sm:$0xf]
        %v1303 = vld [vmem:[%s909 + $0x744] sm:$0xff]
        %v1304 = vld [vmem:[%s909 + $0x74c] sm:$0xf]
        %v1305 = vld [vmem:[%s909 + $0x750] sm:$0xff]
        %v1306 = vld [vmem:[%s909 + $0x758] sm:$0xf]
        %v1307 = vld [vmem:[%s909 + $0x75c] sm:$0xff]
        %v1308 = vld [vmem:[%s909 + $0x764] sm:$0xf]
        %v1309 = vld [vmem:[%s909 + $0x768] sm:$0xff]
        %v1310 = vld [vmem:[%s909 + $0x770] sm:$0xf]
        %v1311 = vld [vmem:[%s909 + $0x774] sm:$0xff]
        %v1312 = vld [vmem:[%s909 + $0x77c] sm:$0xf]
        %v1313 = vld [vmem:[%s956] sm:$0x7]
        %v1315 = vlaneseq
        %v1316 = vshrl.u32 %v1315, 7
        %v1317 = vsub.s32 0, %v1316
        %v1318 = vrot.slane %v1313, %v1317
        %v1319 = vlaneseq
        %v1320 = vshrl.u32 %v1319, 7
        %v1321 = vsub.s32 1, %v1320
        %v1322 = vrot.slane %v1313, %v1321
        %v1323 = vlaneseq
        %v1324 = vshrl.u32 %v1323, 7
        %v1325 = vsub.s32 2, %v1324
        %v1326 = vrot.slane %v1313, %v1325
        %v1340 = vunpack.c.l.b16 %v983
        %v1341 = vunpack.c.h.b16 %v983
        %v1342 = vunpack.c.l.b16 %v984
        %v1343 = vunpack.c.h.b16 %v984
        %v1344 = vunpack.c.l.b16 %v985
        %v1345 = vunpack.c.h.b16 %v985
        %v1346 = vunpack.c.l.b16 %v986
        %v1347 = vunpack.c.h.b16 %v986
        %v1348 = vunpack.c.l.b16 %v987
        %v1349 = vunpack.c.h.b16 %v987
        %v1350 = vunpack.c.l.b16 %v988
        %v1351 = vunpack.c.h.b16 %v988
        %v1352 = vunpack.c.l.b16 %v989
        %v1353 = vunpack.c.h.b16 %v989
        %v1354 = vunpack.c.l.b16 %v990
        %v1355 = vunpack.c.h.b16 %v990
        %v1356 = vunpack.c.l.b16 %v991
        %v1357 = vunpack.c.h.b16 %v991
        %v1358 = vunpack.c.l.b16 %v992
        %v1359 = vunpack.c.h.b16 %v992
        %v1360 = vpack.c.b16 %v1350, %v1340
        %v1361 = vpack.c.b16 %v1351, %v1341
        %v1362 = vpack.c.b16 %v1352, %v1342
        %v1363 = vpack.c.b16 %v1353, %v1343
        %v1364 = vpack.c.b16 %v1354, %v1344
        %v1365 = vpack.c.b16 %v1355, %v1345
        %v1366 = vpack.c.b16 %v1356, %v1346
        %v1367 = vpack.c.b16 %v1357, %v1347
        %v1368 = vpack.c.b16 %v1358, %v1348
        %v1369 = vpack.c.b16 %v1359, %v1349
        %v1700 = vunpack.c.l.b16 %v993
        %v1701 = vunpack.c.h.b16 %v993
        %v1702 = vunpack.c.l.b16 %v994
        %v1703 = vunpack.c.l.b16 %v995
        %v1704 = vunpack.c.h.b16 %v995
        %v1705 = vunpack.c.l.b16 %v996
        %v1706 = vunpack.c.l.b16 %v997
        %v1707 = vunpack.c.h.b16 %v997
        %v1708 = vunpack.c.l.b16 %v998
        %v1709 = vunpack.c.l.b16 %v999
        %v1710 = vunpack.c.h.b16 %v999
        %v1711 = vunpack.c.l.b16 %v1000
        %v1712 = vunpack.c.l.b16 %v1001
        %v1713 = vunpack.c.h.b16 %v1001
        %v1714 = vunpack.c.l.b16 %v1002
        %v1715 = vunpack.c.l.b16 %v1003
        %v1716 = vunpack.c.h.b16 %v1003
        %v1717 = vunpack.c.l.b16 %v1004
        %v1718 = vunpack.c.l.b16 %v1005
        %v1719 = vunpack.c.h.b16 %v1005
        %v1720 = vunpack.c.l.b16 %v1006
        %v1721 = vunpack.c.l.b16 %v1007
        %v1722 = vunpack.c.h.b16 %v1007
        %v1723 = vunpack.c.l.b16 %v1008
        %v1724 = vunpack.c.l.b16 %v1009
        %v1725 = vunpack.c.h.b16 %v1009
        %v1726 = vunpack.c.l.b16 %v1010
        %v1727 = vunpack.c.l.b16 %v1011
        %v1728 = vunpack.c.h.b16 %v1011
        %v1729 = vunpack.c.l.b16 %v1012
        %v1730 = vunpack.c.l.b16 %v1013
        %v1731 = vunpack.c.h.b16 %v1013
        %v1732 = vunpack.c.l.b16 %v1014
        %v1733 = vunpack.c.l.b16 %v1015
        %v1734 = vunpack.c.h.b16 %v1015
        %v1735 = vunpack.c.l.b16 %v1016
        %v1736 = vunpack.c.l.b16 %v1017
        %v1737 = vunpack.c.h.b16 %v1017
        %v1738 = vunpack.c.l.b16 %v1018
        %v1739 = vunpack.c.l.b16 %v1019
        %v1740 = vunpack.c.h.b16 %v1019
        %v1741 = vunpack.c.l.b16 %v1020
        %v1742 = vunpack.c.l.b16 %v1021
        %v1743 = vunpack.c.h.b16 %v1021
        %v1744 = vunpack.c.l.b16 %v1022
        %v1745 = vunpack.c.l.b16 %v1023
        %v1746 = vunpack.c.h.b16 %v1023
        %v1747 = vunpack.c.l.b16 %v1024
        %v1748 = vunpack.c.l.b16 %v1025
        %v1749 = vunpack.c.h.b16 %v1025
        %v1750 = vunpack.c.l.b16 %v1026
        %v1751 = vunpack.c.l.b16 %v1027
        %v1752 = vunpack.c.h.b16 %v1027
        %v1753 = vunpack.c.l.b16 %v1028
        %v1754 = vunpack.c.l.b16 %v1029
        %v1755 = vunpack.c.h.b16 %v1029
        %v1756 = vunpack.c.l.b16 %v1030
        %v1757 = vunpack.c.l.b16 %v1031
        %v1758 = vunpack.c.h.b16 %v1031
        %v1759 = vunpack.c.l.b16 %v1032
        %v1760 = vunpack.c.l.b16 %v1033
        %v1761 = vunpack.c.h.b16 %v1033
        %v1762 = vunpack.c.l.b16 %v1034
        %v1763 = vunpack.c.l.b16 %v1035
        %v1764 = vunpack.c.h.b16 %v1035
        %v1765 = vunpack.c.l.b16 %v1036
        %v1766 = vunpack.c.l.b16 %v1037
        %v1767 = vunpack.c.h.b16 %v1037
        %v1768 = vunpack.c.l.b16 %v1038
        %v1769 = vunpack.c.l.b16 %v1039
        %v1770 = vunpack.c.h.b16 %v1039
        %v1771 = vunpack.c.l.b16 %v1040
        %v1772 = vunpack.c.l.b16 %v1041
        %v1773 = vunpack.c.h.b16 %v1041
        %v1774 = vunpack.c.l.b16 %v1042
        %v1775 = vunpack.c.l.b16 %v1043
        %v1776 = vunpack.c.h.b16 %v1043
        %v1777 = vunpack.c.l.b16 %v1044
        %v1778 = vunpack.c.l.b16 %v1045
        %v1779 = vunpack.c.h.b16 %v1045
        %v1780 = vunpack.c.l.b16 %v1046
        %v1781 = vunpack.c.l.b16 %v1047
        %v1782 = vunpack.c.h.b16 %v1047
        %v1783 = vunpack.c.l.b16 %v1048
        %v1784 = vunpack.c.l.b16 %v1049
        %v1785 = vunpack.c.h.b16 %v1049
        %v1786 = vunpack.c.l.b16 %v1050
        %v1787 = vunpack.c.l.b16 %v1051
        %v1788 = vunpack.c.h.b16 %v1051
        %v1789 = vunpack.c.l.b16 %v1052
        %v1790 = vunpack.c.l.b16 %v1053
        %v1791 = vunpack.c.h.b16 %v1053
        %v1792 = vunpack.c.l.b16 %v1054
        %v1793 = vunpack.c.l.b16 %v1055
        %v1794 = vunpack.c.h.b16 %v1055
        %v1795 = vunpack.c.l.b16 %v1056
        %v1796 = vunpack.c.l.b16 %v1057
        %v1797 = vunpack.c.h.b16 %v1057
        %v1798 = vunpack.c.l.b16 %v1058
        %v1799 = vunpack.c.l.b16 %v1059
        %v1800 = vunpack.c.h.b16 %v1059
        %v1801 = vunpack.c.l.b16 %v1060
        %v1802 = vunpack.c.l.b16 %v1061
        %v1803 = vunpack.c.h.b16 %v1061
        %v1804 = vunpack.c.l.b16 %v1062
        %v1805 = vunpack.c.l.b16 %v1063
        %v1806 = vunpack.c.h.b16 %v1063
        %v1807 = vunpack.c.l.b16 %v1064
        %v1808 = vunpack.c.l.b16 %v1065
        %v1809 = vunpack.c.h.b16 %v1065
        %v1810 = vunpack.c.l.b16 %v1066
        %v1811 = vunpack.c.l.b16 %v1067
        %v1812 = vunpack.c.h.b16 %v1067
        %v1813 = vunpack.c.l.b16 %v1068
        %v1814 = vunpack.c.l.b16 %v1069
        %v1815 = vunpack.c.h.b16 %v1069
        %v1816 = vunpack.c.l.b16 %v1070
        %v1817 = vunpack.c.l.b16 %v1071
        %v1818 = vunpack.c.h.b16 %v1071
        %v1819 = vunpack.c.l.b16 %v1072
        %v1820 = vunpack.c.l.b16 %v1073
        %v1821 = vunpack.c.h.b16 %v1073
        %v1822 = vunpack.c.l.b16 %v1074
        %v1823 = vunpack.c.l.b16 %v1075
        %v1824 = vunpack.c.h.b16 %v1075
        %v1825 = vunpack.c.l.b16 %v1076
        %v1826 = vunpack.c.l.b16 %v1077
        %v1827 = vunpack.c.h.b16 %v1077
        %v1828 = vunpack.c.l.b16 %v1078
        %v1829 = vunpack.c.l.b16 %v1079
        %v1830 = vunpack.c.h.b16 %v1079
        %v1831 = vunpack.c.l.b16 %v1080
        %v1832 = vunpack.c.l.b16 %v1081
        %v1833 = vunpack.c.h.b16 %v1081
        %v1834 = vunpack.c.l.b16 %v1082
        %v1835 = vunpack.c.l.b16 %v1083
        %v1836 = vunpack.c.h.b16 %v1083
        %v1837 = vunpack.c.l.b16 %v1084
        %v1838 = vunpack.c.l.b16 %v1085
        %v1839 = vunpack.c.h.b16 %v1085
        %v1840 = vunpack.c.l.b16 %v1086
        %v1841 = vunpack.c.l.b16 %v1087
        %v1842 = vunpack.c.h.b16 %v1087
        %v1843 = vunpack.c.l.b16 %v1088
        %v1844 = vunpack.c.l.b16 %v1089
        %v1845 = vunpack.c.h.b16 %v1089
        %v1846 = vunpack.c.l.b16 %v1090
        %v1847 = vunpack.c.l.b16 %v1091
        %v1848 = vunpack.c.h.b16 %v1091
        %v1849 = vunpack.c.l.b16 %v1092
        %v1850 = vunpack.c.l.b16 %v1093
        %v1851 = vunpack.c.h.b16 %v1093
        %v1852 = vunpack.c.l.b16 %v1094
        %v1853 = vunpack.c.l.b16 %v1095
        %v1854 = vunpack.c.h.b16 %v1095
        %v1855 = vunpack.c.l.b16 %v1096
        %v1856 = vunpack.c.l.b16 %v1097
        %v1857 = vunpack.c.h.b16 %v1097
        %v1858 = vunpack.c.l.b16 %v1098
        %v1859 = vunpack.c.l.b16 %v1099
        %v1860 = vunpack.c.h.b16 %v1099
        %v1861 = vunpack.c.l.b16 %v1100
        %v1862 = vunpack.c.l.b16 %v1101
        %v1863 = vunpack.c.h.b16 %v1101
        %v1864 = vunpack.c.l.b16 %v1102
        %v1865 = vunpack.c.l.b16 %v1103
        %v1866 = vunpack.c.h.b16 %v1103
        %v1867 = vunpack.c.l.b16 %v1104
        %v1868 = vunpack.c.l.b16 %v1105
        %v1869 = vunpack.c.h.b16 %v1105
        %v1870 = vunpack.c.l.b16 %v1106
        %v1871 = vunpack.c.l.b16 %v1107
        %v1872 = vunpack.c.h.b16 %v1107
        %v1873 = vunpack.c.l.b16 %v1108
        %v1874 = vunpack.c.l.b16 %v1109
        %v1875 = vunpack.c.h.b16 %v1109
        %v1876 = vunpack.c.l.b16 %v1110
        %v1877 = vunpack.c.l.b16 %v1111
        %v1878 = vunpack.c.h.b16 %v1111
        %v1879 = vunpack.c.l.b16 %v1112
        %v1880 = vunpack.c.l.b16 %v1113
        %v1881 = vunpack.c.h.b16 %v1113
        %v1882 = vunpack.c.l.b16 %v1114
        %v1883 = vunpack.c.l.b16 %v1115
        %v1884 = vunpack.c.h.b16 %v1115
        %v1885 = vunpack.c.l.b16 %v1116
        %v1886 = vunpack.c.l.b16 %v1117
        %v1887 = vunpack.c.h.b16 %v1117
        %v1888 = vunpack.c.l.b16 %v1118
        %v1889 = vunpack.c.l.b16 %v1119
        %v1890 = vunpack.c.h.b16 %v1119
        %v1891 = vunpack.c.l.b16 %v1120
        %v1892 = vunpack.c.l.b16 %v1121
        %v1893 = vunpack.c.h.b16 %v1121
        %v1894 = vunpack.c.l.b16 %v1122
        %v1895 = vunpack.c.l.b16 %v1123
        %v1896 = vunpack.c.h.b16 %v1123
        %v1897 = vunpack.c.l.b16 %v1124
        %v1898 = vunpack.c.l.b16 %v1125
        %v1899 = vunpack.c.h.b16 %v1125
        %v1900 = vunpack.c.l.b16 %v1126
        %v1901 = vunpack.c.l.b16 %v1127
        %v1902 = vunpack.c.h.b16 %v1127
        %v1903 = vunpack.c.l.b16 %v1128
        %v1904 = vunpack.c.l.b16 %v1129
        %v1905 = vunpack.c.h.b16 %v1129
        %v1906 = vunpack.c.l.b16 %v1130
        %v1907 = vunpack.c.l.b16 %v1131
        %v1908 = vunpack.c.h.b16 %v1131
        %v1909 = vunpack.c.l.b16 %v1132
        %v1910 = vunpack.c.l.b16 %v1133
        %v1911 = vunpack.c.h.b16 %v1133
        %v1912 = vunpack.c.l.b16 %v1134
        %v1913 = vunpack.c.l.b16 %v1135
        %v1914 = vunpack.c.h.b16 %v1135
        %v1915 = vunpack.c.l.b16 %v1136
        %v1916 = vunpack.c.l.b16 %v1137
        %v1917 = vunpack.c.h.b16 %v1137
        %v1918 = vunpack.c.l.b16 %v1138
        %v1919 = vunpack.c.l.b16 %v1139
        %v1920 = vunpack.c.h.b16 %v1139
        %v1921 = vunpack.c.l.b16 %v1140
        %v1922 = vunpack.c.l.b16 %v1141
        %v1923 = vunpack.c.h.b16 %v1141
        %v1924 = vunpack.c.l.b16 %v1142
        %v1925 = vunpack.c.l.b16 %v1143
        %v1926 = vunpack.c.h.b16 %v1143
        %v1927 = vunpack.c.l.b16 %v1144
        %v1928 = vunpack.c.l.b16 %v1145
        %v1929 = vunpack.c.h.b16 %v1145
        %v1930 = vunpack.c.l.b16 %v1146
        %v1931 = vunpack.c.l.b16 %v1147
        %v1932 = vunpack.c.h.b16 %v1147
        %v1933 = vunpack.c.l.b16 %v1148
        %v1934 = vunpack.c.l.b16 %v1149
        %v1935 = vunpack.c.h.b16 %v1149
        %v1936 = vunpack.c.l.b16 %v1150
        %v1937 = vunpack.c.l.b16 %v1151
        %v1938 = vunpack.c.h.b16 %v1151
        %v1939 = vunpack.c.l.b16 %v1152
        %v1940 = vunpack.c.l.b16 %v1153
        %v1941 = vunpack.c.h.b16 %v1153
        %v1942 = vunpack.c.l.b16 %v1154
        %v1943 = vunpack.c.l.b16 %v1155
        %v1944 = vunpack.c.h.b16 %v1155
        %v1945 = vunpack.c.l.b16 %v1156
        %v1946 = vunpack.c.l.b16 %v1157
        %v1947 = vunpack.c.h.b16 %v1157
        %v1948 = vunpack.c.l.b16 %v1158
        %v1949 = vunpack.c.l.b16 %v1159
        %v1950 = vunpack.c.h.b16 %v1159
        %v1951 = vunpack.c.l.b16 %v1160
        %v1952 = vunpack.c.l.b16 %v1161
        %v1953 = vunpack.c.h.b16 %v1161
        %v1954 = vunpack.c.l.b16 %v1162
        %v1955 = vunpack.c.l.b16 %v1163
        %v1956 = vunpack.c.h.b16 %v1163
        %v1957 = vunpack.c.l.b16 %v1164
        %v1958 = vunpack.c.l.b16 %v1165
        %v1959 = vunpack.c.h.b16 %v1165
        %v1960 = vunpack.c.l.b16 %v1166
        %v1961 = vunpack.c.l.b16 %v1167
        %v1962 = vunpack.c.h.b16 %v1167
        %v1963 = vunpack.c.l.b16 %v1168
        %v1964 = vunpack.c.l.b16 %v1169
        %v1965 = vunpack.c.h.b16 %v1169
        %v1966 = vunpack.c.l.b16 %v1170
        %v1967 = vunpack.c.l.b16 %v1171
        %v1968 = vunpack.c.h.b16 %v1171
        %v1969 = vunpack.c.l.b16 %v1172
        %v1970 = vunpack.c.l.b16 %v1173
        %v1971 = vunpack.c.h.b16 %v1173
        %v1972 = vunpack.c.l.b16 %v1174
        %v1973 = vunpack.c.l.b16 %v1175
        %v1974 = vunpack.c.h.b16 %v1175
        %v1975 = vunpack.c.l.b16 %v1176
        %v1976 = vunpack.c.l.b16 %v1177
        %v1977 = vunpack.c.h.b16 %v1177
        %v1978 = vunpack.c.l.b16 %v1178
        %v1979 = vunpack.c.l.b16 %v1179
        %v1980 = vunpack.c.h.b16 %v1179
        %v1981 = vunpack.c.l.b16 %v1180
        %v1982 = vunpack.c.l.b16 %v1181
        %v1983 = vunpack.c.h.b16 %v1181
        %v1984 = vunpack.c.l.b16 %v1182
        %v1985 = vunpack.c.l.b16 %v1183
        %v1986 = vunpack.c.h.b16 %v1183
        %v1987 = vunpack.c.l.b16 %v1184
        %v1988 = vunpack.c.l.b16 %v1185
        %v1989 = vunpack.c.h.b16 %v1185
        %v1990 = vunpack.c.l.b16 %v1186
        %v1991 = vunpack.c.l.b16 %v1187
        %v1992 = vunpack.c.h.b16 %v1187
        %v1993 = vunpack.c.l.b16 %v1188
        %v1994 = vunpack.c.l.b16 %v1189
        %v1995 = vunpack.c.h.b16 %v1189
        %v1996 = vunpack.c.l.b16 %v1190
        %v1997 = vunpack.c.l.b16 %v1191
        %v1998 = vunpack.c.h.b16 %v1191
        %v1999 = vunpack.c.l.b16 %v1192
        %v2000 = vunpack.c.l.b16 %v1193
        %v2001 = vunpack.c.h.b16 %v1193
        %v2002 = vunpack.c.l.b16 %v1194
        %v2003 = vunpack.c.l.b16 %v1195
        %v2004 = vunpack.c.h.b16 %v1195
        %v2005 = vunpack.c.l.b16 %v1196
        %v2006 = vunpack.c.l.b16 %v1197
        %v2007 = vunpack.c.h.b16 %v1197
        %v2008 = vunpack.c.l.b16 %v1198
        %v2009 = vunpack.c.l.b16 %v1199
        %v2010 = vunpack.c.h.b16 %v1199
        %v2011 = vunpack.c.l.b16 %v1200
        %v2012 = vunpack.c.l.b16 %v1201
        %v2013 = vunpack.c.h.b16 %v1201
        %v2014 = vunpack.c.l.b16 %v1202
        %v2015 = vunpack.c.l.b16 %v1203
        %v2016 = vunpack.c.h.b16 %v1203
        %v2017 = vunpack.c.l.b16 %v1204
        %v2018 = vunpack.c.l.b16 %v1205
        %v2019 = vunpack.c.h.b16 %v1205
        %v2020 = vunpack.c.l.b16 %v1206
        %v2021 = vunpack.c.l.b16 %v1207
        %v2022 = vunpack.c.h.b16 %v1207
        %v2023 = vunpack.c.l.b16 %v1208
        %v2024 = vunpack.c.l.b16 %v1209
        %v2025 = vunpack.c.h.b16 %v1209
        %v2026 = vunpack.c.l.b16 %v1210
        %v2027 = vunpack.c.l.b16 %v1211
        %v2028 = vunpack.c.h.b16 %v1211
        %v2029 = vunpack.c.l.b16 %v1212
        %v2030 = vunpack.c.l.b16 %v1213
        %v2031 = vunpack.c.h.b16 %v1213
        %v2032 = vunpack.c.l.b16 %v1214
        %v2033 = vunpack.c.l.b16 %v1215
        %v2034 = vunpack.c.h.b16 %v1215
        %v2035 = vunpack.c.l.b16 %v1216
        %v2036 = vunpack.c.l.b16 %v1217
        %v2037 = vunpack.c.h.b16 %v1217
        %v2038 = vunpack.c.l.b16 %v1218
        %v2039 = vunpack.c.l.b16 %v1219
        %v2040 = vunpack.c.h.b16 %v1219
        %v2041 = vunpack.c.l.b16 %v1220
        %v2042 = vunpack.c.l.b16 %v1221
        %v2043 = vunpack.c.h.b16 %v1221
        %v2044 = vunpack.c.l.b16 %v1222
        %v2045 = vunpack.c.l.b16 %v1223
        %v2046 = vunpack.c.h.b16 %v1223
        %v2047 = vunpack.c.l.b16 %v1224
        %v2048 = vunpack.c.l.b16 %v1225
        %v2049 = vunpack.c.h.b16 %v1225
        %v2050 = vunpack.c.l.b16 %v1226
        %v2051 = vunpack.c.l.b16 %v1227
        %v2052 = vunpack.c.h.b16 %v1227
        %v2053 = vunpack.c.l.b16 %v1228
        %v2054 = vunpack.c.l.b16 %v1229
        %v2055 = vunpack.c.h.b16 %v1229
        %v2056 = vunpack.c.l.b16 %v1230
        %v2057 = vunpack.c.l.b16 %v1231
        %v2058 = vunpack.c.h.b16 %v1231
        %v2059 = vunpack.c.l.b16 %v1232
        %v2060 = vunpack.c.l.b16 %v1233
        %v2061 = vunpack.c.h.b16 %v1233
        %v2062 = vunpack.c.l.b16 %v1234
        %v2063 = vunpack.c.l.b16 %v1235
        %v2064 = vunpack.c.h.b16 %v1235
        %v2065 = vunpack.c.l.b16 %v1236
        %v2066 = vunpack.c.l.b16 %v1237
        %v2067 = vunpack.c.h.b16 %v1237
        %v2068 = vunpack.c.l.b16 %v1238
        %v2069 = vunpack.c.l.b16 %v1239
        %v2070 = vunpack.c.h.b16 %v1239
        %v2071 = vunpack.c.l.b16 %v1240
        %v2072 = vunpack.c.l.b16 %v1241
        %v2073 = vunpack.c.h.b16 %v1241
        %v2074 = vunpack.c.l.b16 %v1242
        %v2075 = vunpack.c.l.b16 %v1243
        %v2076 = vunpack.c.h.b16 %v1243
        %v2077 = vunpack.c.l.b16 %v1244
        %v2078 = vunpack.c.l.b16 %v1245
        %v2079 = vunpack.c.h.b16 %v1245
        %v2080 = vunpack.c.l.b16 %v1246
        %v2081 = vunpack.c.l.b16 %v1247
        %v2082 = vunpack.c.h.b16 %v1247
        %v2083 = vunpack.c.l.b16 %v1248
        %v2084 = vunpack.c.l.b16 %v1249
        %v2085 = vunpack.c.h.b16 %v1249
        %v2086 = vunpack.c.l.b16 %v1250
        %v2087 = vunpack.c.l.b16 %v1251
        %v2088 = vunpack.c.h.b16 %v1251
        %v2089 = vunpack.c.l.b16 %v1252
        %v2090 = vunpack.c.l.b16 %v1253
        %v2091 = vunpack.c.h.b16 %v1253
        %v2092 = vunpack.c.l.b16 %v1254
        %v2093 = vunpack.c.l.b16 %v1255
        %v2094 = vunpack.c.h.b16 %v1255
        %v2095 = vunpack.c.l.b16 %v1256
        %v2096 = vunpack.c.l.b16 %v1257
        %v2097 = vunpack.c.h.b16 %v1257
        %v2098 = vunpack.c.l.b16 %v1258
        %v2099 = vunpack.c.l.b16 %v1259
        %v2100 = vunpack.c.h.b16 %v1259
        %v2101 = vunpack.c.l.b16 %v1260
        %v2102 = vunpack.c.l.b16 %v1261
        %v2103 = vunpack.c.h.b16 %v1261
        %v2104 = vunpack.c.l.b16 %v1262
        %v2105 = vunpack.c.l.b16 %v1263
        %v2106 = vunpack.c.h.b16 %v1263
        %v2107 = vunpack.c.l.b16 %v1264
        %v2108 = vunpack.c.l.b16 %v1265
        %v2109 = vunpack.c.h.b16 %v1265
        %v2110 = vunpack.c.l.b16 %v1266
        %v2111 = vunpack.c.l.b16 %v1267
        %v2112 = vunpack.c.h.b16 %v1267
        %v2113 = vunpack.c.l.b16 %v1268
        %v2114 = vunpack.c.l.b16 %v1269
        %v2115 = vunpack.c.h.b16 %v1269
        %v2116 = vunpack.c.l.b16 %v1270
        %v2117 = vunpack.c.l.b16 %v1271
        %v2118 = vunpack.c.h.b16 %v1271
        %v2119 = vunpack.c.l.b16 %v1272
        %v2120 = vunpack.c.l.b16 %v1273
        %v2121 = vunpack.c.h.b16 %v1273
        %v2122 = vunpack.c.l.b16 %v1274
        %v2123 = vunpack.c.l.b16 %v1275
        %v2124 = vunpack.c.h.b16 %v1275
        %v2125 = vunpack.c.l.b16 %v1276
        %v2126 = vunpack.c.l.b16 %v1277
        %v2127 = vunpack.c.h.b16 %v1277
        %v2128 = vunpack.c.l.b16 %v1278
        %v2129 = vunpack.c.l.b16 %v1279
        %v2130 = vunpack.c.h.b16 %v1279
        %v2131 = vunpack.c.l.b16 %v1280
        %v2132 = vunpack.c.l.b16 %v1281
        %v2133 = vunpack.c.h.b16 %v1281
        %v2134 = vunpack.c.l.b16 %v1282
        %v2135 = vunpack.c.l.b16 %v1283
        %v2136 = vunpack.c.h.b16 %v1283
        %v2137 = vunpack.c.l.b16 %v1284
        %v2138 = vunpack.c.l.b16 %v1285
        %v2139 = vunpack.c.h.b16 %v1285
        %v2140 = vunpack.c.l.b16 %v1286
        %v2141 = vunpack.c.l.b16 %v1287
        %v2142 = vunpack.c.h.b16 %v1287
        %v2143 = vunpack.c.l.b16 %v1288
        %v2144 = vunpack.c.l.b16 %v1289
        %v2145 = vunpack.c.h.b16 %v1289
        %v2146 = vunpack.c.l.b16 %v1290
        %v2147 = vunpack.c.l.b16 %v1291
        %v2148 = vunpack.c.h.b16 %v1291
        %v2149 = vunpack.c.l.b16 %v1292
        %v2150 = vunpack.c.l.b16 %v1293
        %v2151 = vunpack.c.h.b16 %v1293
        %v2152 = vunpack.c.l.b16 %v1294
        %v2153 = vunpack.c.l.b16 %v1295
        %v2154 = vunpack.c.h.b16 %v1295
        %v2155 = vunpack.c.l.b16 %v1296
        %v2156 = vunpack.c.l.b16 %v1297
        %v2157 = vunpack.c.h.b16 %v1297
        %v2158 = vunpack.c.l.b16 %v1298
        %v2159 = vunpack.c.l.b16 %v1299
        %v2160 = vunpack.c.h.b16 %v1299
        %v2161 = vunpack.c.l.b16 %v1300
        %v2162 = vunpack.c.l.b16 %v1301
        %v2163 = vunpack.c.h.b16 %v1301
        %v2164 = vunpack.c.l.b16 %v1302
        %v2165 = vunpack.c.l.b16 %v1303
        %v2166 = vunpack.c.h.b16 %v1303
        %v2167 = vunpack.c.l.b16 %v1304
        %v2168 = vunpack.c.l.b16 %v1305
        %v2169 = vunpack.c.h.b16 %v1305
        %v2170 = vunpack.c.l.b16 %v1306
        %v2171 = vunpack.c.l.b16 %v1307
        %v2172 = vunpack.c.h.b16 %v1307
        %v2173 = vunpack.c.l.b16 %v1308
        %v2174 = vunpack.c.l.b16 %v1309
        %v2175 = vunpack.c.h.b16 %v1309
        %v2176 = vunpack.c.l.b16 %v1310
        %v2177 = vunpack.c.l.b16 %v1311
        %v2178 = vunpack.c.h.b16 %v1311
        %v2179 = vunpack.c.l.b16 %v1312
        %v2180 = vpack.c.b16 %v1703, %v1700
        %v2181 = vpack.c.b16 %v1704, %v1701
        %v2182 = vpack.c.b16 %v1705, %v1702
        %v2183 = vpack.c.b16 %v1709, %v1706
        %v2184 = vpack.c.b16 %v1710, %v1707
        %v2185 = vpack.c.b16 %v1711, %v1708
        %v2186 = vpack.c.b16 %v1715, %v1712
        %v2187 = vpack.c.b16 %v1716, %v1713
        %v2188 = vpack.c.b16 %v1717, %v1714
        %v2189 = vpack.c.b16 %v1721, %v1718
        %v2190 = vpack.c.b16 %v1722, %v1719
        %v2191 = vpack.c.b16 %v1723, %v1720
        %v2192 = vpack.c.b16 %v1727, %v1724
        %v2193 = vpack.c.b16 %v1728, %v1725
        %v2194 = vpack.c.b16 %v1729, %v1726
        %v2195 = vpack.c.b16 %v1733, %v1730
        %v2196 = vpack.c.b16 %v1734, %v1731
        %v2197 = vpack.c.b16 %v1735, %v1732
        %v2198 = vpack.c.b16 %v1739, %v1736
        %v2199 = vpack.c.b16 %v1740, %v1737
        %v2200 = vpack.c.b16 %v1741, %v1738
        %v2201 = vpack.c.b16 %v1745, %v1742
        %v2202 = vpack.c.b16 %v1746, %v1743
        %v2203 = vpack.c.b16 %v1747, %v1744
        %v2204 = vpack.c.b16 %v1751, %v1748
        %v2205 = vpack.c.b16 %v1752, %v1749
        %v2206 = vpack.c.b16 %v1753, %v1750
        %v2207 = vpack.c.b16 %v1757, %v1754
        %v2208 = vpack.c.b16 %v1758, %v1755
        %v2209 = vpack.c.b16 %v1759, %v1756
        %v2210 = vpack.c.b16 %v1763, %v1760
        %v2211 = vpack.c.b16 %v1764, %v1761
        %v2212 = vpack.c.b16 %v1765, %v1762
        %v2213 = vpack.c.b16 %v1769, %v1766
        %v2214 = vpack.c.b16 %v1770, %v1767
        %v2215 = vpack.c.b16 %v1771, %v1768
        %v2216 = vpack.c.b16 %v1775, %v1772
        %v2217 = vpack.c.b16 %v1776, %v1773
        %v2218 = vpack.c.b16 %v1777, %v1774
        %v2219 = vpack.c.b16 %v1781, %v1778
        %v2220 = vpack.c.b16 %v1782, %v1779
        %v2221 = vpack.c.b16 %v1783, %v1780
        %v2222 = vpack.c.b16 %v1787, %v1784
        %v2223 = vpack.c.b16 %v1788, %v1785
        %v2224 = vpack.c.b16 %v1789, %v1786
        %v2225 = vpack.c.b16 %v1793, %v1790
        %v2226 = vpack.c.b16 %v1794, %v1791
        %v2227 = vpack.c.b16 %v1795, %v1792
        %v2228 = vpack.c.b16 %v1799, %v1796
        %v2229 = vpack.c.b16 %v1800, %v1797
        %v2230 = vpack.c.b16 %v1801, %v1798
        %v2231 = vpack.c.b16 %v1805, %v1802
        %v2232 = vpack.c.b16 %v1806, %v1803
        %v2233 = vpack.c.b16 %v1807, %v1804
        %v2234 = vpack.c.b16 %v1811, %v1808
        %v2235 = vpack.c.b16 %v1812, %v1809
        %v2236 = vpack.c.b16 %v1813, %v1810
        %v2237 = vpack.c.b16 %v1817, %v1814
        %v2238 = vpack.c.b16 %v1818, %v1815
        %v2239 = vpack.c.b16 %v1819, %v1816
        %v2240 = vpack.c.b16 %v1823, %v1820
        %v2241 = vpack.c.b16 %v1824, %v1821
        %v2242 = vpack.c.b16 %v1825, %v1822
        %v2243 = vpack.c.b16 %v1829, %v1826
        %v2244 = vpack.c.b16 %v1830, %v1827
        %v2245 = vpack.c.b16 %v1831, %v1828
        %v2246 = vpack.c.b16 %v1835, %v1832
        %v2247 = vpack.c.b16 %v1836, %v1833
        %v2248 = vpack.c.b16 %v1837, %v1834
        %v2249 = vpack.c.b16 %v1841, %v1838
        %v2250 = vpack.c.b16 %v1842, %v1839
        %v2251 = vpack.c.b16 %v1843, %v1840
        %v2252 = vpack.c.b16 %v1847, %v1844
        %v2253 = vpack.c.b16 %v1848, %v1845
        %v2254 = vpack.c.b16 %v1849, %v1846
        %v2255 = vpack.c.b16 %v1853, %v1850
        %v2256 = vpack.c.b16 %v1854, %v1851
        %v2257 = vpack.c.b16 %v1855, %v1852
        %v2258 = vpack.c.b16 %v1859, %v1856
        %v2259 = vpack.c.b16 %v1860, %v1857
        %v2260 = vpack.c.b16 %v1861, %v1858
        %v2261 = vpack.c.b16 %v1865, %v1862
        %v2262 = vpack.c.b16 %v1866, %v1863
        %v2263 = vpack.c.b16 %v1867, %v1864
        %v2264 = vpack.c.b16 %v1871, %v1868
        %v2265 = vpack.c.b16 %v1872, %v1869
        %v2266 = vpack.c.b16 %v1873, %v1870
        %v2267 = vpack.c.b16 %v1877, %v1874
        %v2268 = vpack.c.b16 %v1878, %v1875
        %v2269 = vpack.c.b16 %v1879, %v1876
        %v2270 = vpack.c.b16 %v1883, %v1880
        %v2271 = vpack.c.b16 %v1884, %v1881
        %v2272 = vpack.c.b16 %v1885, %v1882
        %v2273 = vpack.c.b16 %v1889, %v1886
        %v2274 = vpack.c.b16 %v1890, %v1887
        %v2275 = vpack.c.b16 %v1891, %v1888
        %v2276 = vpack.c.b16 %v1895, %v1892
        %v2277 = vpack.c.b16 %v1896, %v1893
        %v2278 = vpack.c.b16 %v1897, %v1894
        %v2279 = vpack.c.b16 %v1901, %v1898
        %v2280 = vpack.c.b16 %v1902, %v1899
        %v2281 = vpack.c.b16 %v1903, %v1900
        %v2282 = vpack.c.b16 %v1907, %v1904
        %v2283 = vpack.c.b16 %v1908, %v1905
        %v2284 = vpack.c.b16 %v1909, %v1906
        %v2285 = vpack.c.b16 %v1913, %v1910
        %v2286 = vpack.c.b16 %v1914, %v1911
        %v2287 = vpack.c.b16 %v1915, %v1912
        %v2288 = vpack.c.b16 %v1919, %v1916
        %v2289 = vpack.c.b16 %v1920, %v1917
        %v2290 = vpack.c.b16 %v1921, %v1918
        %v2291 = vpack.c.b16 %v1925, %v1922
        %v2292 = vpack.c.b16 %v1926, %v1923
        %v2293 = vpack.c.b16 %v1927, %v1924
        %v2294 = vpack.c.b16 %v1931, %v1928
        %v2295 = vpack.c.b16 %v1932, %v1929
        %v2296 = vpack.c.b16 %v1933, %v1930
        %v2297 = vpack.c.b16 %v1937, %v1934
        %v2298 = vpack.c.b16 %v1938, %v1935
        %v2299 = vpack.c.b16 %v1939, %v1936
        %v2300 = vpack.c.b16 %v1943, %v1940
        %v2301 = vpack.c.b16 %v1944, %v1941
        %v2302 = vpack.c.b16 %v1945, %v1942
        %v2303 = vpack.c.b16 %v1949, %v1946
        %v2304 = vpack.c.b16 %v1950, %v1947
        %v2305 = vpack.c.b16 %v1951, %v1948
        %v2306 = vpack.c.b16 %v1955, %v1952
        %v2307 = vpack.c.b16 %v1956, %v1953
        %v2308 = vpack.c.b16 %v1957, %v1954
        %v2309 = vpack.c.b16 %v1961, %v1958
        %v2310 = vpack.c.b16 %v1962, %v1959
        %v2311 = vpack.c.b16 %v1963, %v1960
        %v2312 = vpack.c.b16 %v1967, %v1964
        %v2313 = vpack.c.b16 %v1968, %v1965
        %v2314 = vpack.c.b16 %v1969, %v1966
        %v2315 = vpack.c.b16 %v1973, %v1970
        %v2316 = vpack.c.b16 %v1974, %v1971
        %v2317 = vpack.c.b16 %v1975, %v1972
        %v2318 = vpack.c.b16 %v1979, %v1976
        %v2319 = vpack.c.b16 %v1980, %v1977
        %v2320 = vpack.c.b16 %v1981, %v1978
        %v2321 = vpack.c.b16 %v1985, %v1982
        %v2322 = vpack.c.b16 %v1986, %v1983
        %v2323 = vpack.c.b16 %v1987, %v1984
        %v2324 = vpack.c.b16 %v1991, %v1988
        %v2325 = vpack.c.b16 %v1992, %v1989
        %v2326 = vpack.c.b16 %v1993, %v1990
        %v2327 = vpack.c.b16 %v1997, %v1994
        %v2328 = vpack.c.b16 %v1998, %v1995
        %v2329 = vpack.c.b16 %v1999, %v1996
        %v2330 = vpack.c.b16 %v2003, %v2000
        %v2331 = vpack.c.b16 %v2004, %v2001
        %v2332 = vpack.c.b16 %v2005, %v2002
        %v2333 = vpack.c.b16 %v2009, %v2006
        %v2334 = vpack.c.b16 %v2010, %v2007
        %v2335 = vpack.c.b16 %v2011, %v2008
        %v2336 = vpack.c.b16 %v2015, %v2012
        %v2337 = vpack.c.b16 %v2016, %v2013
        %v2338 = vpack.c.b16 %v2017, %v2014
        %v2339 = vpack.c.b16 %v2021, %v2018
        %v2340 = vpack.c.b16 %v2022, %v2019
        %v2341 = vpack.c.b16 %v2023, %v2020
        %v2342 = vpack.c.b16 %v2027, %v2024
        %v2343 = vpack.c.b16 %v2028, %v2025
        %v2344 = vpack.c.b16 %v2029, %v2026
        %v2345 = vpack.c.b16 %v2033, %v2030
        %v2346 = vpack.c.b16 %v2034, %v2031
        %v2347 = vpack.c.b16 %v2035, %v2032
        %v2348 = vpack.c.b16 %v2039, %v2036
        %v2349 = vpack.c.b16 %v2040, %v2037
        %v2350 = vpack.c.b16 %v2041, %v2038
        %v2351 = vpack.c.b16 %v2045, %v2042
        %v2352 = vpack.c.b16 %v2046, %v2043
        %v2353 = vpack.c.b16 %v2047, %v2044
        %v2354 = vpack.c.b16 %v2051, %v2048
        %v2355 = vpack.c.b16 %v2052, %v2049
        %v2356 = vpack.c.b16 %v2053, %v2050
        %v2357 = vpack.c.b16 %v2057, %v2054
        %v2358 = vpack.c.b16 %v2058, %v2055
        %v2359 = vpack.c.b16 %v2059, %v2056
        %v2360 = vpack.c.b16 %v2063, %v2060
        %v2361 = vpack.c.b16 %v2064, %v2061
        %v2362 = vpack.c.b16 %v2065, %v2062
        %v2363 = vpack.c.b16 %v2069, %v2066
        %v2364 = vpack.c.b16 %v2070, %v2067
        %v2365 = vpack.c.b16 %v2071, %v2068
        %v2366 = vpack.c.b16 %v2075, %v2072
        %v2367 = vpack.c.b16 %v2076, %v2073
        %v2368 = vpack.c.b16 %v2077, %v2074
        %v2369 = vpack.c.b16 %v2081, %v2078
        %v2370 = vpack.c.b16 %v2082, %v2079
        %v2371 = vpack.c.b16 %v2083, %v2080
        %v2372 = vpack.c.b16 %v2087, %v2084
        %v2373 = vpack.c.b16 %v2088, %v2085
        %v2374 = vpack.c.b16 %v2089, %v2086
        %v2375 = vpack.c.b16 %v2093, %v2090
        %v2376 = vpack.c.b16 %v2094, %v2091
        %v2377 = vpack.c.b16 %v2095, %v2092
        %v2378 = vpack.c.b16 %v2099, %v2096
        %v2379 = vpack.c.b16 %v2100, %v2097
        %v2380 = vpack.c.b16 %v2101, %v2098
        %v2381 = vpack.c.b16 %v2105, %v2102
        %v2382 = vpack.c.b16 %v2106, %v2103
        %v2383 = vpack.c.b16 %v2107, %v2104
        %v2384 = vpack.c.b16 %v2111, %v2108
        %v2385 = vpack.c.b16 %v2112, %v2109
        %v2386 = vpack.c.b16 %v2113, %v2110
        %v2387 = vpack.c.b16 %v2117, %v2114
        %v2388 = vpack.c.b16 %v2118, %v2115
        %v2389 = vpack.c.b16 %v2119, %v2116
        %v2390 = vpack.c.b16 %v2123, %v2120
        %v2391 = vpack.c.b16 %v2124, %v2121
        %v2392 = vpack.c.b16 %v2125, %v2122
        %v2393 = vpack.c.b16 %v2129, %v2126
        %v2394 = vpack.c.b16 %v2130, %v2127
        %v2395 = vpack.c.b16 %v2131, %v2128
        %v2396 = vpack.c.b16 %v2135, %v2132
        %v2397 = vpack.c.b16 %v2136, %v2133
        %v2398 = vpack.c.b16 %v2137, %v2134
        %v2399 = vpack.c.b16 %v2141, %v2138
        %v2400 = vpack.c.b16 %v2142, %v2139
        %v2401 = vpack.c.b16 %v2143, %v2140
        %v2402 = vpack.c.b16 %v2147, %v2144
        %v2403 = vpack.c.b16 %v2148, %v2145
        %v2404 = vpack.c.b16 %v2149, %v2146
        %v2405 = vpack.c.b16 %v2153, %v2150
        %v2406 = vpack.c.b16 %v2154, %v2151
        %v2407 = vpack.c.b16 %v2155, %v2152
        %v2408 = vpack.c.b16 %v2159, %v2156
        %v2409 = vpack.c.b16 %v2160, %v2157
        %v2410 = vpack.c.b16 %v2161, %v2158
        %v2411 = vpack.c.b16 %v2165, %v2162
        %v2412 = vpack.c.b16 %v2166, %v2163
        %v2413 = vpack.c.b16 %v2167, %v2164
        %v2414 = vpack.c.b16 %v2171, %v2168
        %v2415 = vpack.c.b16 %v2172, %v2169
        %v2416 = vpack.c.b16 %v2173, %v2170
        %v2417 = vpack.c.b16 %v2177, %v2174
        %v2418 = vpack.c.b16 %v2178, %v2175
        %v2419 = vpack.c.b16 %v2179, %v2176
        %2660 = vmatprep.subr.bf16.mxu0 %v2181
        %2661 = vmatpush1.bf16.msra.mxu0 %v2180
        %2662 = vmatprep.subr.bf16.mxu0 %v2184
        %2663 = vmatpush1.bf16.msra.mxu0 %v2183
        %2664 = vmatprep.subr.bf16.mxu0 %v2187
        %2665 = vmatpush1.bf16.msra.mxu0 %v2186
        %2666 = vmatprep.subr.bf16.mxu0 %v2190
        %2667 = vmatpush1.bf16.msra.mxu0 %v2189
        %2668 = vmatprep.subr.bf16.mxu0 %v2193
        %2669 = vmatpush1.bf16.msra.mxu0 %v2192
        %2670 = vmatprep.subr.bf16.mxu0 %v2196
        %2671 = vmatpush1.bf16.msra.mxu0 %v2195
        %2672 = vmatprep.subr.bf16.mxu0 %v2199
        %2673 = vmatpush1.bf16.msra.mxu0 %v2198
        %2674 = vmatprep.subr.bf16.mxu0 %v2202
        %2675 = vmatpush1.bf16.msra.mxu0 %v2201
        %2676 = vmatprep.subr.bf16.mxu0 %v2205
        %2677 = vmatpush1.bf16.msra.mxu0 %v2204
        %2678 = vmatprep.subr.bf16.mxu0 %v2208
        %2679 = vmatpush1.bf16.msra.mxu0 %v2207
        %2680 = vmatprep.subr.bf16.mxu0 %v2211
        %2681 = vmatpush1.bf16.msra.mxu0 %v2210
        %2682 = vmatprep.subr.bf16.mxu0 %v2214
        %2683 = vmatpush1.bf16.msra.mxu0 %v2213
        %2684 = vmatprep.subr.bf16.mxu0 %v2217
        %2685 = vmatpush1.bf16.msra.mxu0 %v2216
        %2686 = vmatprep.subr.bf16.mxu0 %v2220
        %2687 = vmatpush1.bf16.msra.mxu0 %v2219
        %2688 = vmatprep.subr.bf16.mxu0 %v2223
        %2689 = vmatpush1.bf16.msra.mxu0 %v2222
        %2690 = vmatprep.subr.bf16.mxu0 %v2226
        %2691 = vmatpush1.bf16.msra.mxu0 %v2225
        %2692 = vmatprep.mubr.bf16.mxu0 %v1361
        %2693 = vmatmul.mubr.bf16.gmra.mrb[0].mxu0 %v1360
        %v2694 = vpop.f32.mrb[0].mxu0
        %v2695 = vadd.f32 %v1318, %v2694
        %v2696 = vpop.f32.mrb[0].mxu0
        %v2697 = vadd.f32 %v1322, %v2696
        %v2698 = vpop.f32.mrb[0].mxu0
        %v2699 = vadd.f32 %v1318, %v2698
        %v2700 = vpop.f32.mrb[0].mxu0
        %v2701 = vadd.f32 %v1322, %v2700
        %2702 = vdwg.mxu0
        %2703 = vmatprep.subr.bf16.mxu0 %v2229
        %2704 = vmatpush1.bf16.msra.mxu0 %v2228
        %2705 = vmatprep.subr.bf16.mxu0 %v2232
        %2706 = vmatpush1.bf16.msra.mxu0 %v2231
        %2707 = vmatprep.subr.bf16.mxu0 %v2235
        %2708 = vmatpush1.bf16.msra.mxu0 %v2234
        %2709 = vmatprep.subr.bf16.mxu0 %v2238
        %2710 = vmatpush1.bf16.msra.mxu0 %v2237
        %2711 = vmatprep.subr.bf16.mxu0 %v2241
        %2712 = vmatpush1.bf16.msra.mxu0 %v2240
        %2713 = vmatprep.subr.bf16.mxu0 %v2244
        %2714 = vmatpush1.bf16.msra.mxu0 %v2243
        %2715 = vmatprep.subr.bf16.mxu0 %v2247
        %2716 = vmatpush1.bf16.msra.mxu0 %v2246
        %2717 = vmatprep.subr.bf16.mxu0 %v2250
        %2718 = vmatpush1.bf16.msra.mxu0 %v2249
        %2719 = vmatprep.subr.bf16.mxu0 %v2253
        %2720 = vmatpush1.bf16.msra.mxu0 %v2252
        %2721 = vmatprep.subr.bf16.mxu0 %v2256
        %2722 = vmatpush1.bf16.msra.mxu0 %v2255
        %2723 = vmatprep.subr.bf16.mxu0 %v2259
        %2724 = vmatpush1.bf16.msra.mxu0 %v2258
        %2725 = vmatprep.subr.bf16.mxu0 %v2262
        %2726 = vmatpush1.bf16.msra.mxu0 %v2261
        %2727 = vmatprep.subr.bf16.mxu0 %v2265
        %2728 = vmatpush1.bf16.msra.mxu0 %v2264
        %2729 = vmatprep.subr.bf16.mxu0 %v2268
        %2730 = vmatpush1.bf16.msra.mxu0 %v2267
        %2731 = vmatprep.subr.bf16.mxu0 %v2271
        %2732 = vmatpush1.bf16.msra.mxu0 %v2270
        %2733 = vmatprep.subr.bf16.mxu0 %v2274
        %2734 = vmatpush1.bf16.msra.mxu0 %v2273
        %2735 = vmatprep.mubr.bf16.mxu0 %v1363
        %2736 = vmatmul.mubr.bf16.gmra.mrb[0].mxu0 %v1362
        %v2737 = vpop.f32.mrb[0].mxu0
        %v2738 = vadd.f32 %v2695, %v2737
        %v2739 = vpop.f32.mrb[0].mxu0
        %v2740 = vadd.f32 %v2697, %v2739
        %v2741 = vpop.f32.mrb[0].mxu0
        %v2742 = vadd.f32 %v2699, %v2741
        %v2743 = vpop.f32.mrb[0].mxu0
        %v2744 = vadd.f32 %v2701, %v2743
        %2745 = vdwg.mxu0
        %2746 = vmatprep.subr.bf16.mxu0 %v2277
        %2747 = vmatpush1.bf16.msra.mxu0 %v2276
        %2748 = vmatprep.subr.bf16.mxu0 %v2280
        %2749 = vmatpush1.bf16.msra.mxu0 %v2279
        %2750 = vmatprep.subr.bf16.mxu0 %v2283
        %2751 = vmatpush1.bf16.msra.mxu0 %v2282
        %2752 = vmatprep.subr.bf16.mxu0 %v2286
        %2753 = vmatpush1.bf16.msra.mxu0 %v2285
        %2754 = vmatprep.subr.bf16.mxu0 %v2289
        %2755 = vmatpush1.bf16.msra.mxu0 %v2288
        %2756 = vmatprep.subr.bf16.mxu0 %v2292
        %2757 = vmatpush1.bf16.msra.mxu0 %v2291
        %2758 = vmatprep.subr.bf16.mxu0 %v2295
        %2759 = vmatpush1.bf16.msra.mxu0 %v2294
        %2760 = vmatprep.subr.bf16.mxu0 %v2298
        %2761 = vmatpush1.bf16.msra.mxu0 %v2297
        %2762 = vmatprep.subr.bf16.mxu0 %v2301
        %2763 = vmatpush1.bf16.msra.mxu0 %v2300
        %2764 = vmatprep.subr.bf16.mxu0 %v2304
        %2765 = vmatpush1.bf16.msra.mxu0 %v2303
        %2766 = vmatprep.subr.bf16.mxu0 %v2307
        %2767 = vmatpush1.bf16.msra.mxu0 %v2306
        %2768 = vmatprep.subr.bf16.mxu0 %v2310
        %2769 = vmatpush1.bf16.msra.mxu0 %v2309
        %2770 = vmatprep.subr.bf16.mxu0 %v2313
        %2771 = vmatpush1.bf16.msra.mxu0 %v2312
        %2772 = vmatprep.subr.bf16.mxu0 %v2316
        %2773 = vmatpush1.bf16.msra.mxu0 %v2315
        %2774 = vmatprep.subr.bf16.mxu0 %v2319
        %2775 = vmatpush1.bf16.msra.mxu0 %v2318
        %2776 = vmatprep.subr.bf16.mxu0 %v2322
        %2777 = vmatpush1.bf16.msra.mxu0 %v2321
        %2778 = vmatprep.mubr.bf16.mxu0 %v1365
        %2779 = vmatmul.mubr.bf16.gmra.mrb[0].mxu0 %v1364
        %v2780 = vpop.f32.mrb[0].mxu0
        %v2781 = vadd.f32 %v2738, %v2780
        %v2782 = vpop.f32.mrb[0].mxu0
        %v2783 = vadd.f32 %v2740, %v2782
        %v2784 = vpop.f32.mrb[0].mxu0
        %v2785 = vadd.f32 %v2742, %v2784
        %v2786 = vpop.f32.mrb[0].mxu0
        %v2787 = vadd.f32 %v2744, %v2786
        %2788 = vdwg.mxu0
        %2789 = vmatprep.subr.bf16.mxu0 %v2325
        %2790 = vmatpush1.bf16.msra.mxu0 %v2324
        %2791 = vmatprep.subr.bf16.mxu0 %v2328
        %2792 = vmatpush1.bf16.msra.mxu0 %v2327
        %2793 = vmatprep.subr.bf16.mxu0 %v2331
        %2794 = vmatpush1.bf16.msra.mxu0 %v2330
        %2795 = vmatprep.subr.bf16.mxu0 %v2334
        %2796 = vmatpush1.bf16.msra.mxu0 %v2333
        %2797 = vmatprep.subr.bf16.mxu0 %v2337
        %2798 = vmatpush1.bf16.msra.mxu0 %v2336
        %2799 = vmatprep.subr.bf16.mxu0 %v2340
        %2800 = vmatpush1.bf16.msra.mxu0 %v2339
        %2801 = vmatprep.subr.bf16.mxu0 %v2343
        %2802 = vmatpush1.bf16.msra.mxu0 %v2342
        %2803 = vmatprep.subr.bf16.mxu0 %v2346
        %2804 = vmatpush1.bf16.msra.mxu0 %v2345
        %2805 = vmatprep.subr.bf16.mxu0 %v2349
        %2806 = vmatpush1.bf16.msra.mxu0 %v2348
        %2807 = vmatprep.subr.bf16.mxu0 %v2352
        %2808 = vmatpush1.bf16.msra.mxu0 %v2351
        %2809 = vmatprep.subr.bf16.mxu0 %v2355
        %2810 = vmatpush1.bf16.msra.mxu0 %v2354
        %2811 = vmatprep.subr.bf16.mxu0 %v2358
        %2812 = vmatpush1.bf16.msra.mxu0 %v2357
        %2813 = vmatprep.subr.bf16.mxu0 %v2361
        %2814 = vmatpush1.bf16.msra.mxu0 %v2360
        %2815 = vmatprep.subr.bf16.mxu0 %v2364
        %2816 = vmatpush1.bf16.msra.mxu0 %v2363
        %2817 = vmatprep.subr.bf16.mxu0 %v2367
        %2818 = vmatpush1.bf16.msra.mxu0 %v2366
        %2819 = vmatprep.subr.bf16.mxu0 %v2370
        %2820 = vmatpush1.bf16.msra.mxu0 %v2369
        %2821 = vmatprep.mubr.bf16.mxu0 %v1367
        %2822 = vmatmul.mubr.bf16.gmra.mrb[0].mxu0 %v1366
        %v2823 = vpop.f32.mrb[0].mxu0
        %v2824 = vadd.f32 %v2781, %v2823
        %v2825 = vpop.f32.mrb[0].mxu0
        %v2826 = vadd.f32 %v2783, %v2825
        %v2827 = vpop.f32.mrb[0].mxu0
        %v2828 = vadd.f32 %v2785, %v2827
        %v2829 = vpop.f32.mrb[0].mxu0
        %v2830 = vadd.f32 %v2787, %v2829
        %2831 = vdwg.mxu0
        %2832 = vmatprep.subr.bf16.mxu0 %v2373
        %2833 = vmatpush1.bf16.msra.mxu0 %v2372
        %2834 = vmatprep.subr.bf16.mxu0 %v2376
        %2835 = vmatpush1.bf16.msra.mxu0 %v2375
        %2836 = vmatprep.subr.bf16.mxu0 %v2379
        %2837 = vmatpush1.bf16.msra.mxu0 %v2378
        %2838 = vmatprep.subr.bf16.mxu0 %v2382
        %2839 = vmatpush1.bf16.msra.mxu0 %v2381
        %2840 = vmatprep.subr.bf16.mxu0 %v2385
        %2841 = vmatpush1.bf16.msra.mxu0 %v2384
        %2842 = vmatprep.subr.bf16.mxu0 %v2388
        %2843 = vmatpush1.bf16.msra.mxu0 %v2387
        %2844 = vmatprep.subr.bf16.mxu0 %v2391
        %2845 = vmatpush1.bf16.msra.mxu0 %v2390
        %2846 = vmatprep.subr.bf16.mxu0 %v2394
        %2847 = vmatpush1.bf16.msra.mxu0 %v2393
        %2848 = vmatprep.subr.bf16.mxu0 %v2397
        %2849 = vmatpush1.bf16.msra.mxu0 %v2396
        %2850 = vmatprep.subr.bf16.mxu0 %v2400
        %2851 = vmatpush1.bf16.msra.mxu0 %v2399
        %2852 = vmatprep.subr.bf16.mxu0 %v2403
        %2853 = vmatpush1.bf16.msra.mxu0 %v2402
        %2854 = vmatprep.subr.bf16.mxu0 %v2406
        %2855 = vmatpush1.bf16.msra.mxu0 %v2405
        %2856 = vmatprep.subr.bf16.mxu0 %v2409
        %2857 = vmatpush1.bf16.msra.mxu0 %v2408
        %2858 = vmatprep.subr.bf16.mxu0 %v2412
        %2859 = vmatpush1.bf16.msra.mxu0 %v2411
        %2860 = vmatprep.subr.bf16.mxu0 %v2415
        %2861 = vmatpush1.bf16.msra.mxu0 %v2414
        %2862 = vmatprep.subr.bf16.mxu0 %v2418
        %2863 = vmatpush1.bf16.msra.mxu0 %v2417
        %2864 = vmatprep.mubr.bf16.mxu0 %v1369
        %2865 = vmatmul.mubr.bf16.gmra.mrb[0].mxu0 %v1368
        %v2866 = vpop.f32.mrb[0].mxu0
        %v2867 = vadd.f32 %v2824, %v2866
        %v2868 = vpop.f32.mrb[0].mxu0
        %v2869 = vadd.f32 %v2826, %v2868
        %v2870 = vpop.f32.mrb[0].mxu0
        %v2871 = vadd.f32 %v2828, %v2870
        %v2872 = vpop.f32.mrb[0].mxu0
        %v2873 = vadd.f32 %v2830, %v2872
        %2874 = vdwg.mxu0
        %2875 = vmatprep.subr.bf16.mxu0 0
        %2876 = vmatpush1.bf16.msra.mxu0 %v2182
        %2877 = vmatprep.subr.bf16.mxu0 0
        %2878 = vmatpush1.bf16.msra.mxu0 %v2185
        %2879 = vmatprep.subr.bf16.mxu0 0
        %2880 = vmatpush1.bf16.msra.mxu0 %v2188
        %2881 = vmatprep.subr.bf16.mxu0 0
        %2882 = vmatpush1.bf16.msra.mxu0 %v2191
        %2883 = vmatprep.subr.bf16.mxu0 0
        %2884 = vmatpush1.bf16.msra.mxu0 %v2194
        %2885 = vmatprep.subr.bf16.mxu0 0
        %2886 = vmatpush1.bf16.msra.mxu0 %v2197
        %2887 = vmatprep.subr.bf16.mxu0 0
        %2888 = vmatpush1.bf16.msra.mxu0 %v2200
        %2889 = vmatprep.subr.bf16.mxu0 0
        %2890 = vmatpush1.bf16.msra.mxu0 %v2203
        %2891 = vmatprep.subr.bf16.mxu0 0
        %2892 = vmatpush1.bf16.msra.mxu0 %v2206
        %2893 = vmatprep.subr.bf16.mxu0 0
        %2894 = vmatpush1.bf16.msra.mxu0 %v2209
        %2895 = vmatprep.subr.bf16.mxu0 0
        %2896 = vmatpush1.bf16.msra.mxu0 %v2212
        %2897 = vmatprep.subr.bf16.mxu0 0
        %2898 = vmatpush1.bf16.msra.mxu0 %v2215
        %2899 = vmatprep.subr.bf16.mxu0 0
        %2900 = vmatpush1.bf16.msra.mxu0 %v2218
        %2901 = vmatprep.subr.bf16.mxu0 0
        %2902 = vmatpush1.bf16.msra.mxu0 %v2221
        %2903 = vmatprep.subr.bf16.mxu0 0
        %2904 = vmatpush1.bf16.msra.mxu0 %v2224
        %2905 = vmatprep.subr.bf16.mxu0 0
        %2906 = vmatpush1.bf16.msra.mxu0 %v2227
        %2907 = vmatprep.mubr.bf16.mxu0 %v1361
        %2908 = vmatmul.mubr.bf16.gmra.mrb[0].mxu0 %v1360
        %v2909 = vpop.f32.mrb[0].mxu0
        %v2910 = vadd.f32 %v1326, %v2909
        %v2911 = vpop.f32.mrb[0].mxu0
        %v2912 = vpop.f32.mrb[0].mxu0
        %v2913 = vadd.f32 %v1326, %v2912
        %v2914 = vpop.f32.mrb[0].mxu0
        %2915 = vdwg.mxu0
        %2916 = vmatprep.subr.bf16.mxu0 0
        %2917 = vmatpush1.bf16.msra.mxu0 %v2230
        %2918 = vmatprep.subr.bf16.mxu0 0
        %2919 = vmatpush1.bf16.msra.mxu0 %v2233
        %2920 = vmatprep.subr.bf16.mxu0 0
        %2921 = vmatpush1.bf16.msra.mxu0 %v2236
        %2922 = vmatprep.subr.bf16.mxu0 0
        %2923 = vmatpush1.bf16.msra.mxu0 %v2239
        %2924 = vmatprep.subr.bf16.mxu0 0
        %2925 = vmatpush1.bf16.msra.mxu0 %v2242
        %2926 = vmatprep.subr.bf16.mxu0 0
        %2927 = vmatpush1.bf16.msra.mxu0 %v2245
        %2928 = vmatprep.subr.bf16.mxu0 0
        %2929 = vmatpush1.bf16.msra.mxu0 %v2248
        %2930 = vmatprep.subr.bf16.mxu0 0
        %2931 = vmatpush1.bf16.msra.mxu0 %v2251
        %2932 = vmatprep.subr.bf16.mxu0 0
        %2933 = vmatpush1.bf16.msra.mxu0 %v2254
        %2934 = vmatprep.subr.bf16.mxu0 0
        %2935 = vmatpush1.bf16.msra.mxu0 %v2257
        %2936 = vmatprep.subr.bf16.mxu0 0
        %2937 = vmatpush1.bf16.msra.mxu0 %v2260
        %2938 = vmatprep.subr.bf16.mxu0 0
        %2939 = vmatpush1.bf16.msra.mxu0 %v2263
        %2940 = vmatprep.subr.bf16.mxu0 0
        %2941 = vmatpush1.bf16.msra.mxu0 %v2266
        %2942 = vmatprep.subr.bf16.mxu0 0
        %2943 = vmatpush1.bf16.msra.mxu0 %v2269
        %2944 = vmatprep.subr.bf16.mxu0 0
        %2945 = vmatpush1.bf16.msra.mxu0 %v2272
        %2946 = vmatprep.subr.bf16.mxu0 0
        %2947 = vmatpush1.bf16.msra.mxu0 %v2275
        %2948 = vmatprep.mubr.bf16.mxu0 %v1363
        %2949 = vmatmul.mubr.bf16.gmra.mrb[0].mxu0 %v1362
        %v2950 = vpop.f32.mrb[0].mxu0
        %v2951 = vadd.f32 %v2910, %v2950
        %v2952 = vpop.f32.mrb[0].mxu0
        %v2953 = vpop.f32.mrb[0].mxu0
        %v2954 = vadd.f32 %v2913, %v2953
        %v2955 = vpop.f32.mrb[0].mxu0
        %2956 = vdwg.mxu0
        %2957 = vmatprep.subr.bf16.mxu0 0
        %2958 = vmatpush1.bf16.msra.mxu0 %v2278
        %2959 = vmatprep.subr.bf16.mxu0 0
        %2960 = vmatpush1.bf16.msra.mxu0 %v2281
        %2961 = vmatprep.subr.bf16.mxu0 0
        %2962 = vmatpush1.bf16.msra.mxu0 %v2284
        %2963 = vmatprep.subr.bf16.mxu0 0
        %2964 = vmatpush1.bf16.msra.mxu0 %v2287
        %2965 = vmatprep.subr.bf16.mxu0 0
        %2966 = vmatpush1.bf16.msra.mxu0 %v2290
        %2967 = vmatprep.subr.bf16.mxu0 0
        %2968 = vmatpush1.bf16.msra.mxu0 %v2293
        %2969 = vmatprep.subr.bf16.mxu0 0
        %2970 = vmatpush1.bf16.msra.mxu0 %v2296
        %2971 = vmatprep.subr.bf16.mxu0 0
        %2972 = vmatpush1.bf16.msra.mxu0 %v2299
        %2973 = vmatprep.subr.bf16.mxu0 0
        %2974 = vmatpush1.bf16.msra.mxu0 %v2302
        %2975 = vmatprep.subr.bf16.mxu0 0
        %2976 = vmatpush1.bf16.msra.mxu0 %v2305
        %2977 = vmatprep.subr.bf16.mxu0 0
        %2978 = vmatpush1.bf16.msra.mxu0 %v2308
        %2979 = vmatprep.subr.bf16.mxu0 0
        %2980 = vmatpush1.bf16.msra.mxu0 %v2311
        %2981 = vmatprep.subr.bf16.mxu0 0
        %2982 = vmatpush1.bf16.msra.mxu0 %v2314
        %2983 = vmatprep.subr.bf16.mxu0 0
        %2984 = vmatpush1.bf16.msra.mxu0 %v2317
        %2985 = vmatprep.subr.bf16.mxu0 0
        %2986 = vmatpush1.bf16.msra.mxu0 %v2320
        %2987 = vmatprep.subr.bf16.mxu0 0
        %2988 = vmatpush1.bf16.msra.mxu0 %v2323
        %2989 = vmatprep.mubr.bf16.mxu0 %v1365
        %2990 = vmatmul.mubr.bf16.gmra.mrb[0].mxu0 %v1364
        %v2991 = vpop.f32.mrb[0].mxu0
        %v2992 = vadd.f32 %v2951, %v2991
        %v2993 = vpop.f32.mrb[0].mxu0
        %v2994 = vpop.f32.mrb[0].mxu0
        %v2995 = vadd.f32 %v2954, %v2994
        %v2996 = vpop.f32.mrb[0].mxu0
        %2997 = vdwg.mxu0
        %2998 = vmatprep.subr.bf16.mxu0 0
        %2999 = vmatpush1.bf16.msra.mxu0 %v2326
        %3000 = vmatprep.subr.bf16.mxu0 0
        %3001 = vmatpush1.bf16.msra.mxu0 %v2329
        %3002 = vmatprep.subr.bf16.mxu0 0
        %3003 = vmatpush1.bf16.msra.mxu0 %v2332
        %3004 = vmatprep.subr.bf16.mxu0 0
        %3005 = vmatpush1.bf16.msra.mxu0 %v2335
        %3006 = vmatprep.subr.bf16.mxu0 0
        %3007 = vmatpush1.bf16.msra.mxu0 %v2338
        %3008 = vmatprep.subr.bf16.mxu0 0
        %3009 = vmatpush1.bf16.msra.mxu0 %v2341
        %3010 = vmatprep.subr.bf16.mxu0 0
        %3011 = vmatpush1.bf16.msra.mxu0 %v2344
        %3012 = vmatprep.subr.bf16.mxu0 0
        %3013 = vmatpush1.bf16.msra.mxu0 %v2347
        %3014 = vmatprep.subr.bf16.mxu0 0
        %3015 = vmatpush1.bf16.msra.mxu0 %v2350
        %3016 = vmatprep.subr.bf16.mxu0 0
        %3017 = vmatpush1.bf16.msra.mxu0 %v2353
        %3018 = vmatprep.subr.bf16.mxu0 0
        %3019 = vmatpush1.bf16.msra.mxu0 %v2356
        %3020 = vmatprep.subr.bf16.mxu0 0
        %3021 = vmatpush1.bf16.msra.mxu0 %v2359
        %3022 = vmatprep.subr.bf16.mxu0 0
        %3023 = vmatpush1.bf16.msra.mxu0 %v2362
        %3024 = vmatprep.subr.bf16.mxu0 0
        %3025 = vmatpush1.bf16.msra.mxu0 %v2365
        %3026 = vmatprep.subr.bf16.mxu0 0
        %3027 = vmatpush1.bf16.msra.mxu0 %v2368
        %3028 = vmatprep.subr.bf16.mxu0 0
        %3029 = vmatpush1.bf16.msra.mxu0 %v2371
        %3030 = vmatprep.mubr.bf16.mxu0 %v1367
        %3031 = vmatmul.mubr.bf16.gmra.mrb[0].mxu0 %v1366
        %v3032 = vpop.f32.mrb[0].mxu0
        %v3033 = vadd.f32 %v2992, %v3032
        %v3034 = vpop.f32.mrb[0].mxu0
        %v3035 = vpop.f32.mrb[0].mxu0
        %v3036 = vadd.f32 %v2995, %v3035
        %v3037 = vpop.f32.mrb[0].mxu0
        %3038 = vdwg.mxu0
        %3039 = vmatprep.subr.bf16.mxu0 0
        %3040 = vmatpush1.bf16.msra.mxu0 %v2374
        %3041 = vmatprep.subr.bf16.mxu0 0
        %3042 = vmatpush1.bf16.msra.mxu0 %v2377
        %3043 = vmatprep.subr.bf16.mxu0 0
        %3044 = vmatpush1.bf16.msra.mxu0 %v2380
        %3045 = vmatprep.subr.bf16.mxu0 0
        %3046 = vmatpush1.bf16.msra.mxu0 %v2383
        %3047 = vmatprep.subr.bf16.mxu0 0
        %3048 = vmatpush1.bf16.msra.mxu0 %v2386
        %3049 = vmatprep.subr.bf16.mxu0 0
        %3050 = vmatpush1.bf16.msra.mxu0 %v2389
        %3051 = vmatprep.subr.bf16.mxu0 0
        %3052 = vmatpush1.bf16.msra.mxu0 %v2392
        %3053 = vmatprep.subr.bf16.mxu0 0
        %3054 = vmatpush1.bf16.msra.mxu0 %v2395
        %3055 = vmatprep.subr.bf16.mxu0 0
        %3056 = vmatpush1.bf16.msra.mxu0 %v2398
        %3057 = vmatprep.subr.bf16.mxu0 0
        %3058 = vmatpush1.bf16.msra.mxu0 %v2401
        %3059 = vmatprep.subr.bf16.mxu0 0
        %3060 = vmatpush1.bf16.msra.mxu0 %v2404
        %3061 = vmatprep.subr.bf16.mxu0 0
        %3062 = vmatpush1.bf16.msra.mxu0 %v2407
        %3063 = vmatprep.subr.bf16.mxu0 0
        %3064 = vmatpush1.bf16.msra.mxu0 %v2410
        %3065 = vmatprep.subr.bf16.mxu0 0
        %3066 = vmatpush1.bf16.msra.mxu0 %v2413
        %3067 = vmatprep.subr.bf16.mxu0 0
        %3068 = vmatpush1.bf16.msra.mxu0 %v2416
        %3069 = vmatprep.subr.bf16.mxu0 0
        %3070 = vmatpush1.bf16.msra.mxu0 %v2419
        %3071 = vmatprep.mubr.bf16.mxu0 %v1369
        %3072 = vmatmul.mubr.bf16.gmra.mrb[0].mxu0 %v1368
        %v3073 = vpop.f32.mrb[0].mxu0
        %v3074 = vadd.f32 %v3033, %v3073
        %v3075 = vpop.f32.mrb[0].mxu0
        %v3076 = vpop.f32.mrb[0].mxu0
        %v3077 = vadd.f32 %v3036, %v3076
        %v3078 = vpop.f32.mrb[0].mxu0
        %3079 = vdwg.mxu0
        %v3080 = vmax.f32 %v2867, 0.0
        %v3081 = vmax.f32 %v2869, 0.0
        %v3082 = vmax.f32 %v3074, 0.0
        %v3083 = vmax.f32 %v2871, 0.0
        %v3084 = vmax.f32 %v2873, 0.0
        %v3085 = vmax.f32 %v3077, 0.0
        %v3086 = vld [vmem:[#allocation3] sm:$0xff]
        %v3087 = vld [vmem:[#allocation3 + $0x8] sm:$0xff]
        %v3088 = vld [vmem:[#allocation3 + $0x10] sm:$0xff]
        %v3089 = vld [vmem:[#allocation3 + $0x18] sm:$0xff]
        %v3090 = vld [vmem:[#allocation3 + $0x20] sm:$0xff]
        %v3091 = vld [vmem:[#allocation3 + $0x28] sm:$0xff]
        %v3092 = vld [vmem:[#allocation3 + $0x30] sm:$0xff]
        %v3093 = vld [vmem:[#allocation3 + $0x38] sm:$0xff]
        %v3094 = vld [vmem:[#allocation3 + $0x40] sm:$0xff]
        %v3095 = vld [vmem:[#allocation3 + $0x48] sm:$0xff]
        %v3096 = vld [vmem:[#allocation3 + $0x50] sm:$0xff]
        %v3097 = vld [vmem:[#allocation3 + $0x58] sm:$0xff]
        %v3098 = vpack.c.bf16 %v3083, %v3080
        %v3099 = vpack.c.bf16 %v3084, %v3081
        %v3100 = vpack.c.bf16 %v3085, %v3082
        %v3101 = vld [vmem:[%s963] sm:$0xff]
        %v3102 = vld [vmem:[%s963 + $0x8] sm:$0xff]
        %v3103 = vld [vmem:[%s963 + $0x10] sm:$0xff]
        %v3104 = vld [vmem:[%s963 + $0x18] sm:$0xff]
        %v3105 = vld [vmem:[%s963 + $0x20] sm:$0xff]
        %v3106 = vld [vmem:[%s963 + $0x28] sm:$0xff]
        %v3107 = vld [vmem:[%s963 + $0x30] sm:$0xff]
        %v3108 = vld [vmem:[%s963 + $0x38] sm:$0xff]
        %v3109 = vld [vmem:[%s963 + $0x40] sm:$0xff]
        %v3110 = vld [vmem:[%s963 + $0x48] sm:$0xff]
        %v3111 = vld [vmem:[%s963 + $0x50] sm:$0xff]
        %v3112 = vld [vmem:[%s963 + $0x58] sm:$0xff]
        %v3113 = vld [vmem:[%s963 + $0x60] sm:$0xff]
        %v3114 = vld [vmem:[%s963 + $0x68] sm:$0xff]
        %v3115 = vld [vmem:[%s963 + $0x70] sm:$0xff]
        %v3116 = vld [vmem:[%s963 + $0x78] sm:$0xff]
        %v3117 = vld [vmem:[%s963 + $0x80] sm:$0xff]
        %v3118 = vld [vmem:[%s963 + $0x88] sm:$0xff]
        %v3119 = vld [vmem:[%s963 + $0x90] sm:$0xff]
        %v3120 = vld [vmem:[%s963 + $0x98] sm:$0xff]
        %v3121 = vld [vmem:[%s963 + $0xa0] sm:$0xff]
        %v3122 = vld [vmem:[%s963 + $0xa8] sm:$0xff]
        %v3123 = vld [vmem:[%s963 + $0xb0] sm:$0xff]
        %v3124 = vld [vmem:[%s963 + $0xb8] sm:$0xff]
        %v3125 = vld [vmem:[%s963 + $0xc0] sm:$0xff]
        %v3126 = vld [vmem:[%s963 + $0xc8] sm:$0xff]
        %v3127 = vld [vmem:[%s963 + $0xd0] sm:$0xff]
        %v3128 = vld [vmem:[%s963 + $0xd8] sm:$0xff]
        %v3129 = vld [vmem:[%s963 + $0xe0] sm:$0xff]
        %v3130 = vld [vmem:[%s963 + $0xe8] sm:$0xff]
        %v3131 = vld [vmem:[%s963 + $0xf0] sm:$0xff]
        %v3132 = vld [vmem:[%s963 + $0xf8] sm:$0xff]
        %v3133 = vld [vmem:[%s963 + $0x100] sm:$0xff]
        %v3134 = vld [vmem:[%s963 + $0x108] sm:$0xff]
        %v3135 = vld [vmem:[%s963 + $0x110] sm:$0xff]
        %v3136 = vld [vmem:[%s963 + $0x118] sm:$0xff]
        %v3137 = vld [vmem:[%s963 + $0x120] sm:$0xff]
        %v3138 = vld [vmem:[%s963 + $0x128] sm:$0xff]
        %v3139 = vld [vmem:[%s963 + $0x130] sm:$0xff]
        %v3140 = vld [vmem:[%s963 + $0x138] sm:$0xff]
        %v3141 = vld [vmem:[%s963 + $0x140] sm:$0xff]
        %v3142 = vld [vmem:[%s963 + $0x148] sm:$0xff]
        %v3143 = vld [vmem:[%s963 + $0x150] sm:$0xff]
        %v3144 = vld [vmem:[%s963 + $0x158] sm:$0xff]
        %v3145 = vld [vmem:[%s963 + $0x160] sm:$0xff]
        %v3146 = vld [vmem:[%s963 + $0x168] sm:$0xff]
        %v3147 = vld [vmem:[%s963 + $0x170] sm:$0xff]
        %v3148 = vld [vmem:[%s963 + $0x178] sm:$0xff]
        %v3149 = vld [vmem:[%s963 + $0x180] sm:$0xff]
        %v3150 = vld [vmem:[%s963 + $0x188] sm:$0xff]
        %v3151 = vld [vmem:[%s963 + $0x190] sm:$0xff]
        %v3152 = vld [vmem:[%s963 + $0x198] sm:$0xff]
        %v3153 = vld [vmem:[%s963 + $0x1a0] sm:$0xff]
        %v3154 = vld [vmem:[%s963 + $0x1a8] sm:$0xff]
        %v3155 = vld [vmem:[%s963 + $0x1b0] sm:$0xff]
        %v3156 = vld [vmem:[%s963 + $0x1b8] sm:$0xff]
        %v3157 = vld [vmem:[%s963 + $0x1c0] sm:$0xff]
        %v3158 = vld [vmem:[%s963 + $0x1c8] sm:$0xff]
        %v3159 = vld [vmem:[%s963 + $0x1d0] sm:$0xff]
        %v3160 = vld [vmem:[%s963 + $0x1d8] sm:$0xff]
        %v3161 = vld [vmem:[%s963 + $0x1e0] sm:$0xff]
        %v3162 = vld [vmem:[%s963 + $0x1e8] sm:$0xff]
        %v3163 = vld [vmem:[%s963 + $0x1f0] sm:$0xff]
        %v3164 = vld [vmem:[%s963 + $0x1f8] sm:$0xff]
        %v3165 = vld [vmem:[%s963 + $0x200] sm:$0xff]
        %v3166 = vld [vmem:[%s963 + $0x208] sm:$0xff]
        %v3167 = vld [vmem:[%s963 + $0x210] sm:$0xff]
        %v3168 = vld [vmem:[%s963 + $0x218] sm:$0xff]
        %v3169 = vld [vmem:[%s963 + $0x220] sm:$0xff]
        %v3170 = vld [vmem:[%s963 + $0x228] sm:$0xff]
        %v3171 = vld [vmem:[%s963 + $0x230] sm:$0xff]
        %v3172 = vld [vmem:[%s963 + $0x238] sm:$0xff]
        %v3173 = vld [vmem:[%s963 + $0x240] sm:$0xff]
        %v3174 = vld [vmem:[%s963 + $0x248] sm:$0xff]
        %v3175 = vld [vmem:[%s963 + $0x250] sm:$0xff]
        %v3176 = vld [vmem:[%s963 + $0x258] sm:$0xff]
        %v3177 = vld [vmem:[%s963 + $0x260] sm:$0xff]
        %v3178 = vld [vmem:[%s963 + $0x268] sm:$0xff]
        %v3179 = vld [vmem:[%s963 + $0x270] sm:$0xff]
        %v3180 = vld [vmem:[%s963 + $0x278] sm:$0xff]
        %v3181 = vld [vmem:[%s963 + $0x280] sm:$0xff]
        %v3182 = vld [vmem:[%s963 + $0x288] sm:$0xff]
        %v3183 = vld [vmem:[%s963 + $0x290] sm:$0xff]
        %v3184 = vld [vmem:[%s963 + $0x298] sm:$0xff]
        %v3185 = vld [vmem:[%s963 + $0x2a0] sm:$0xff]
        %v3186 = vld [vmem:[%s963 + $0x2a8] sm:$0xff]
        %v3187 = vld [vmem:[%s963 + $0x2b0] sm:$0xff]
        %v3188 = vld [vmem:[%s963 + $0x2b8] sm:$0xff]
        %v3189 = vld [vmem:[%s963 + $0x2c0] sm:$0xff]
        %v3190 = vld [vmem:[%s963 + $0x2c8] sm:$0xff]
        %v3191 = vld [vmem:[%s963 + $0x2d0] sm:$0xff]
        %v3192 = vld [vmem:[%s963 + $0x2d8] sm:$0xff]
        %v3193 = vld [vmem:[%s963 + $0x2e0] sm:$0xff]
        %v3194 = vld [vmem:[%s963 + $0x2e8] sm:$0xff]
        %v3195 = vld [vmem:[%s963 + $0x2f0] sm:$0xff]
        %v3196 = vld [vmem:[%s963 + $0x2f8] sm:$0xff]
        %v3197 = vld [vmem:[%s963 + $0x300] sm:$0xff]
        %v3198 = vld [vmem:[%s963 + $0x308] sm:$0xff]
        %v3199 = vld [vmem:[%s963 + $0x310] sm:$0xff]
        %v3200 = vld [vmem:[%s963 + $0x318] sm:$0xff]
        %v3201 = vld [vmem:[%s963 + $0x320] sm:$0xff]
        %v3202 = vld [vmem:[%s963 + $0x328] sm:$0xff]
        %v3203 = vld [vmem:[%s963 + $0x330] sm:$0xff]
        %v3204 = vld [vmem:[%s963 + $0x338] sm:$0xff]
        %v3205 = vld [vmem:[%s963 + $0x340] sm:$0xff]
        %v3206 = vld [vmem:[%s963 + $0x348] sm:$0xff]
        %v3207 = vld [vmem:[%s963 + $0x350] sm:$0xff]
        %v3208 = vld [vmem:[%s963 + $0x358] sm:$0xff]
        %v3209 = vld [vmem:[%s963 + $0x360] sm:$0xff]
        %v3210 = vld [vmem:[%s963 + $0x368] sm:$0xff]
        %v3211 = vld [vmem:[%s963 + $0x370] sm:$0xff]
        %v3212 = vld [vmem:[%s963 + $0x378] sm:$0xff]
        %v3213 = vld [vmem:[%s963 + $0x380] sm:$0xff]
        %v3214 = vld [vmem:[%s963 + $0x388] sm:$0xff]
        %v3215 = vld [vmem:[%s963 + $0x390] sm:$0xff]
        %v3216 = vld [vmem:[%s963 + $0x398] sm:$0xff]
        %v3217 = vld [vmem:[%s963 + $0x3a0] sm:$0xff]
        %v3218 = vld [vmem:[%s963 + $0x3a8] sm:$0xff]
        %v3219 = vld [vmem:[%s963 + $0x3b0] sm:$0xff]
        %v3220 = vld [vmem:[%s963 + $0x3b8] sm:$0xff]
        %v3221 = vld [vmem:[%s963 + $0x3c0] sm:$0xff]
        %v3222 = vld [vmem:[%s963 + $0x3c8] sm:$0xff]
        %v3223 = vld [vmem:[%s963 + $0x3d0] sm:$0xff]
        %v3224 = vld [vmem:[%s963 + $0x3d8] sm:$0xff]
        %v3225 = vld [vmem:[%s963 + $0x3e0] sm:$0xff]
        %v3226 = vld [vmem:[%s963 + $0x3e8] sm:$0xff]
        %v3227 = vld [vmem:[%s963 + $0x3f0] sm:$0xff]
        %v3228 = vld [vmem:[%s963 + $0x3f8] sm:$0xff]
        %v3229 = vld [vmem:[%s963 + $0x400] sm:$0xff]
        %v3230 = vld [vmem:[%s963 + $0x408] sm:$0xff]
        %v3231 = vld [vmem:[%s963 + $0x410] sm:$0xff]
        %v3232 = vld [vmem:[%s963 + $0x418] sm:$0xff]
        %v3233 = vld [vmem:[%s963 + $0x420] sm:$0xff]
        %v3234 = vld [vmem:[%s963 + $0x428] sm:$0xff]
        %v3235 = vld [vmem:[%s963 + $0x430] sm:$0xff]
        %v3236 = vld [vmem:[%s963 + $0x438] sm:$0xff]
        %v3237 = vld [vmem:[%s963 + $0x440] sm:$0xff]
        %v3238 = vld [vmem:[%s963 + $0x448] sm:$0xff]
        %v3239 = vld [vmem:[%s963 + $0x450] sm:$0xff]
        %v3240 = vld [vmem:[%s963 + $0x458] sm:$0xff]
        %v3241 = vld [vmem:[%s963 + $0x460] sm:$0xff]
        %v3242 = vld [vmem:[%s963 + $0x468] sm:$0xff]
        %v3243 = vld [vmem:[%s963 + $0x470] sm:$0xff]
        %v3244 = vld [vmem:[%s963 + $0x478] sm:$0xff]
        %v3389 = vunpack.c.l.b16 %v3101
        %v3390 = vunpack.c.h.b16 %v3101
        %v3391 = vunpack.c.l.b16 %v3102
        %v3392 = vunpack.c.h.b16 %v3102
        %v3393 = vunpack.c.l.b16 %v3103
        %v3394 = vunpack.c.h.b16 %v3103
        %v3395 = vunpack.c.l.b16 %v3104
        %v3396 = vunpack.c.h.b16 %v3104
        %v3397 = vunpack.c.l.b16 %v3105
        %v3398 = vunpack.c.h.b16 %v3105
        %v3399 = vunpack.c.l.b16 %v3106
        %v3400 = vunpack.c.h.b16 %v3106
        %v3401 = vunpack.c.l.b16 %v3107
        %v3402 = vunpack.c.h.b16 %v3107
        %v3403 = vunpack.c.l.b16 %v3108
        %v3404 = vunpack.c.h.b16 %v3108
        %v3405 = vunpack.c.l.b16 %v3109
        %v3406 = vunpack.c.h.b16 %v3109
        %v3407 = vunpack.c.l.b16 %v3110
        %v3408 = vunpack.c.h.b16 %v3110
        %v3409 = vunpack.c.l.b16 %v3111
        %v3410 = vunpack.c.h.b16 %v3111
        %v3411 = vunpack.c.l.b16 %v3112
        %v3412 = vunpack.c.h.b16 %v3112
        %v3413 = vunpack.c.l.b16 %v3113
        %v3414 = vunpack.c.h.b16 %v3113
        %v3415 = vunpack.c.l.b16 %v3114
        %v3416 = vunpack.c.h.b16 %v3114
        %v3417 = vunpack.c.l.b16 %v3115
        %v3418 = vunpack.c.h.b16 %v3115
        %v3419 = vunpack.c.l.b16 %v3116
        %v3420 = vunpack.c.h.b16 %v3116
        %v3421 = vunpack.c.l.b16 %v3117
        %v3422 = vunpack.c.h.b16 %v3117
        %v3423 = vunpack.c.l.b16 %v3118
        %v3424 = vunpack.c.h.b16 %v3118
        %v3425 = vunpack.c.l.b16 %v3119
        %v3426 = vunpack.c.h.b16 %v3119
        %v3427 = vunpack.c.l.b16 %v3120
        %v3428 = vunpack.c.h.b16 %v3120
        %v3429 = vunpack.c.l.b16 %v3121
        %v3430 = vunpack.c.h.b16 %v3121
        %v3431 = vunpack.c.l.b16 %v3122
        %v3432 = vunpack.c.h.b16 %v3122
        %v3433 = vunpack.c.l.b16 %v3123
        %v3434 = vunpack.c.h.b16 %v3123
        %v3435 = vunpack.c.l.b16 %v3124
        %v3436 = vunpack.c.h.b16 %v3124
        %v3437 = vunpack.c.l.b16 %v3125
        %v3438 = vunpack.c.h.b16 %v3125
        %v3439 = vunpack.c.l.b16 %v3126
        %v3440 = vunpack.c.h.b16 %v3126
        %v3441 = vunpack.c.l.b16 %v3127
        %v3442 = vunpack.c.h.b16 %v3127
        %v3443 = vunpack.c.l.b16 %v3128
        %v3444 = vunpack.c.h.b16 %v3128
        %v3445 = vunpack.c.l.b16 %v3129
        %v3446 = vunpack.c.h.b16 %v3129
        %v3447 = vunpack.c.l.b16 %v3130
        %v3448 = vunpack.c.h.b16 %v3130
        %v3449 = vunpack.c.l.b16 %v3131
        %v3450 = vunpack.c.h.b16 %v3131
        %v3451 = vunpack.c.l.b16 %v3132
        %v3452 = vunpack.c.h.b16 %v3132
        %v3453 = vunpack.c.l.b16 %v3133
        %v3454 = vunpack.c.h.b16 %v3133
        %v3455 = vunpack.c.l.b16 %v3134
        %v3456 = vunpack.c.h.b16 %v3134
        %v3457 = vunpack.c.l.b16 %v3135
        %v3458 = vunpack.c.h.b16 %v3135
        %v3459 = vunpack.c.l.b16 %v3136
        %v3460 = vunpack.c.h.b16 %v3136
        %v3461 = vunpack.c.l.b16 %v3137
        %v3462 = vunpack.c.h.b16 %v3137
        %v3463 = vunpack.c.l.b16 %v3138
        %v3464 = vunpack.c.h.b16 %v3138
        %v3465 = vunpack.c.l.b16 %v3139
        %v3466 = vunpack.c.h.b16 %v3139
        %v3467 = vunpack.c.l.b16 %v3140
        %v3468 = vunpack.c.h.b16 %v3140
        %v3469 = vunpack.c.l.b16 %v3141
        %v3470 = vunpack.c.h.b16 %v3141
        %v3471 = vunpack.c.l.b16 %v3142
        %v3472 = vunpack.c.h.b16 %v3142
        %v3473 = vunpack.c.l.b16 %v3143
        %v3474 = vunpack.c.h.b16 %v3143
        %v3475 = vunpack.c.l.b16 %v3144
        %v3476 = vunpack.c.h.b16 %v3144
        %v3477 = vunpack.c.l.b16 %v3145
        %v3478 = vunpack.c.h.b16 %v3145
        %v3479 = vunpack.c.l.b16 %v3146
        %v3480 = vunpack.c.h.b16 %v3146
        %v3481 = vunpack.c.l.b16 %v3147
        %v3482 = vunpack.c.h.b16 %v3147
        %v3483 = vunpack.c.l.b16 %v3148
        %v3484 = vunpack.c.h.b16 %v3148
        %v3485 = vunpack.c.l.b16 %v3149
        %v3486 = vunpack.c.h.b16 %v3149
        %v3487 = vunpack.c.l.b16 %v3150
        %v3488 = vunpack.c.h.b16 %v3150
        %v3489 = vunpack.c.l.b16 %v3151
        %v3490 = vunpack.c.h.b16 %v3151
        %v3491 = vunpack.c.l.b16 %v3152
        %v3492 = vunpack.c.h.b16 %v3152
        %v3493 = vunpack.c.l.b16 %v3153
        %v3494 = vunpack.c.h.b16 %v3153
        %v3495 = vunpack.c.l.b16 %v3154
        %v3496 = vunpack.c.h.b16 %v3154
        %v3497 = vunpack.c.l.b16 %v3155
        %v3498 = vunpack.c.h.b16 %v3155
        %v3499 = vunpack.c.l.b16 %v3156
        %v3500 = vunpack.c.h.b16 %v3156
        %v3501 = vunpack.c.l.b16 %v3157
        %v3502 = vunpack.c.h.b16 %v3157
        %v3503 = vunpack.c.l.b16 %v3158
        %v3504 = vunpack.c.h.b16 %v3158
        %v3505 = vunpack.c.l.b16 %v3159
        %v3506 = vunpack.c.h.b16 %v3159
        %v3507 = vunpack.c.l.b16 %v3160
        %v3508 = vunpack.c.h.b16 %v3160
        %v3509 = vunpack.c.l.b16 %v3161
        %v3510 = vunpack.c.h.b16 %v3161
        %v3511 = vunpack.c.l.b16 %v3162
        %v3512 = vunpack.c.h.b16 %v3162
        %v3513 = vunpack.c.l.b16 %v3163
        %v3514 = vunpack.c.h.b16 %v3163
        %v3515 = vunpack.c.l.b16 %v3164
        %v3516 = vunpack.c.h.b16 %v3164
        %v3517 = vunpack.c.l.b16 %v3165
        %v3518 = vunpack.c.h.b16 %v3165
        %v3519 = vunpack.c.l.b16 %v3166
        %v3520 = vunpack.c.h.b16 %v3166
        %v3521 = vunpack.c.l.b16 %v3167
        %v3522 = vunpack.c.h.b16 %v3167
        %v3523 = vunpack.c.l.b16 %v3168
        %v3524 = vunpack.c.h.b16 %v3168
        %v3525 = vunpack.c.l.b16 %v3169
        %v3526 = vunpack.c.h.b16 %v3169
        %v3527 = vunpack.c.l.b16 %v3170
        %v3528 = vunpack.c.h.b16 %v3170
        %v3529 = vunpack.c.l.b16 %v3171
        %v3530 = vunpack.c.h.b16 %v3171
        %v3531 = vunpack.c.l.b16 %v3172
        %v3532 = vunpack.c.h.b16 %v3172
        %v3533 = vunpack.c.l.b16 %v3173
        %v3534 = vunpack.c.h.b16 %v3173
        %v3535 = vunpack.c.l.b16 %v3174
        %v3536 = vunpack.c.h.b16 %v3174
        %v3537 = vunpack.c.l.b16 %v3175
        %v3538 = vunpack.c.h.b16 %v3175
        %v3539 = vunpack.c.l.b16 %v3176
        %v3540 = vunpack.c.h.b16 %v3176
        %v3541 = vunpack.c.l.b16 %v3177
        %v3542 = vunpack.c.h.b16 %v3177
        %v3543 = vunpack.c.l.b16 %v3178
        %v3544 = vunpack.c.h.b16 %v3178
        %v3545 = vunpack.c.l.b16 %v3179
        %v3546 = vunpack.c.h.b16 %v3179
        %v3547 = vunpack.c.l.b16 %v3180
        %v3548 = vunpack.c.h.b16 %v3180
        %v3549 = vunpack.c.l.b16 %v3181
        %v3550 = vunpack.c.h.b16 %v3181
        %v3551 = vunpack.c.l.b16 %v3182
        %v3552 = vunpack.c.h.b16 %v3182
        %v3553 = vunpack.c.l.b16 %v3183
        %v3554 = vunpack.c.h.b16 %v3183
        %v3555 = vunpack.c.l.b16 %v3184
        %v3556 = vunpack.c.h.b16 %v3184
        %v3557 = vunpack.c.l.b16 %v3185
        %v3558 = vunpack.c.h.b16 %v3185
        %v3559 = vunpack.c.l.b16 %v3186
        %v3560 = vunpack.c.h.b16 %v3186
        %v3561 = vunpack.c.l.b16 %v3187
        %v3562 = vunpack.c.h.b16 %v3187
        %v3563 = vunpack.c.l.b16 %v3188
        %v3564 = vunpack.c.h.b16 %v3188
        %v3565 = vunpack.c.l.b16 %v3189
        %v3566 = vunpack.c.h.b16 %v3189
        %v3567 = vunpack.c.l.b16 %v3190
        %v3568 = vunpack.c.h.b16 %v3190
        %v3569 = vunpack.c.l.b16 %v3191
        %v3570 = vunpack.c.h.b16 %v3191
        %v3571 = vunpack.c.l.b16 %v3192
        %v3572 = vunpack.c.h.b16 %v3192
        %v3573 = vunpack.c.l.b16 %v3193
        %v3574 = vunpack.c.h.b16 %v3193
        %v3575 = vunpack.c.l.b16 %v3194
        %v3576 = vunpack.c.h.b16 %v3194
        %v3577 = vunpack.c.l.b16 %v3195
        %v3578 = vunpack.c.h.b16 %v3195
        %v3579 = vunpack.c.l.b16 %v3196
        %v3580 = vunpack.c.h.b16 %v3196
        %v3581 = vunpack.c.l.b16 %v3197
        %v3582 = vunpack.c.h.b16 %v3197
        %v3583 = vunpack.c.l.b16 %v3198
        %v3584 = vunpack.c.h.b16 %v3198
        %v3585 = vunpack.c.l.b16 %v3199
        %v3586 = vunpack.c.h.b16 %v3199
        %v3587 = vunpack.c.l.b16 %v3200
        %v3588 = vunpack.c.h.b16 %v3200
        %v3589 = vunpack.c.l.b16 %v3201
        %v3590 = vunpack.c.h.b16 %v3201
        %v3591 = vunpack.c.l.b16 %v3202
        %v3592 = vunpack.c.h.b16 %v3202
        %v3593 = vunpack.c.l.b16 %v3203
        %v3594 = vunpack.c.h.b16 %v3203
        %v3595 = vunpack.c.l.b16 %v3204
        %v3596 = vunpack.c.h.b16 %v3204
        %v3597 = vunpack.c.l.b16 %v3205
        %v3598 = vunpack.c.h.b16 %v3205
        %v3599 = vunpack.c.l.b16 %v3206
        %v3600 = vunpack.c.h.b16 %v3206
        %v3601 = vunpack.c.l.b16 %v3207
        %v3602 = vunpack.c.h.b16 %v3207
        %v3603 = vunpack.c.l.b16 %v3208
        %v3604 = vunpack.c.h.b16 %v3208
        %v3605 = vunpack.c.l.b16 %v3209
        %v3606 = vunpack.c.h.b16 %v3209
        %v3607 = vunpack.c.l.b16 %v3210
        %v3608 = vunpack.c.h.b16 %v3210
        %v3609 = vunpack.c.l.b16 %v3211
        %v3610 = vunpack.c.h.b16 %v3211
        %v3611 = vunpack.c.l.b16 %v3212
        %v3612 = vunpack.c.h.b16 %v3212
        %v3613 = vunpack.c.l.b16 %v3213
        %v3614 = vunpack.c.h.b16 %v3213
        %v3615 = vunpack.c.l.b16 %v3214
        %v3616 = vunpack.c.h.b16 %v3214
        %v3617 = vunpack.c.l.b16 %v3215
        %v3618 = vunpack.c.h.b16 %v3215
        %v3619 = vunpack.c.l.b16 %v3216
        %v3620 = vunpack.c.h.b16 %v3216
        %v3621 = vunpack.c.l.b16 %v3217
        %v3622 = vunpack.c.h.b16 %v3217
        %v3623 = vunpack.c.l.b16 %v3218
        %v3624 = vunpack.c.h.b16 %v3218
        %v3625 = vunpack.c.l.b16 %v3219
        %v3626 = vunpack.c.h.b16 %v3219
        %v3627 = vunpack.c.l.b16 %v3220
        %v3628 = vunpack.c.h.b16 %v3220
        %v3629 = vunpack.c.l.b16 %v3221
        %v3630 = vunpack.c.h.b16 %v3221
        %v3631 = vunpack.c.l.b16 %v3222
        %v3632 = vunpack.c.h.b16 %v3222
        %v3633 = vunpack.c.l.b16 %v3223
        %v3634 = vunpack.c.h.b16 %v3223
        %v3635 = vunpack.c.l.b16 %v3224
        %v3636 = vunpack.c.h.b16 %v3224
        %v3637 = vunpack.c.l.b16 %v3225
        %v3638 = vunpack.c.h.b16 %v3225
        %v3639 = vunpack.c.l.b16 %v3226
        %v3640 = vunpack.c.h.b16 %v3226
        %v3641 = vunpack.c.l.b16 %v3227
        %v3642 = vunpack.c.h.b16 %v3227
        %v3643 = vunpack.c.l.b16 %v3228
        %v3644 = vunpack.c.h.b16 %v3228
        %v3645 = vunpack.c.l.b16 %v3229
        %v3646 = vunpack.c.h.b16 %v3229
        %v3647 = vunpack.c.l.b16 %v3230
        %v3648 = vunpack.c.h.b16 %v3230
        %v3649 = vunpack.c.l.b16 %v3231
        %v3650 = vunpack.c.h.b16 %v3231
        %v3651 = vunpack.c.l.b16 %v3232
        %v3652 = vunpack.c.h.b16 %v3232
        %v3653 = vunpack.c.l.b16 %v3233
        %v3654 = vunpack.c.h.b16 %v3233
        %v3655 = vunpack.c.l.b16 %v3234
        %v3656 = vunpack.c.h.b16 %v3234
        %v3657 = vunpack.c.l.b16 %v3235
        %v3658 = vunpack.c.h.b16 %v3235
        %v3659 = vunpack.c.l.b16 %v3236
        %v3660 = vunpack.c.h.b16 %v3236
        %v3661 = vunpack.c.l.b16 %v3237
        %v3662 = vunpack.c.h.b16 %v3237
        %v3663 = vunpack.c.l.b16 %v3238
        %v3664 = vunpack.c.h.b16 %v3238
        %v3665 = vunpack.c.l.b16 %v3239
        %v3666 = vunpack.c.h.b16 %v3239
        %v3667 = vunpack.c.l.b16 %v3240
        %v3668 = vunpack.c.h.b16 %v3240
        %v3669 = vunpack.c.l.b16 %v3241
        %v3670 = vunpack.c.h.b16 %v3241
        %v3671 = vunpack.c.l.b16 %v3242
        %v3672 = vunpack.c.h.b16 %v3242
        %v3673 = vunpack.c.l.b16 %v3243
        %v3674 = vunpack.c.h.b16 %v3243
        %v3675 = vunpack.c.l.b16 %v3244
        %v3676 = vunpack.c.h.b16 %v3244
        %v3677 = vpack.c.b16 %v3395, %v3389
        %v3678 = vpack.c.b16 %v3396, %v3390
        %v3679 = vpack.c.b16 %v3397, %v3391
        %v3680 = vpack.c.b16 %v3398, %v3392
        %v3681 = vpack.c.b16 %v3399, %v3393
        %v3682 = vpack.c.b16 %v3400, %v3394
        %v3683 = vpack.c.b16 %v3407, %v3401
        %v3684 = vpack.c.b16 %v3408, %v3402
        %v3685 = vpack.c.b16 %v3409, %v3403
        %v3686 = vpack.c.b16 %v3410, %v3404
        %v3687 = vpack.c.b16 %v3411, %v3405
        %v3688 = vpack.c.b16 %v3412, %v3406
        %v3689 = vpack.c.b16 %v3419, %v3413
        %v3690 = vpack.c.b16 %v3420, %v3414
        %v3691 = vpack.c.b16 %v3421, %v3415
        %v3692 = vpack.c.b16 %v3422, %v3416
        %v3693 = vpack.c.b16 %v3423, %v3417
        %v3694 = vpack.c.b16 %v3424, %v3418
        %v3695 = vpack.c.b16 %v3431, %v3425
        %v3696 = vpack.c.b16 %v3432, %v3426
        %v3697 = vpack.c.b16 %v3433, %v3427
        %v3698 = vpack.c.b16 %v3434, %v3428
        %v3699 = vpack.c.b16 %v3435, %v3429
        %v3700 = vpack.c.b16 %v3436, %v3430
        %v3701 = vpack.c.b16 %v3443, %v3437
        %v3702 = vpack.c.b16 %v3444, %v3438
        %v3703 = vpack.c.b16 %v3445, %v3439
        %v3704 = vpack.c.b16 %v3446, %v3440
        %v3705 = vpack.c.b16 %v3447, %v3441
        %v3706 = vpack.c.b16 %v3448, %v3442
        %v3707 = vpack.c.b16 %v3455, %v3449
        %v3708 = vpack.c.b16 %v3456, %v3450
        %v3709 = vpack.c.b16 %v3457, %v3451
        %v3710 = vpack.c.b16 %v3458, %v3452
        %v3711 = vpack.c.b16 %v3459, %v3453
        %v3712 = vpack.c.b16 %v3460, %v3454
        %v3713 = vpack.c.b16 %v3467, %v3461
        %v3714 = vpack.c.b16 %v3468, %v3462
        %v3715 = vpack.c.b16 %v3469, %v3463
        %v3716 = vpack.c.b16 %v3470, %v3464
        %v3717 = vpack.c.b16 %v3471, %v3465
        %v3718 = vpack.c.b16 %v3472, %v3466
        %v3719 = vpack.c.b16 %v3479, %v3473
        %v3720 = vpack.c.b16 %v3480, %v3474
        %v3721 = vpack.c.b16 %v3481, %v3475
        %v3722 = vpack.c.b16 %v3482, %v3476
        %v3723 = vpack.c.b16 %v3483, %v3477
        %v3724 = vpack.c.b16 %v3484, %v3478
        %v3725 = vpack.c.b16 %v3491, %v3485
        %v3726 = vpack.c.b16 %v3492, %v3486
        %v3727 = vpack.c.b16 %v3493, %v3487
        %v3728 = vpack.c.b16 %v3494, %v3488
        %v3729 = vpack.c.b16 %v3495, %v3489
        %v3730 = vpack.c.b16 %v3496, %v3490
        %v3731 = vpack.c.b16 %v3503, %v3497
        %v3732 = vpack.c.b16 %v3504, %v3498
        %v3733 = vpack.c.b16 %v3505, %v3499
        %v3734 = vpack.c.b16 %v3506, %v3500
        %v3735 = vpack.c.b16 %v3507, %v3501
        %v3736 = vpack.c.b16 %v3508, %v3502
        %v3737 = vpack.c.b16 %v3515, %v3509
        %v3738 = vpack.c.b16 %v3516, %v3510
        %v3739 = vpack.c.b16 %v3517, %v3511
        %v3740 = vpack.c.b16 %v3518, %v3512
        %v3741 = vpack.c.b16 %v3519, %v3513
        %v3742 = vpack.c.b16 %v3520, %v3514
        %v3743 = vpack.c.b16 %v3527, %v3521
        %v3744 = vpack.c.b16 %v3528, %v3522
        %v3745 = vpack.c.b16 %v3529, %v3523
        %v3746 = vpack.c.b16 %v3530, %v3524
        %v3747 = vpack.c.b16 %v3531, %v3525
        %v3748 = vpack.c.b16 %v3532, %v3526
        %v3749 = vpack.c.b16 %v3539, %v3533
        %v3750 = vpack.c.b16 %v3540, %v3534
        %v3751 = vpack.c.b16 %v3541, %v3535
        %v3752 = vpack.c.b16 %v3542, %v3536
        %v3753 = vpack.c.b16 %v3543, %v3537
        %v3754 = vpack.c.b16 %v3544, %v3538
        %v3755 = vpack.c.b16 %v3551, %v3545
        %v3756 = vpack.c.b16 %v3552, %v3546
        %v3757 = vpack.c.b16 %v3553, %v3547
        %v3758 = vpack.c.b16 %v3554, %v3548
        %v3759 = vpack.c.b16 %v3555, %v3549
        %v3760 = vpack.c.b16 %v3556, %v3550
        %v3761 = vpack.c.b16 %v3563, %v3557
        %v3762 = vpack.c.b16 %v3564, %v3558
        %v3763 = vpack.c.b16 %v3565, %v3559
        %v3764 = vpack.c.b16 %v3566, %v3560
        %v3765 = vpack.c.b16 %v3567, %v3561
        %v3766 = vpack.c.b16 %v3568, %v3562
        %v3767 = vpack.c.b16 %v3575, %v3569
        %v3768 = vpack.c.b16 %v3576, %v3570
        %v3769 = vpack.c.b16 %v3577, %v3571
        %v3770 = vpack.c.b16 %v3578, %v3572
        %v3771 = vpack.c.b16 %v3579, %v3573
        %v3772 = vpack.c.b16 %v3580, %v3574
        %v3773 = vpack.c.b16 %v3587, %v3581
        %v3774 = vpack.c.b16 %v3588, %v3582
        %v3775 = vpack.c.b16 %v3589, %v3583
        %v3776 = vpack.c.b16 %v3590, %v3584
        %v3777 = vpack.c.b16 %v3591, %v3585
        %v3778 = vpack.c.b16 %v3592, %v3586
        %v3779 = vpack.c.b16 %v3599, %v3593
        %v3780 = vpack.c.b16 %v3600, %v3594
        %v3781 = vpack.c.b16 %v3601, %v3595
        %v3782 = vpack.c.b16 %v3602, %v3596
        %v3783 = vpack.c.b16 %v3603, %v3597
        %v3784 = vpack.c.b16 %v3604, %v3598
        %v3785 = vpack.c.b16 %v3611, %v3605
        %v3786 = vpack.c.b16 %v3612, %v3606
        %v3787 = vpack.c.b16 %v3613, %v3607
        %v3788 = vpack.c.b16 %v3614, %v3608
        %v3789 = vpack.c.b16 %v3615, %v3609
        %v3790 = vpack.c.b16 %v3616, %v3610
        %v3791 = vpack.c.b16 %v3623, %v3617
        %v3792 = vpack.c.b16 %v3624, %v3618
        %v3793 = vpack.c.b16 %v3625, %v3619
        %v3794 = vpack.c.b16 %v3626, %v3620
        %v3795 = vpack.c.b16 %v3627, %v3621
        %v3796 = vpack.c.b16 %v3628, %v3622
        %v3797 = vpack.c.b16 %v3635, %v3629
        %v3798 = vpack.c.b16 %v3636, %v3630
        %v3799 = vpack.c.b16 %v3637, %v3631
        %v3800 = vpack.c.b16 %v3638, %v3632
        %v3801 = vpack.c.b16 %v3639, %v3633
        %v3802 = vpack.c.b16 %v3640, %v3634
        %v3803 = vpack.c.b16 %v3647, %v3641
        %v3804 = vpack.c.b16 %v3648, %v3642
        %v3805 = vpack.c.b16 %v3649, %v3643
        %v3806 = vpack.c.b16 %v3650, %v3644
        %v3807 = vpack.c.b16 %v3651, %v3645
        %v3808 = vpack.c.b16 %v3652, %v3646
        %v3809 = vpack.c.b16 %v3659, %v3653
        %v3810 = vpack.c.b16 %v3660, %v3654
        %v3811 = vpack.c.b16 %v3661, %v3655
        %v3812 = vpack.c.b16 %v3662, %v3656
        %v3813 = vpack.c.b16 %v3663, %v3657
        %v3814 = vpack.c.b16 %v3664, %v3658
        %v3815 = vpack.c.b16 %v3671, %v3665
        %v3816 = vpack.c.b16 %v3672, %v3666
        %v3817 = vpack.c.b16 %v3673, %v3667
        %v3818 = vpack.c.b16 %v3674, %v3668
        %v3819 = vpack.c.b16 %v3675, %v3669
        %v3820 = vpack.c.b16 %v3676, %v3670
        %3965 = vmatprep.subr.bf16.mxu0 %v3678
        %3966 = vmatpush1.bf16.msra.mxu0 %v3677
        %3967 = vmatprep.subr.bf16.mxu0 %v3684
        %3968 = vmatpush1.bf16.msra.mxu0 %v3683
        %3969 = vmatprep.subr.bf16.mxu0 %v3690
        %3970 = vmatpush1.bf16.msra.mxu0 %v3689
        %3971 = vmatprep.subr.bf16.mxu0 %v3696
        %3972 = vmatpush1.bf16.msra.mxu0 %v3695
        %3973 = vmatprep.subr.bf16.mxu0 %v3702
        %3974 = vmatpush1.bf16.msra.mxu0 %v3701
        %3975 = vmatprep.subr.bf16.mxu0 %v3708
        %3976 = vmatpush1.bf16.msra.mxu0 %v3707
        %3977 = vmatprep.subr.bf16.mxu0 %v3714
        %3978 = vmatpush1.bf16.msra.mxu0 %v3713
        %3979 = vmatprep.subr.bf16.mxu0 %v3720
        %3980 = vmatpush1.bf16.msra.mxu0 %v3719
        %3981 = vmatprep.subr.bf16.mxu0 %v3726
        %3982 = vmatpush1.bf16.msra.mxu0 %v3725
        %3983 = vmatprep.subr.bf16.mxu0 %v3732
        %3984 = vmatpush1.bf16.msra.mxu0 %v3731
        %3985 = vmatprep.subr.bf16.mxu0 %v3738
        %3986 = vmatpush1.bf16.msra.mxu0 %v3737
        %3987 = vmatprep.subr.bf16.mxu0 %v3744
        %3988 = vmatpush1.bf16.msra.mxu0 %v3743
        %3989 = vmatprep.subr.bf16.mxu0 %v3750
        %3990 = vmatpush1.bf16.msra.mxu0 %v3749
        %3991 = vmatprep.subr.bf16.mxu0 %v3756
        %3992 = vmatpush1.bf16.msra.mxu0 %v3755
        %3993 = vmatprep.subr.bf16.mxu0 %v3762
        %3994 = vmatpush1.bf16.msra.mxu0 %v3761
        %3995 = vmatprep.subr.bf16.mxu0 %v3768
        %3996 = vmatpush1.bf16.msra.mxu0 %v3767
        %3997 = vmatprep.mubr.bf16.mxu0 %v3099
        %3998 = vmatmul.mubr.bf16.gmra.mrb[0].mxu0 %v3098
        %v3999 = vpop.f32.mrb[0].mxu0
        %v4000 = vadd.f32 0.0, %v3999
        %v4001 = vpop.f32.mrb[0].mxu0
        %v4002 = vadd.f32 0.0, %v4001
        %v4003 = vpop.f32.mrb[0].mxu0
        %v4004 = vadd.f32 0.0, %v4003
        %v4005 = vpop.f32.mrb[0].mxu0
        %v4006 = vadd.f32 0.0, %v4005
        %4007 = vdwg.mxu0
        %4008 = vmatprep.subr.bf16.mxu0 %v3774
        %4009 = vmatpush1.bf16.msra.mxu0 %v3773
        %4010 = vmatprep.subr.bf16.mxu0 %v3780
        %4011 = vmatpush1.bf16.msra.mxu0 %v3779
        %4012 = vmatprep.subr.bf16.mxu0 %v3786
        %4013 = vmatpush1.bf16.msra.mxu0 %v3785
        %4014 = vmatprep.subr.bf16.mxu0 %v3792
        %4015 = vmatpush1.bf16.msra.mxu0 %v3791
        %4016 = vmatprep.subr.bf16.mxu0 %v3798
        %4017 = vmatpush1.bf16.msra.mxu0 %v3797
        %4018 = vmatprep.subr.bf16.mxu0 %v3804
        %4019 = vmatpush1.bf16.msra.mxu0 %v3803
        %4020 = vmatprep.subr.bf16.mxu0 %v3810
        %4021 = vmatpush1.bf16.msra.mxu0 %v3809
        %4022 = vmatprep.subr.bf16.mxu0 %v3816
        %4023 = vmatpush1.bf16.msra.mxu0 %v3815
        %4024 = vmatprep.subr.bf16.mxu0 0
        %4025 = vmatpush1.bf16.msra.mxu0 0
        %4026 = vmatprep.subr.bf16.mxu0 0
        %4027 = vmatpush1.bf16.msra.mxu0 0
        %4028 = vmatprep.subr.bf16.mxu0 0
        %4029 = vmatpush1.bf16.msra.mxu0 0
        %4030 = vmatprep.subr.bf16.mxu0 0
        %4031 = vmatpush1.bf16.msra.mxu0 0
        %4032 = vmatprep.subr.bf16.mxu0 0
        %4033 = vmatpush1.bf16.msra.mxu0 0
        %4034 = vmatprep.subr.bf16.mxu0 0
        %4035 = vmatpush1.bf16.msra.mxu0 0
        %4036 = vmatprep.subr.bf16.mxu0 0
        %4037 = vmatpush1.bf16.msra.mxu0 0
        %4038 = vmatprep.subr.bf16.mxu0 0
        %4039 = vmatpush1.bf16.msra.mxu0 0
        %4040 = vmatprep.mubr.bf16.mxu0 0
        %4041 = vmatmul.mubr.bf16.gmra.mrb[0].mxu0 %v3100
        %v4042 = vpop.f32.mrb[0].mxu0
        %v4043 = vadd.f32 %v4000, %v4042
        %v4044 = vpop.f32.mrb[0].mxu0
        %v4045 = vadd.f32 %v4002, %v4044
        %v4046 = vpop.f32.mrb[0].mxu0
        %v4047 = vadd.f32 %v4004, %v4046
        %v4048 = vpop.f32.mrb[0].mxu0
        %v4049 = vadd.f32 %v4006, %v4048
        %4050 = vdwg.mxu0
        %4051 = vmatprep.subr.bf16.mxu0 %v3680
        %4052 = vmatpush1.bf16.msra.mxu0 %v3679
        %4053 = vmatprep.subr.bf16.mxu0 %v3686
        %4054 = vmatpush1.bf16.msra.mxu0 %v3685
        %4055 = vmatprep.subr.bf16.mxu0 %v3692
        %4056 = vmatpush1.bf16.msra.mxu0 %v3691
        %4057 = vmatprep.subr.bf16.mxu0 %v3698
        %4058 = vmatpush1.bf16.msra.mxu0 %v3697
        %4059 = vmatprep.subr.bf16.mxu0 %v3704
        %4060 = vmatpush1.bf16.msra.mxu0 %v3703
        %4061 = vmatprep.subr.bf16.mxu0 %v3710
        %4062 = vmatpush1.bf16.msra.mxu0 %v3709
        %4063 = vmatprep.subr.bf16.mxu0 %v3716
        %4064 = vmatpush1.bf16.msra.mxu0 %v3715
        %4065 = vmatprep.subr.bf16.mxu0 %v3722
        %4066 = vmatpush1.bf16.msra.mxu0 %v3721
        %4067 = vmatprep.subr.bf16.mxu0 %v3728
        %4068 = vmatpush1.bf16.msra.mxu0 %v3727
        %4069 = vmatprep.subr.bf16.mxu0 %v3734
        %4070 = vmatpush1.bf16.msra.mxu0 %v3733
        %4071 = vmatprep.subr.bf16.mxu0 %v3740
        %4072 = vmatpush1.bf16.msra.mxu0 %v3739
        %4073 = vmatprep.subr.bf16.mxu0 %v3746
        %4074 = vmatpush1.bf16.msra.mxu0 %v3745
        %4075 = vmatprep.subr.bf16.mxu0 %v3752
        %4076 = vmatpush1.bf16.msra.mxu0 %v3751
        %4077 = vmatprep.subr.bf16.mxu0 %v3758
        %4078 = vmatpush1.bf16.msra.mxu0 %v3757
        %4079 = vmatprep.subr.bf16.mxu0 %v3764
        %4080 = vmatpush1.bf16.msra.mxu0 %v3763
        %4081 = vmatprep.subr.bf16.mxu0 %v3770
        %4082 = vmatpush1.bf16.msra.mxu0 %v3769
        %4083 = vmatprep.mubr.bf16.mxu0 %v3099
        %4084 = vmatmul.mubr.bf16.gmra.mrb[0].mxu0 %v3098
        %v4085 = vpop.f32.mrb[0].mxu0
        %v4086 = vadd.f32 0.0, %v4085
        %v4087 = vpop.f32.mrb[0].mxu0
        %v4088 = vadd.f32 0.0, %v4087
        %v4089 = vpop.f32.mrb[0].mxu0
        %v4090 = vadd.f32 0.0, %v4089
        %v4091 = vpop.f32.mrb[0].mxu0
        %v4092 = vadd.f32 0.0, %v4091
        %4093 = vdwg.mxu0
        %4094 = vmatprep.subr.bf16.mxu0 %v3776
        %4095 = vmatpush1.bf16.msra.mxu0 %v3775
        %4096 = vmatprep.subr.bf16.mxu0 %v3782
        %4097 = vmatpush1.bf16.msra.mxu0 %v3781
        %4098 = vmatprep.subr.bf16.mxu0 %v3788
        %4099 = vmatpush1.bf16.msra.mxu0 %v3787
        %4100 = vmatprep.subr.bf16.mxu0 %v3794
        %4101 = vmatpush1.bf16.msra.mxu0 %v3793
        %4102 = vmatprep.subr.bf16.mxu0 %v3800
        %4103 = vmatpush1.bf16.msra.mxu0 %v3799
        %4104 = vmatprep.subr.bf16.mxu0 %v3806
        %4105 = vmatpush1.bf16.msra.mxu0 %v3805
        %4106 = vmatprep.subr.bf16.mxu0 %v3812
        %4107 = vmatpush1.bf16.msra.mxu0 %v3811
        %4108 = vmatprep.subr.bf16.mxu0 %v3818
        %4109 = vmatpush1.bf16.msra.mxu0 %v3817
        %4110 = vmatprep.subr.bf16.mxu0 0
        %4111 = vmatpush1.bf16.msra.mxu0 0
        %4112 = vmatprep.subr.bf16.mxu0 0
        %4113 = vmatpush1.bf16.msra.mxu0 0
        %4114 = vmatprep.subr.bf16.mxu0 0
        %4115 = vmatpush1.bf16.msra.mxu0 0
        %4116 = vmatprep.subr.bf16.mxu0 0
        %4117 = vmatpush1.bf16.msra.mxu0 0
        %4118 = vmatprep.subr.bf16.mxu0 0
        %4119 = vmatpush1.bf16.msra.mxu0 0
        %4120 = vmatprep.subr.bf16.mxu0 0
        %4121 = vmatpush1.bf16.msra.mxu0 0
        %4122 = vmatprep.subr.bf16.mxu0 0
        %4123 = vmatpush1.bf16.msra.mxu0 0
        %4124 = vmatprep.subr.bf16.mxu0 0
        %4125 = vmatpush1.bf16.msra.mxu0 0
        %4126 = vmatprep.mubr.bf16.mxu0 0
        %4127 = vmatmul.mubr.bf16.gmra.mrb[0].mxu0 %v3100
        %v4128 = vpop.f32.mrb[0].mxu0
        %v4129 = vadd.f32 %v4086, %v4128
        %v4130 = vpop.f32.mrb[0].mxu0
        %v4131 = vadd.f32 %v4088, %v4130
        %v4132 = vpop.f32.mrb[0].mxu0
        %v4133 = vadd.f32 %v4090, %v4132
        %v4134 = vpop.f32.mrb[0].mxu0
        %v4135 = vadd.f32 %v4092, %v4134
        %4136 = vdwg.mxu0
        %4137 = vmatprep.subr.bf16.mxu0 %v3682
        %4138 = vmatpush1.bf16.msra.mxu0 %v3681
        %4139 = vmatprep.subr.bf16.mxu0 %v3688
        %4140 = vmatpush1.bf16.msra.mxu0 %v3687
        %4141 = vmatprep.subr.bf16.mxu0 %v3694
        %4142 = vmatpush1.bf16.msra.mxu0 %v3693
        %4143 = vmatprep.subr.bf16.mxu0 %v3700
        %4144 = vmatpush1.bf16.msra.mxu0 %v3699
        %4145 = vmatprep.subr.bf16.mxu0 %v3706
        %4146 = vmatpush1.bf16.msra.mxu0 %v3705
        %4147 = vmatprep.subr.bf16.mxu0 %v3712
        %4148 = vmatpush1.bf16.msra.mxu0 %v3711
        %4149 = vmatprep.subr.bf16.mxu0 %v3718
        %4150 = vmatpush1.bf16.msra.mxu0 %v3717
        %4151 = vmatprep.subr.bf16.mxu0 %v3724
        %4152 = vmatpush1.bf16.msra.mxu0 %v3723
        %4153 = vmatprep.subr.bf16.mxu0 %v3730
        %4154 = vmatpush1.bf16.msra.mxu0 %v3729
        %4155 = vmatprep.subr.bf16.mxu0 %v3736
        %4156 = vmatpush1.bf16.msra.mxu0 %v3735
        %4157 = vmatprep.subr.bf16.mxu0 %v3742
        %4158 = vmatpush1.bf16.msra.mxu0 %v3741
        %4159 = vmatprep.subr.bf16.mxu0 %v3748
        %4160 = vmatpush1.bf16.msra.mxu0 %v3747
        %4161 = vmatprep.subr.bf16.mxu0 %v3754
        %4162 = vmatpush1.bf16.msra.mxu0 %v3753
        %4163 = vmatprep.subr.bf16.mxu0 %v3760
        %4164 = vmatpush1.bf16.msra.mxu0 %v3759
        %4165 = vmatprep.subr.bf16.mxu0 %v3766
        %4166 = vmatpush1.bf16.msra.mxu0 %v3765
        %4167 = vmatprep.subr.bf16.mxu0 %v3772
        %4168 = vmatpush1.bf16.msra.mxu0 %v3771
        %4169 = vmatprep.mubr.bf16.mxu0 %v3099
        %4170 = vmatmul.mubr.bf16.gmra.mrb[0].mxu0 %v3098
        %v4171 = vpop.f32.mrb[0].mxu0
        %v4172 = vadd.f32 0.0, %v4171
        %v4173 = vpop.f32.mrb[0].mxu0
        %v4174 = vadd.f32 0.0, %v4173
        %v4175 = vpop.f32.mrb[0].mxu0
        %v4176 = vadd.f32 0.0, %v4175
        %v4177 = vpop.f32.mrb[0].mxu0
        %v4178 = vadd.f32 0.0, %v4177
        %4179 = vdwg.mxu0
        %4180 = vmatprep.subr.bf16.mxu0 %v3778
        %4181 = vmatpush1.bf16.msra.mxu0 %v3777
        %4182 = vmatprep.subr.bf16.mxu0 %v3784
        %4183 = vmatpush1.bf16.msra.mxu0 %v3783
        %4184 = vmatprep.subr.bf16.mxu0 %v3790
        %4185 = vmatpush1.bf16.msra.mxu0 %v3789
        %4186 = vmatprep.subr.bf16.mxu0 %v3796
        %4187 = vmatpush1.bf16.msra.mxu0 %v3795
        %4188 = vmatprep.subr.bf16.mxu0 %v3802
        %4189 = vmatpush1.bf16.msra.mxu0 %v3801
        %4190 = vmatprep.subr.bf16.mxu0 %v3808
        %4191 = vmatpush1.bf16.msra.mxu0 %v3807
        %4192 = vmatprep.subr.bf16.mxu0 %v3814
        %4193 = vmatpush1.bf16.msra.mxu0 %v3813
        %4194 = vmatprep.subr.bf16.mxu0 %v3820
        %4195 = vmatpush1.bf16.msra.mxu0 %v3819
        %4196 = vmatprep.subr.bf16.mxu0 0
        %4197 = vmatpush1.bf16.msra.mxu0 0
        %4198 = vmatprep.subr.bf16.mxu0 0
        %4199 = vmatpush1.bf16.msra.mxu0 0
        %4200 = vmatprep.subr.bf16.mxu0 0
        %4201 = vmatpush1.bf16.msra.mxu0 0
        %4202 = vmatprep.subr.bf16.mxu0 0
        %4203 = vmatpush1.bf16.msra.mxu0 0
        %4204 = vmatprep.subr.bf16.mxu0 0
        %4205 = vmatpush1.bf16.msra.mxu0 0
        %4206 = vmatprep.subr.bf16.mxu0 0
        %4207 = vmatpush1.bf16.msra.mxu0 0
        %4208 = vmatprep.subr.bf16.mxu0 0
        %4209 = vmatpush1.bf16.msra.mxu0 0
        %4210 = vmatprep.subr.bf16.mxu0 0
        %4211 = vmatpush1.bf16.msra.mxu0 0
        %4212 = vmatprep.mubr.bf16.mxu0 0
        %4213 = vmatmul.mubr.bf16.gmra.mrb[0].mxu0 %v3100
        %v4214 = vpop.f32.mrb[0].mxu0
        %v4215 = vadd.f32 %v4172, %v4214
        %v4216 = vpop.f32.mrb[0].mxu0
        %v4217 = vadd.f32 %v4174, %v4216
        %v4218 = vpop.f32.mrb[0].mxu0
        %v4219 = vadd.f32 %v4176, %v4218
        %v4220 = vpop.f32.mrb[0].mxu0
        %v4221 = vadd.f32 %v4178, %v4220
        %4222 = vdwg.mxu0
        %v4223 = vadd.f32 %v3086, %v4043
        %v4224 = vadd.f32 %v3087, %v4045
        %v4225 = vadd.f32 %v3088, %v4129
        %v4226 = vadd.f32 %v3089, %v4131
        %v4227 = vadd.f32 %v3090, %v4215
        %v4228 = vadd.f32 %v3091, %v4217
        %v4229 = vadd.f32 %v3092, %v4047
        %v4230 = vadd.f32 %v3093, %v4049
        %v4231 = vadd.f32 %v3094, %v4133
        %v4232 = vadd.f32 %v3095, %v4135
        %v4233 = vadd.f32 %v3096, %v4219
        %v4234 = vadd.f32 %v3097, %v4221
        %4235 = vst [vmem:[#allocation3] sm:$0xff] %v4223
        %4236 = vst [vmem:[#allocation3 + $0x8] sm:$0xff] %v4224
        %4237 = vst [vmem:[#allocation3 + $0x10] sm:$0xff] %v4225
        %4238 = vst [vmem:[#allocation3 + $0x18] sm:$0xff] %v4226
        %4239 = vst [vmem:[#allocation3 + $0x20] sm:$0xff] %v4227
        %4240 = vst [vmem:[#allocation3 + $0x28] sm:$0xff] %v4228
        %4241 = vst [vmem:[#allocation3 + $0x30] sm:$0xff] %v4229
        %4242 = vst [vmem:[#allocation3 + $0x38] sm:$0xff] %v4230
        %4243 = vst [vmem:[#allocation3 + $0x40] sm:$0xff] %v4231
        %4244 = vst [vmem:[#allocation3 + $0x48] sm:$0xff] %v4232
        %4245 = vst [vmem:[#allocation3 + $0x50] sm:$0xff] %v4233
        %4246 = vst [vmem:[#allocation3 + $0x58] sm:$0xff] %v4234
        %p4247 = scmp.eq.s32.totalorder %s22, 5
        // Predicated region
        $region71: #{antigen_convert_forward.1} parent=61 // pred_check
          %p4248 = pneg %p4247
        $region72: #{antigen_convert_forward.1} parent=61 // pred_check_branch
          %4250 = sbr.rel (%p4248) target = $region74
        $region73: #{antigen_convert_forward.1} parent=61 // pred_region
          %v4251 = vld [vmem:[#allocation3] sm:$0xff]
          %v4252 = vld [vmem:[#allocation3 + $0x8] sm:$0xff]
          %v4253 = vld [vmem:[#allocation3 + $0x10] sm:$0xff]
          %v4254 = vld [vmem:[#allocation3 + $0x18] sm:$0xff]
          %v4255 = vld [vmem:[#allocation3 + $0x20] sm:$0xff]
          %v4256 = vld [vmem:[#allocation3 + $0x28] sm:$0xff]
          %v4257 = vld [vmem:[#allocation3 + $0x30] sm:$0xff]
          %v4258 = vld [vmem:[#allocation3 + $0x38] sm:$0xff]
          %v4259 = vld [vmem:[#allocation3 + $0x40] sm:$0xff]
          %v4260 = vld [vmem:[#allocation3 + $0x48] sm:$0xff]
          %v4261 = vld [vmem:[#allocation3 + $0x50] sm:$0xff]
          %v4262 = vld [vmem:[#allocation3 + $0x58] sm:$0xff]
          %v4263 = vld [vmem:[%s4] sm:$0x3f]
          %v4265 = vlaneseq
          %v4266 = vshrl.u32 %v4265, 7
          %v4267 = vsub.s32 0, %v4266
          %v4268 = vrot.slane %v4263, %v4267
          %v4269 = vlaneseq
          %v4270 = vshrl.u32 %v4269, 7
          %v4271 = vsub.s32 1, %v4270
          %v4272 = vrot.slane %v4263, %v4271
          %v4273 = vlaneseq
          %v4274 = vshrl.u32 %v4273, 7
          %v4275 = vsub.s32 2, %v4274
          %v4276 = vrot.slane %v4263, %v4275
          %v4277 = vlaneseq
          %v4278 = vshrl.u32 %v4277, 7
          %v4279 = vsub.s32 3, %v4278
          %v4280 = vrot.slane %v4263, %v4279
          %v4281 = vlaneseq
          %v4282 = vshrl.u32 %v4281, 7
          %v4283 = vsub.s32 4, %v4282
          %v4284 = vrot.slane %v4263, %v4283
          %v4285 = vlaneseq
          %v4286 = vshrl.u32 %v4285, 7
          %v4287 = vsub.s32 5, %v4286
          %v4288 = vrot.slane %v4263, %v4287
          %v4295 = vadd.f32 %v4251, %v4268
          %v4296 = vadd.f32 %v4252, %v4272
          %v4297 = vadd.f32 %v4253, %v4276
          %v4298 = vadd.f32 %v4254, %v4280
          %v4299 = vadd.f32 %v4255, %v4284
          %v4300 = vadd.f32 %v4256, %v4288
          %v4301 = vadd.f32 %v4257, %v4268
          %v4302 = vadd.f32 %v4258, %v4272
          %v4303 = vadd.f32 %v4259, %v4276
          %v4304 = vadd.f32 %v4260, %v4280
          %v4305 = vadd.f32 %v4261, %v4284
          %v4306 = vadd.f32 %v4262, %v4288
          %v4307 = vmax.f32 %v4295, 0.0
          %v4308 = vmax.f32 %v4296, 0.0
          %v4309 = vmax.f32 %v4297, 0.0
          %v4310 = vmax.f32 %v4298, 0.0
          %v4311 = vmax.f32 %v4299, 0.0
          %v4312 = vmax.f32 %v4300, 0.0
          %v4313 = vmax.f32 %v4301, 0.0
          %v4314 = vmax.f32 %v4302, 0.0
          %v4315 = vmax.f32 %v4303, 0.0
          %v4316 = vmax.f32 %v4304, 0.0
          %v4317 = vmax.f32 %v4305, 0.0
          %v4318 = vmax.f32 %v4306, 0.0
          %4319 = vst [vmem:[#allocation3] sm:$0xff] %v4307
          %4320 = vst [vmem:[#allocation3 + $0x8] sm:$0xff] %v4308
          %4321 = vst [vmem:[#allocation3 + $0x10] sm:$0xff] %v4309
          %4322 = vst [vmem:[#allocation3 + $0x18] sm:$0xff] %v4310
          %4323 = vst [vmem:[#allocation3 + $0x20] sm:$0xff] %v4311
          %4324 = vst [vmem:[#allocation3 + $0x28] sm:$0xff] %v4312
          %4325 = vst [vmem:[#allocation3 + $0x30] sm:$0xff] %v4313
          %4326 = vst [vmem:[#allocation3 + $0x38] sm:$0xff] %v4314
          %4327 = vst [vmem:[#allocation3 + $0x40] sm:$0xff] %v4315
          %4328 = vst [vmem:[#allocation3 + $0x48] sm:$0xff] %v4316
          %4329 = vst [vmem:[#allocation3 + $0x50] sm:$0xff] %v4317
          %4330 = vst [vmem:[#allocation3 + $0x58] sm:$0xff] %v4318
        $region74: #{antigen_convert_forward.1} parent=61 // pred_fallthru
          _
        // Predicated region
        $region75: #{antigen_convert_forward.1} parent=61 // pred_check
          %p4331 = pneg %p172
        $region76: #{antigen_convert_forward.1} parent=61 // pred_check_branch
          %4333 = sbr.rel (%p4331) target = $region78
        $region77: #{antigen_convert_forward.1} parent=61 // pred_region
          %s4334 = smul.u32 2, %s21
          %s4336 = ssub.s32 1536, 1536
          %4337 = vsyncadd [#allocation4], %s4336
          %s4338 = smul.addr %s4334, 6
          %s4339 = smul.addr %s4338, 128
          %s4340 = scalar_lea.hbm %s5, %s4339
          %s4341 = sshll.u32 [#allocation3], 4
          %s4342 = int_to_ptr.vmem [resolvable:$true] %s4341
          %4347 = dma.vmem_to_hbm [thread:$0]  %s4342, 1536, %s4340, [#allocation4], 768, 768, 48
        $region78: #{antigen_convert_forward.1} parent=61 // pred_fallthru
          _
        // Predicated region
        $region79: #{antigen_convert_forward.1} parent=61 // pred_check
          %p4348 = pneg %p172
        $region80: #{antigen_convert_forward.1} parent=61 // pred_check_branch
          %4350 = sbr.rel (%p4348) target = $region82
        $region81: #{antigen_convert_forward.1} parent=61 // pred_region
          %4351 = dma.done [#allocation4], 1536
        $region82: #{antigen_convert_forward.1} parent=61 // pred_fallthru
          _
      $region62: #{antigen_convert_forward.1} parent=5 // pred_fallthru
        _
      %p4352 = scmp.le.s32.totalorder 2, %s12
      // Predicated region
      $region83: #{antigen_convert_forward.1} parent=5 // pred_check
        %p4353 = pneg %p4352
      $region84: #{antigen_convert_forward.1} parent=5 // pred_check_branch
        %4355 = sbr.rel (%p4353) target = $region86
      $region85: #{antigen_convert_forward.1} parent=5 // pred_region
        %s4356 = ssub.s32 %s12, 2
      $region86: #{antigen_convert_forward.1} parent=5 // pred_fallthru
        _
    $region6: #{antigen_convert_forward.1} parent=1 // loop_footer
      %s16 = sadd.s32 1, %s12
    $region7: #{antigen_convert_forward.1} parent=1 // loop_footer_branch
      %11 = sbr.rel target = $region3
    $region8: #{antigen_convert_forward.1} parent=1 // loop_exit
      _
    %4357 = vsyncpa [#allocation4], 1
    %s4358 = scalar_lea.sflag [#allocation4], 1
    %4359 = vsyncpa %s4358, 1

</llo_original>
